<compile_context>
chip_gen: v6e
topology: v6e:2x2x1
jax: 0.10.0
libtpu: 0.0.40
codegen_flags: <defaults>
</compile_context>

<pallas_src>
import functools

import jax
import jax.numpy as jnp
from jax import lax
from jax.experimental import pallas as pl
from jax.experimental.pallas import tpu as pltpu


def _round_up(x, m):
    return ((x + m - 1) // m) * m


# ----------------------------------------------------------------------------
# Fused Pallas kernel: num_layers LSTM layers + linear head, all in VMEM.
# ----------------------------------------------------------------------------
def _make_fused_kernel(num_layers, T, Bp, H):
    def kernel(*refs):
        x_ref = refs[0]                                  # (T*Bp, D_in0)
        w_refs = refs[1:1 + 3 * num_layers]              # (wih_t, whh_t, b) per layer
        wlin_ref = refs[1 + 3 * num_layers]              # (H, Vp)
        blin_ref = refs[2 + 3 * num_layers]              # (1, Vp)
        out_ref = refs[3 + 3 * num_layers]               # (T*Bp, Vp)
        xp_scr = refs[4 + 3 * num_layers]                # (T*Bp, 4H) scratch
        y_scr = refs[5 + 3 * num_layers]                 # (T*Bp, H)  scratch

        src = x_ref[...]                                 # current layer input
        for l in range(num_layers):
            wih = w_refs[3 * l][...]                     # (D_in, 4H)
            whh = w_refs[3 * l + 1][...]                 # (H, 4H)
            b = w_refs[3 * l + 2][...]                   # (1, 4H)

            # Hoisted input projection for all timesteps, bias folded in once.
            xp_scr[...] = (
                jnp.dot(src, wih, preferred_element_type=jnp.float32) + b
            )

            def step(t, carry, whh=whh):
                h, c = carry
                row = pl.multiple_of(t * Bp, Bp)
                gates = xp_scr[pl.ds(row, Bp), :] + jnp.dot(
                    h, whh, preferred_element_type=jnp.float32
                )                                         # (Bp, 4H)
                # Full-vreg transcendentals (EUP), then static lane slices.
                sig = jax.nn.sigmoid(gates)
                tnh = jnp.tanh(gates)
                i_g = sig[:, 0 * H:1 * H]
                f_g = sig[:, 1 * H:2 * H]
                g_g = tnh[:, 2 * H:3 * H]
                o_g = sig[:, 3 * H:4 * H]
                c_new = f_g * c + i_g * g_g
                h_new = o_g * jnp.tanh(c_new)
                y_scr[pl.ds(row, Bp), :] = h_new
                return h_new, c_new

            zeros = jnp.zeros((Bp, H), jnp.float32)
            lax.fori_loop(0, T, step, (zeros, zeros), unroll=True)
            src = y_scr[...]                              # input to next layer

        # Linear head on all timesteps at once; lane-dense (Vp % 128 == 0).
        out_ref[...] = (
            jnp.dot(src, wlin_ref[...], preferred_element_type=jnp.float32)
            + blin_ref[...]
        )

    return kernel


# ----------------------------------------------------------------------------
# Wrapper
# ----------------------------------------------------------------------------
def layer_rnn_forward(x, params):
    """Full LayerRNN.forward (non-packed branch).

    x: (T, B, input_size) float32 (one-hot of the integer bytecodes).
    Returns logits: (B, input_size, T)  — i.e. linear(lstm(x)).permute(1, 2, 0).
    """
    T, B, V = x.shape
    layers = params["lstm_layers"]
    num_layers = len(layers)
    H = layers[0]["w_hh"].shape[1]

    Bp = _round_up(B, 8)       # sublane width
    Vp = _round_up(V, 128)     # lane-dense output store

    x_p = x if Bp == B else jnp.pad(x, ((0, 0), (0, Bp - B), (0, 0)))
    x2 = x_p.reshape(T * Bp, V)

    flat_inputs = [x2]
    in_specs = [pl.BlockSpec((T * Bp, V), lambda i: (0, 0))]

    for lp in layers:
        d_in = lp["w_ih"].shape[1]
        wih_t = jnp.transpose(lp["w_ih"])                    # (d_in, 4H)
        whh_t = jnp.transpose(lp["w_hh"])                    # (H, 4H)
        b = (lp["b_ih"] + lp["b_hh"]).reshape(1, 4 * H)      # (1, 4H)
        flat_inputs += [wih_t, whh_t, b]
        in_specs += [
            pl.BlockSpec((d_in, 4 * H), lambda i: (0, 0)),
            pl.BlockSpec((H, 4 * H), lambda i: (0, 0)),
            pl.BlockSpec((1, 4 * H), lambda i: (0, 0)),
        ]

    wlin_t = jnp.transpose(params["lin_w"])                  # (H, V)
    wlin_p = jnp.pad(wlin_t, ((0, 0), (0, Vp - V)))          # (H, Vp)
    blin_p = jnp.pad(params["lin_b"], (0, Vp - V)).reshape(1, Vp)
    flat_inputs += [wlin_p, blin_p]
    in_specs += [
        pl.BlockSpec((H, Vp), lambda i: (0, 0)),
        pl.BlockSpec((1, Vp), lambda i: (0, 0)),
    ]

    out = pl.pallas_call(
        _make_fused_kernel(num_layers, T, Bp, H),
        out_shape=jax.ShapeDtypeStruct((T * Bp, Vp), jnp.float32),
        grid_spec=pltpu.PrefetchScalarGridSpec(
            num_scalar_prefetch=0,
            grid=(1,),
            in_specs=in_specs,
            out_specs=pl.BlockSpec((T * Bp, Vp), lambda i: (0, 0)),
            scratch_shapes=[
                pltpu.VMEM((T * Bp, 4 * H), jnp.float32),   # per-layer x-proj
                pltpu.VMEM((T * Bp, H), jnp.float32),       # per-layer outputs
            ],
        ),
        compiler_params=pltpu.CompilerParams(
            dimension_semantics=("arbitrary",),             # serial recurrence
        ),
    )(*flat_inputs)

    logits = out.reshape(T, Bp, Vp)[:, :B, :V]               # (T, B, V)
    return jnp.transpose(logits, (1, 2, 0))                  # (B, V, T)


# ----------------------------------------------------------------------------
# Pure-JAX reference (for correctness check)
# ----------------------------------------------------------------------------
def _lstm_layer_ref(x, w_ih, w_hh, b_ih, b_hh):
    B = x.shape[1]
    H = w_hh.shape[1]

    def step(carry, x_t):
        h, c = carry
        gates = x_t @ w_ih.T + h @ w_hh.T + b_ih + b_hh
        i_g = jax.nn.sigmoid(gates[:, 0 * H:1 * H])
        f_g = jax.nn.sigmoid(gates[:, 1 * H:2 * H])
        g_g = jnp.tanh(gates[:, 2 * H:3 * H])
        o_g = jax.nn.sigmoid(gates[:, 3 * H:4 * H])
        c_new = f_g * c + i_g * g_g
        h_new = o_g * jnp.tanh(c_new)
        return (h_new, c_new), h_new

    init = (jnp.zeros((B, H), jnp.float32), jnp.zeros((B, H), jnp.float32))
    _, hs = lax.scan(step, init, x)
    return hs


def layer_rnn_ref(x, params):
    y = x
    for lp in params["lstm_layers"]:
        y = _lstm_layer_ref(y, lp["w_ih"], lp["w_hh"], lp["b_ih"], lp["b_hh"])
    logits = y @ params["lin_w"].T + params["lin_b"]
    return jnp.transpose(logits, (1, 2, 0))


# ----------------------------------------------------------------------------
# Deterministic parameter init (PyTorch-style U(-1/sqrt(H), 1/sqrt(H)))
# ----------------------------------------------------------------------------
def init_params(key, input_size, hidden_size, num_layers):
    k = 1.0 / jnp.sqrt(hidden_size)
    layers = []
    for layer in range(num_layers):
        d_in = input_size if layer == 0 else hidden_size
        key, k1, k2, k3, k4 = jax.random.split(key, 5)
        layers.append({
            "w_ih": jax.random.uniform(k1, (4 * hidden_size, d_in),
                                       jnp.float32, -k, k),
            "w_hh": jax.random.uniform(k2, (4 * hidden_size, hidden_size),
                                       jnp.float32, -k, k),
            "b_ih": jax.random.uniform(k3, (4 * hidden_size,),
                                       jnp.float32, -k, k),
            "b_hh": jax.random.uniform(k4, (4 * hidden_size,),
                                       jnp.float32, -k, k),
        })
    key, k1, k2 = jax.random.split(key, 3)
    kl = 1.0 / jnp.sqrt(hidden_size)
    params = {
        "lstm_layers": layers,
        "lin_w": jax.random.uniform(k1, (input_size, hidden_size),
                                    jnp.float32, -kl, kl),
        "lin_b": jax.random.uniform(k2, (input_size,), jnp.float32, -kl, kl),
    }
    return params


# ----------------------------------------------------------------------------
if __name__ == "__main__":
    INPUT_SIZE = 64     # vocab / one-hot width
    HIDDEN = 32
    NUM_LAYERS = 3
    T, B = 8, 2

    key = jax.random.PRNGKey(0)
    key, pkey, tkey = jax.random.split(key, 3)

    params = init_params(pkey, INPUT_SIZE, HIDDEN, NUM_LAYERS)

    # "x : a tensor of integer bytecodes" -> one-hot float input to the LSTM.
    tokens = jax.random.randint(tkey, (T, B), 0, INPUT_SIZE)
    x = jax.nn.one_hot(tokens, INPUT_SIZE, dtype=jnp.float32)   # (T, B, V)

    fwd = jax.jit(functools.partial(layer_rnn_forward, params=params))
    logits = fwd(x)
    jax.block_until_ready(logits)

    assert logits.shape == (B, INPUT_SIZE, T), logits.shape

    # Correctness check against a pure-JAX reference.
    ref = layer_rnn_ref(x, params)
    assert jnp.allclose(logits, ref, atol=1e-3, rtol=1e-3), \
        float(jnp.max(jnp.abs(logits - ref)))

    print("KERNEL_OK")
</pallas_src>

<mosaic_0001>
module attributes {stable_mosaic.version = 11 : i64} {
  func.func @kernel(%arg0: i32, %arg1: memref<64x64xf32, #tpu.memory_space<vmem>>, %arg2: memref<64x128xf32, #tpu.memory_space<vmem>>, %arg3: memref<32x128xf32, #tpu.memory_space<vmem>>, %arg4: memref<1x128xf32, #tpu.memory_space<vmem>>, %arg5: memref<32x128xf32, #tpu.memory_space<vmem>>, %arg6: memref<32x128xf32, #tpu.memory_space<vmem>>, %arg7: memref<1x128xf32, #tpu.memory_space<vmem>>, %arg8: memref<32x128xf32, #tpu.memory_space<vmem>>, %arg9: memref<32x128xf32, #tpu.memory_space<vmem>>, %arg10: memref<1x128xf32, #tpu.memory_space<vmem>>, %arg11: memref<32x128xf32, #tpu.memory_space<vmem>>, %arg12: memref<1x128xf32, #tpu.memory_space<vmem>>, %arg13: memref<64x128xf32, #tpu.memory_space<vmem>>, %arg14: memref<64x128xf32, #tpu.memory_space<vmem>>, %arg15: memref<64x32xf32, #tpu.memory_space<vmem>>) attributes {dimension_semantics = [#tpu.dimension_semantics<arbitrary>], iteration_bounds = array<i64: 1>, scalar_prefetch = 0 : i64, scratch_operands = 2 : i64, tpu.core_type = #tpu.core_type<tc>, window_params = [{pipeline_mode = #tpu.pipeline_mode<synchronous>, transform_indices = @transform_0, window_bounds = array<i64: 64, 64>}, {pipeline_mode = #tpu.pipeline_mode<synchronous>, transform_indices = @transform_1, window_bounds = array<i64: 64, 128>}, {pipeline_mode = #tpu.pipeline_mode<synchronous>, transform_indices = @transform_2, window_bounds = array<i64: 32, 128>}, {pipeline_mode = #tpu.pipeline_mode<synchronous>, transform_indices = @transform_3, window_bounds = array<i64: 1, 128>}, {pipeline_mode = #tpu.pipeline_mode<synchronous>, transform_indices = @transform_4, window_bounds = array<i64: 32, 128>}, {pipeline_mode = #tpu.pipeline_mode<synchronous>, transform_indices = @transform_5, window_bounds = array<i64: 32, 128>}, {pipeline_mode = #tpu.pipeline_mode<synchronous>, transform_indices = @transform_6, window_bounds = array<i64: 1, 128>}, {pipeline_mode = #tpu.pipeline_mode<synchronous>, transform_indices = @transform_7, window_bounds = array<i64: 32, 128>}, {pipeline_mode = #tpu.pipeline_mode<synchronous>, transform_indices = @transform_8, window_bounds = array<i64: 32, 128>}, {pipeline_mode = #tpu.pipeline_mode<synchronous>, transform_indices = @transform_9, window_bounds = array<i64: 1, 128>}, {pipeline_mode = #tpu.pipeline_mode<synchronous>, transform_indices = @transform_10, window_bounds = array<i64: 32, 128>}, {pipeline_mode = #tpu.pipeline_mode<synchronous>, transform_indices = @transform_11, window_bounds = array<i64: 1, 128>}, {pipeline_mode = #tpu.pipeline_mode<synchronous>, transform_indices = @transform_12, window_bounds = array<i64: 64, 128>}]} {
    %c0 = arith.constant 0 : index
    %c0_0 = arith.constant 0 : index
    %0 = vector.load %arg1[%c0, %c0_0] : memref<64x64xf32, #tpu.memory_space<vmem>>, vector<64x64xf32>
    %c0_1 = arith.constant 0 : index
    %c0_2 = arith.constant 0 : index
    %1 = vector.load %arg2[%c0_1, %c0_2] : memref<64x128xf32, #tpu.memory_space<vmem>>, vector<64x128xf32>
    %c0_3 = arith.constant 0 : index
    %c0_4 = arith.constant 0 : index
    %2 = vector.load %arg3[%c0_3, %c0_4] : memref<32x128xf32, #tpu.memory_space<vmem>>, vector<32x128xf32>
    %c0_5 = arith.constant 0 : index
    %c0_6 = arith.constant 0 : index
    %3 = vector.load %arg4[%c0_5, %c0_6] : memref<1x128xf32, #tpu.memory_space<vmem>>, vector<1x128xf32>
    %cst = arith.constant dense<0.000000e+00> : vector<64x128xf32>
    %4 = tpu.matmul %0, %1, %cst {dimension_numbers = #tpu.dot_dimension_numbers<[1], [0], [0], [1], [0, 0, 1, 1], [], []>} : vector<64x64xf32>, vector<64x128xf32>, vector<64x128xf32> -> vector<64x128xf32>
    %5 = vector.broadcast %3 : vector<1x128xf32> to vector<64x128xf32>
    %6 = arith.addf %4, %5 : vector<64x128xf32>
    %c0_7 = arith.constant 0 : index
    %c0_8 = arith.constant 0 : index
    %7 = vector.load %arg14[%c0_7, %c0_8] : memref<64x128xf32, #tpu.memory_space<vmem>>, vector<64x128xf32>
    tpu.vector_store %arg14[%c0_7, %c0_8], %6 {strides = array<i32>} : memref<64x128xf32, #tpu.memory_space<vmem>>, vector<64x128xf32>,
    %cst_9 = arith.constant 0.000000e+00 : f32
    %8 = vector.broadcast %cst_9 : f32 to vector<8x32xf32>
    %c0_i32 = arith.constant 0 : i32
    %c8_i32 = arith.constant 8 : i32
    %9 = arith.muli %c0_i32, %c8_i32 : i32
    %10 = tpu.assume_multiple %9, 8 : i32
    %11 = arith.index_cast %10 : i32 to index
    %c0_10 = arith.constant 0 : index
    %12 = vector.load %arg14[%11, %c0_10] : memref<64x128xf32, #tpu.memory_space<vmem>>, vector<8x128xf32>
    %cst_11 = arith.constant dense<0.000000e+00> : vector<8x128xf32>
    %13 = tpu.matmul %8, %2, %cst_11 {dimension_numbers = #tpu.dot_dimension_numbers<[1], [0], [0], [1], [0, 0, 1, 1], [], []>} : vector<8x32xf32>, vector<32x128xf32>, vector<8x128xf32> -> vector<8x128xf32>
    %14 = arith.addf %12, %13 : vector<8x128xf32>
    %15 = arith.negf %14 : vector<8x128xf32>
    %16 = math.exp %15 : vector<8x128xf32>
    %cst_12 = arith.constant 1.000000e+00 : f32
    %17 = vector.broadcast %cst_12 : f32 to vector<8x128xf32>
    %18 = arith.addf %17, %16 : vector<8x128xf32>
    %19 = arith.divf %17, %18 : vector<8x128xf32>
    %20 = math.tanh %14 : vector<8x128xf32>
    %21 = vector.extract_strided_slice %19 {offsets = [0, 0], sizes = [8, 32], strides = [1, 1]} : vector<8x128xf32> to vector<8x32xf32>
    %22 = vector.extract_strided_slice %19 {offsets = [0, 32], sizes = [8, 32], strides = [1, 1]} : vector<8x128xf32> to vector<8x32xf32>
    %23 = vector.extract_strided_slice %20 {offsets = [0, 64], sizes = [8, 32], strides = [1, 1]} : vector<8x128xf32> to vector<8x32xf32>
    %24 = vector.extract_strided_slice %19 {offsets = [0, 96], sizes = [8, 32], strides = [1, 1]} : vector<8x128xf32> to vector<8x32xf32>
    %25 = arith.mulf %22, %8 : vector<8x32xf32>
    %26 = arith.mulf %21, %23 : vector<8x32xf32>
    %27 = arith.addf %25, %26 : vector<8x32xf32>
    %28 = math.tanh %27 : vector<8x32xf32>
    %29 = arith.mulf %24, %28 : vector<8x32xf32>
    %30 = arith.index_cast %10 : i32 to index
    %c0_13 = arith.constant 0 : index
    %31 = vector.load %arg15[%30, %c0_13] : memref<64x32xf32, #tpu.memory_space<vmem>>, vector<8x32xf32>
    tpu.vector_store %arg15[%30, %c0_13], %29 {strides = array<i32>} : memref<64x32xf32, #tpu.memory_space<vmem>>, vector<8x32xf32>,
    %c1_i32 = arith.constant 1 : i32
    %c8_i32_14 = arith.constant 8 : i32
    %32 = arith.muli %c1_i32, %c8_i32_14 : i32
    %33 = tpu.assume_multiple %32, 8 : i32
    %34 = arith.index_cast %33 : i32 to index
    %c0_15 = arith.constant 0 : index
    %35 = vector.load %arg14[%34, %c0_15] : memref<64x128xf32, #tpu.memory_space<vmem>>, vector<8x128xf32>
    %cst_16 = arith.constant dense<0.000000e+00> : vector<8x128xf32>
    %36 = tpu.matmul %29, %2, %cst_16 {dimension_numbers = #tpu.dot_dimension_numbers<[1], [0], [0], [1], [0, 0, 1, 1], [], []>} : vector<8x32xf32>, vector<32x128xf32>, vector<8x128xf32> -> vector<8x128xf32>
    %37 = arith.addf %35, %36 : vector<8x128xf32>
    %38 = arith.negf %37 : vector<8x128xf32>
    %39 = math.exp %38 : vector<8x128xf32>
    %cst_17 = arith.constant 1.000000e+00 : f32
    %40 = vector.broadcast %cst_17 : f32 to vector<8x128xf32>
    %41 = arith.addf %40, %39 : vector<8x128xf32>
    %42 = arith.divf %40, %41 : vector<8x128xf32>
    %43 = math.tanh %37 : vector<8x128xf32>
    %44 = vector.extract_strided_slice %42 {offsets = [0, 0], sizes = [8, 32], strides = [1, 1]} : vector<8x128xf32> to vector<8x32xf32>
    %45 = vector.extract_strided_slice %42 {offsets = [0, 32], sizes = [8, 32], strides = [1, 1]} : vector<8x128xf32> to vector<8x32xf32>
    %46 = vector.extract_strided_slice %43 {offsets = [0, 64], sizes = [8, 32], strides = [1, 1]} : vector<8x128xf32> to vector<8x32xf32>
    %47 = vector.extract_strided_slice %42 {offsets = [0, 96], sizes = [8, 32], strides = [1, 1]} : vector<8x128xf32> to vector<8x32xf32>
    %48 = arith.mulf %45, %27 : vector<8x32xf32>
    %49 = arith.mulf %44, %46 : vector<8x32xf32>
    %50 = arith.addf %48, %49 : vector<8x32xf32>
    %51 = math.tanh %50 : vector<8x32xf32>
    %52 = arith.mulf %47, %51 : vector<8x32xf32>
    %53 = arith.index_cast %33 : i32 to index
    %c0_18 = arith.constant 0 : index
    %54 = vector.load %arg15[%53, %c0_18] : memref<64x32xf32, #tpu.memory_space<vmem>>, vector<8x32xf32>
    tpu.vector_store %arg15[%53, %c0_18], %52 {strides = array<i32>} : memref<64x32xf32, #tpu.memory_space<vmem>>, vector<8x32xf32>,
    %c2_i32 = arith.constant 2 : i32
    %c8_i32_19 = arith.constant 8 : i32
    %55 = arith.muli %c2_i32, %c8_i32_19 : i32
    %56 = tpu.assume_multiple %55, 8 : i32
    %57 = arith.index_cast %56 : i32 to index
    %c0_20 = arith.constant 0 : index
    %58 = vector.load %arg14[%57, %c0_20] : memref<64x128xf32, #tpu.memory_space<vmem>>, vector<8x128xf32>
    %cst_21 = arith.constant dense<0.000000e+00> : vector<8x128xf32>
    %59 = tpu.matmul %52, %2, %cst_21 {dimension_numbers = #tpu.dot_dimension_numbers<[1], [0], [0], [1], [0, 0, 1, 1], [], []>} : vector<8x32xf32>, vector<32x128xf32>, vector<8x128xf32> -> vector<8x128xf32>
    %60 = arith.addf %58, %59 : vector<8x128xf32>
    %61 = arith.negf %60 : vector<8x128xf32>
    %62 = math.exp %61 : vector<8x128xf32>
    %cst_22 = arith.constant 1.000000e+00 : f32
    %63 = vector.broadcast %cst_22 : f32 to vector<8x128xf32>
    %64 = arith.addf %63, %62 : vector<8x128xf32>
    %65 = arith.divf %63, %64 : vector<8x128xf32>
    %66 = math.tanh %60 : vector<8x128xf32>
    %67 = vector.extract_strided_slice %65 {offsets = [0, 0], sizes = [8, 32], strides = [1, 1]} : vector<8x128xf32> to vector<8x32xf32>
    %68 = vector.extract_strided_slice %65 {offsets = [0, 32], sizes = [8, 32], strides = [1, 1]} : vector<8x128xf32> to vector<8x32xf32>
    %69 = vector.extract_strided_slice %66 {offsets = [0, 64], sizes = [8, 32], strides = [1, 1]} : vector<8x128xf32> to vector<8x32xf32>
    %70 = vector.extract_strided_slice %65 {offsets = [0, 96], sizes = [8, 32], strides = [1, 1]} : vector<8x128xf32> to vector<8x32xf32>
    %71 = arith.mulf %68, %50 : vector<8x32xf32>
    %72 = arith.mulf %67, %69 : vector<8x32xf32>
    %73 = arith.addf %71, %72 : vector<8x32xf32>
    %74 = math.tanh %73 : vector<8x32xf32>
    %75 = arith.mulf %70, %74 : vector<8x32xf32>
    %76 = arith.index_cast %56 : i32 to index
    %c0_23 = arith.constant 0 : index
    %77 = vector.load %arg15[%76, %c0_23] : memref<64x32xf32, #tpu.memory_space<vmem>>, vector<8x32xf32>
    tpu.vector_store %arg15[%76, %c0_23], %75 {strides = array<i32>} : memref<64x32xf32, #tpu.memory_space<vmem>>, vector<8x32xf32>,
    %c3_i32 = arith.constant 3 : i32
    %c8_i32_24 = arith.constant 8 : i32
    %78 = arith.muli %c3_i32, %c8_i32_24 : i32
    %79 = tpu.assume_multiple %78, 8 : i32
    %80 = arith.index_cast %79 : i32 to index
    %c0_25 = arith.constant 0 : index
    %81 = vector.load %arg14[%80, %c0_25] : memref<64x128xf32, #tpu.memory_space<vmem>>, vector<8x128xf32>
    %cst_26 = arith.constant dense<0.000000e+00> : vector<8x128xf32>
    %82 = tpu.matmul %75, %2, %cst_26 {dimension_numbers = #tpu.dot_dimension_numbers<[1], [0], [0], [1], [0, 0, 1, 1], [], []>} : vector<8x32xf32>, vector<32x128xf32>, vector<8x128xf32> -> vector<8x128xf32>
    %83 = arith.addf %81, %82 : vector<8x128xf32>
    %84 = arith.negf %83 : vector<8x128xf32>
    %85 = math.exp %84 : vector<8x128xf32>
    %cst_27 = arith.constant 1.000000e+00 : f32
    %86 = vector.broadcast %cst_27 : f32 to vector<8x128xf32>
    %87 = arith.addf %86, %85 : vector<8x128xf32>
    %88 = arith.divf %86, %87 : vector<8x128xf32>
    %89 = math.tanh %83 : vector<8x128xf32>
    %90 = vector.extract_strided_slice %88 {offsets = [0, 0], sizes = [8, 32], strides = [1, 1]} : vector<8x128xf32> to vector<8x32xf32>
    %91 = vector.extract_strided_slice %88 {offsets = [0, 32], sizes = [8, 32], strides = [1, 1]} : vector<8x128xf32> to vector<8x32xf32>
    %92 = vector.extract_strided_slice %89 {offsets = [0, 64], sizes = [8, 32], strides = [1, 1]} : vector<8x128xf32> to vector<8x32xf32>
    %93 = vector.extract_strided_slice %88 {offsets = [0, 96], sizes = [8, 32], strides = [1, 1]} : vector<8x128xf32> to vector<8x32xf32>
    %94 = arith.mulf %91, %73 : vector<8x32xf32>
    %95 = arith.mulf %90, %92 : vector<8x32xf32>
    %96 = arith.addf %94, %95 : vector<8x32xf32>
    %97 = math.tanh %96 : vector<8x32xf32>
    %98 = arith.mulf %93, %97 : vector<8x32xf32>
    %99 = arith.index_cast %79 : i32 to index
    %c0_28 = arith.constant 0 : index
    %100 = vector.load %arg15[%99, %c0_28] : memref<64x32xf32, #tpu.memory_space<vmem>>, vector<8x32xf32>
    tpu.vector_store %arg15[%99, %c0_28], %98 {strides = array<i32>} : memref<64x32xf32, #tpu.memory_space<vmem>>, vector<8x32xf32>,
    %c4_i32 = arith.constant 4 : i32
    %c8_i32_29 = arith.constant 8 : i32
    %101 = arith.muli %c4_i32, %c8_i32_29 : i32
    %102 = tpu.assume_multiple %101, 8 : i32
    %103 = arith.index_cast %102 : i32 to index
    %c0_30 = arith.constant 0 : index
    %104 = vector.load %arg14[%103, %c0_30] : memref<64x128xf32, #tpu.memory_space<vmem>>, vector<8x128xf32>
    %cst_31 = arith.constant dense<0.000000e+00> : vector<8x128xf32>
    %105 = tpu.matmul %98, %2, %cst_31 {dimension_numbers = #tpu.dot_dimension_numbers<[1], [0], [0], [1], [0, 0, 1, 1], [], []>} : vector<8x32xf32>, vector<32x128xf32>, vector<8x128xf32> -> vector<8x128xf32>
    %106 = arith.addf %104, %105 : vector<8x128xf32>
    %107 = arith.negf %106 : vector<8x128xf32>
    %108 = math.exp %107 : vector<8x128xf32>
    %cst_32 = arith.constant 1.000000e+00 : f32
    %109 = vector.broadcast %cst_32 : f32 to vector<8x128xf32>
    %110 = arith.addf %109, %108 : vector<8x128xf32>
    %111 = arith.divf %109, %110 : vector<8x128xf32>
    %112 = math.tanh %106 : vector<8x128xf32>
    %113 = vector.extract_strided_slice %111 {offsets = [0, 0], sizes = [8, 32], strides = [1, 1]} : vector<8x128xf32> to vector<8x32xf32>
    %114 = vector.extract_strided_slice %111 {offsets = [0, 32], sizes = [8, 32], strides = [1, 1]} : vector<8x128xf32> to vector<8x32xf32>
    %115 = vector.extract_strided_slice %112 {offsets = [0, 64], sizes = [8, 32], strides = [1, 1]} : vector<8x128xf32> to vector<8x32xf32>
    %116 = vector.extract_strided_slice %111 {offsets = [0, 96], sizes = [8, 32], strides = [1, 1]} : vector<8x128xf32> to vector<8x32xf32>
    %117 = arith.mulf %114, %96 : vector<8x32xf32>
    %118 = arith.mulf %113, %115 : vector<8x32xf32>
    %119 = arith.addf %117, %118 : vector<8x32xf32>
    %120 = math.tanh %119 : vector<8x32xf32>
    %121 = arith.mulf %116, %120 : vector<8x32xf32>
    %122 = arith.index_cast %102 : i32 to index
    %c0_33 = arith.constant 0 : index
    %123 = vector.load %arg15[%122, %c0_33] : memref<64x32xf32, #tpu.memory_space<vmem>>, vector<8x32xf32>
    tpu.vector_store %arg15[%122, %c0_33], %121 {strides = array<i32>} : memref<64x32xf32, #tpu.memory_space<vmem>>, vector<8x32xf32>,
    %c5_i32 = arith.constant 5 : i32
    %c8_i32_34 = arith.constant 8 : i32
    %124 = arith.muli %c5_i32, %c8_i32_34 : i32
    %125 = tpu.assume_multiple %124, 8 : i32
    %126 = arith.index_cast %125 : i32 to index
    %c0_35 = arith.constant 0 : index
    %127 = vector.load %arg14[%126, %c0_35] : memref<64x128xf32, #tpu.memory_space<vmem>>, vector<8x128xf32>
    %cst_36 = arith.constant dense<0.000000e+00> : vector<8x128xf32>
    %128 = tpu.matmul %121, %2, %cst_36 {dimension_numbers = #tpu.dot_dimension_numbers<[1], [0], [0], [1], [0, 0, 1, 1], [], []>} : vector<8x32xf32>, vector<32x128xf32>, vector<8x128xf32> -> vector<8x128xf32>
    %129 = arith.addf %127, %128 : vector<8x128xf32>
    %130 = arith.negf %129 : vector<8x128xf32>
    %131 = math.exp %130 : vector<8x128xf32>
    %cst_37 = arith.constant 1.000000e+00 : f32
    %132 = vector.broadcast %cst_37 : f32 to vector<8x128xf32>
    %133 = arith.addf %132, %131 : vector<8x128xf32>
    %134 = arith.divf %132, %133 : vector<8x128xf32>
    %135 = math.tanh %129 : vector<8x128xf32>
    %136 = vector.extract_strided_slice %134 {offsets = [0, 0], sizes = [8, 32], strides = [1, 1]} : vector<8x128xf32> to vector<8x32xf32>
    %137 = vector.extract_strided_slice %134 {offsets = [0, 32], sizes = [8, 32], strides = [1, 1]} : vector<8x128xf32> to vector<8x32xf32>
    %138 = vector.extract_strided_slice %135 {offsets = [0, 64], sizes = [8, 32], strides = [1, 1]} : vector<8x128xf32> to vector<8x32xf32>
    %139 = vector.extract_strided_slice %134 {offsets = [0, 96], sizes = [8, 32], strides = [1, 1]} : vector<8x128xf32> to vector<8x32xf32>
    %140 = arith.mulf %137, %119 : vector<8x32xf32>
    %141 = arith.mulf %136, %138 : vector<8x32xf32>
    %142 = arith.addf %140, %141 : vector<8x32xf32>
    %143 = math.tanh %142 : vector<8x32xf32>
    %144 = arith.mulf %139, %143 : vector<8x32xf32>
    %145 = arith.index_cast %125 : i32 to index
    %c0_38 = arith.constant 0 : index
    %146 = vector.load %arg15[%145, %c0_38] : memref<64x32xf32, #tpu.memory_space<vmem>>, vector<8x32xf32>
    tpu.vector_store %arg15[%145, %c0_38], %144 {strides = array<i32>} : memref<64x32xf32, #tpu.memory_space<vmem>>, vector<8x32xf32>,
    %c6_i32 = arith.constant 6 : i32
    %c8_i32_39 = arith.constant 8 : i32
    %147 = arith.muli %c6_i32, %c8_i32_39 : i32
    %148 = tpu.assume_multiple %147, 8 : i32
    %149 = arith.index_cast %148 : i32 to index
    %c0_40 = arith.constant 0 : index
    %150 = vector.load %arg14[%149, %c0_40] : memref<64x128xf32, #tpu.memory_space<vmem>>, vector<8x128xf32>
    %cst_41 = arith.constant dense<0.000000e+00> : vector<8x128xf32>
    %151 = tpu.matmul %144, %2, %cst_41 {dimension_numbers = #tpu.dot_dimension_numbers<[1], [0], [0], [1], [0, 0, 1, 1], [], []>} : vector<8x32xf32>, vector<32x128xf32>, vector<8x128xf32> -> vector<8x128xf32>
    %152 = arith.addf %150, %151 : vector<8x128xf32>
    %153 = arith.negf %152 : vector<8x128xf32>
    %154 = math.exp %153 : vector<8x128xf32>
    %cst_42 = arith.constant 1.000000e+00 : f32
    %155 = vector.broadcast %cst_42 : f32 to vector<8x128xf32>
    %156 = arith.addf %155, %154 : vector<8x128xf32>
    %157 = arith.divf %155, %156 : vector<8x128xf32>
    %158 = math.tanh %152 : vector<8x128xf32>
    %159 = vector.extract_strided_slice %157 {offsets = [0, 0], sizes = [8, 32], strides = [1, 1]} : vector<8x128xf32> to vector<8x32xf32>
    %160 = vector.extract_strided_slice %157 {offsets = [0, 32], sizes = [8, 32], strides = [1, 1]} : vector<8x128xf32> to vector<8x32xf32>
    %161 = vector.extract_strided_slice %158 {offsets = [0, 64], sizes = [8, 32], strides = [1, 1]} : vector<8x128xf32> to vector<8x32xf32>
    %162 = vector.extract_strided_slice %157 {offsets = [0, 96], sizes = [8, 32], strides = [1, 1]} : vector<8x128xf32> to vector<8x32xf32>
    %163 = arith.mulf %160, %142 : vector<8x32xf32>
    %164 = arith.mulf %159, %161 : vector<8x32xf32>
    %165 = arith.addf %163, %164 : vector<8x32xf32>
    %166 = math.tanh %165 : vector<8x32xf32>
    %167 = arith.mulf %162, %166 : vector<8x32xf32>
    %168 = arith.index_cast %148 : i32 to index
    %c0_43 = arith.constant 0 : index
    %169 = vector.load %arg15[%168, %c0_43] : memref<64x32xf32, #tpu.memory_space<vmem>>, vector<8x32xf32>
    tpu.vector_store %arg15[%168, %c0_43], %167 {strides = array<i32>} : memref<64x32xf32, #tpu.memory_space<vmem>>, vector<8x32xf32>,
    %c7_i32 = arith.constant 7 : i32
    %c8_i32_44 = arith.constant 8 : i32
    %170 = arith.muli %c7_i32, %c8_i32_44 : i32
    %171 = tpu.assume_multiple %170, 8 : i32
    %172 = arith.index_cast %171 : i32 to index
    %c0_45 = arith.constant 0 : index
    %173 = vector.load %arg14[%172, %c0_45] : memref<64x128xf32, #tpu.memory_space<vmem>>, vector<8x128xf32>
    %cst_46 = arith.constant dense<0.000000e+00> : vector<8x128xf32>
    %174 = tpu.matmul %167, %2, %cst_46 {dimension_numbers = #tpu.dot_dimension_numbers<[1], [0], [0], [1], [0, 0, 1, 1], [], []>} : vector<8x32xf32>, vector<32x128xf32>, vector<8x128xf32> -> vector<8x128xf32>
    %175 = arith.addf %173, %174 : vector<8x128xf32>
    %176 = arith.negf %175 : vector<8x128xf32>
    %177 = math.exp %176 : vector<8x128xf32>
    %cst_47 = arith.constant 1.000000e+00 : f32
    %178 = vector.broadcast %cst_47 : f32 to vector<8x128xf32>
    %179 = arith.addf %178, %177 : vector<8x128xf32>
    %180 = arith.divf %178, %179 : vector<8x128xf32>
    %181 = math.tanh %175 : vector<8x128xf32>
    %182 = vector.extract_strided_slice %180 {offsets = [0, 0], sizes = [8, 32], strides = [1, 1]} : vector<8x128xf32> to vector<8x32xf32>
    %183 = vector.extract_strided_slice %180 {offsets = [0, 32], sizes = [8, 32], strides = [1, 1]} : vector<8x128xf32> to vector<8x32xf32>
    %184 = vector.extract_strided_slice %181 {offsets = [0, 64], sizes = [8, 32], strides = [1, 1]} : vector<8x128xf32> to vector<8x32xf32>
    %185 = vector.extract_strided_slice %180 {offsets = [0, 96], sizes = [8, 32], strides = [1, 1]} : vector<8x128xf32> to vector<8x32xf32>
    %186 = arith.mulf %183, %165 : vector<8x32xf32>
    %187 = arith.mulf %182, %184 : vector<8x32xf32>
    %188 = arith.addf %186, %187 : vector<8x32xf32>
    %189 = math.tanh %188 : vector<8x32xf32>
    %190 = arith.mulf %185, %189 : vector<8x32xf32>
    %191 = arith.index_cast %171 : i32 to index
    %c0_48 = arith.constant 0 : index
    %192 = vector.load %arg15[%191, %c0_48] : memref<64x32xf32, #tpu.memory_space<vmem>>, vector<8x32xf32>
    tpu.vector_store %arg15[%191, %c0_48], %190 {strides = array<i32>} : memref<64x32xf32, #tpu.memory_space<vmem>>, vector<8x32xf32>,
    %c8_i32_49 = arith.constant 8 : i32
    %c0_50 = arith.constant 0 : index
    %c0_51 = arith.constant 0 : index
    %193 = vector.load %arg15[%c0_50, %c0_51] : memref<64x32xf32, #tpu.memory_space<vmem>>, vector<64x32xf32>
    %c0_52 = arith.constant 0 : index
    %c0_53 = arith.constant 0 : index
    %194 = vector.load %arg5[%c0_52, %c0_53] : memref<32x128xf32, #tpu.memory_space<vmem>>, vector<32x128xf32>
    %c0_54 = arith.constant 0 : index
    %c0_55 = arith.constant 0 : index
    %195 = vector.load %arg6[%c0_54, %c0_55] : memref<32x128xf32, #tpu.memory_space<vmem>>, vector<32x128xf32>
    %c0_56 = arith.constant 0 : index
    %c0_57 = arith.constant 0 : index
    %196 = vector.load %arg7[%c0_56, %c0_57] : memref<1x128xf32, #tpu.memory_space<vmem>>, vector<1x128xf32>
    %cst_58 = arith.constant dense<0.000000e+00> : vector<64x128xf32>
    %197 = tpu.matmul %193, %194, %cst_58 {dimension_numbers = #tpu.dot_dimension_numbers<[1], [0], [0], [1], [0, 0, 1, 1], [], []>} : vector<64x32xf32>, vector<32x128xf32>, vector<64x128xf32> -> vector<64x128xf32>
    %198 = vector.broadcast %196 : vector<1x128xf32> to vector<64x128xf32>
    %199 = arith.addf %197, %198 : vector<64x128xf32>
    %c0_59 = arith.constant 0 : index
    %c0_60 = arith.constant 0 : index
    %200 = vector.load %arg14[%c0_59, %c0_60] : memref<64x128xf32, #tpu.memory_space<vmem>>, vector<64x128xf32>
    tpu.vector_store %arg14[%c0_59, %c0_60], %199 {strides = array<i32>} : memref<64x128xf32, #tpu.memory_space<vmem>>, vector<64x128xf32>,
    %cst_61 = arith.constant 0.000000e+00 : f32
    %201 = vector.broadcast %cst_61 : f32 to vector<8x32xf32>
    %c0_i32_62 = arith.constant 0 : i32
    %c8_i32_63 = arith.constant 8 : i32
    %202 = arith.muli %c0_i32_62, %c8_i32_63 : i32
    %203 = tpu.assume_multiple %202, 8 : i32
    %204 = arith.index_cast %203 : i32 to index
    %c0_64 = arith.constant 0 : index
    %205 = vector.load %arg14[%204, %c0_64] : memref<64x128xf32, #tpu.memory_space<vmem>>, vector<8x128xf32>
    %cst_65 = arith.constant dense<0.000000e+00> : vector<8x128xf32>
    %206 = tpu.matmul %201, %195, %cst_65 {dimension_numbers = #tpu.dot_dimension_numbers<[1], [0], [0], [1], [0, 0, 1, 1], [], []>} : vector<8x32xf32>, vector<32x128xf32>, vector<8x128xf32> -> vector<8x128xf32>
    %207 = arith.addf %205, %206 : vector<8x128xf32>
    %208 = arith.negf %207 : vector<8x128xf32>
    %209 = math.exp %208 : vector<8x128xf32>
    %cst_66 = arith.constant 1.000000e+00 : f32
    %210 = vector.broadcast %cst_66 : f32 to vector<8x128xf32>
    %211 = arith.addf %210, %209 : vector<8x128xf32>
    %212 = arith.divf %210, %211 : vector<8x128xf32>
    %213 = math.tanh %207 : vector<8x128xf32>
    %214 = vector.extract_strided_slice %212 {offsets = [0, 0], sizes = [8, 32], strides = [1, 1]} : vector<8x128xf32> to vector<8x32xf32>
    %215 = vector.extract_strided_slice %212 {offsets = [0, 32], sizes = [8, 32], strides = [1, 1]} : vector<8x128xf32> to vector<8x32xf32>
    %216 = vector.extract_strided_slice %213 {offsets = [0, 64], sizes = [8, 32], strides = [1, 1]} : vector<8x128xf32> to vector<8x32xf32>
    %217 = vector.extract_strided_slice %212 {offsets = [0, 96], sizes = [8, 32], strides = [1, 1]} : vector<8x128xf32> to vector<8x32xf32>
    %218 = arith.mulf %215, %201 : vector<8x32xf32>
    %219 = arith.mulf %214, %216 : vector<8x32xf32>
    %220 = arith.addf %218, %219 : vector<8x32xf32>
    %221 = math.tanh %220 : vector<8x32xf32>
    %222 = arith.mulf %217, %221 : vector<8x32xf32>
    %223 = arith.index_cast %203 : i32 to index
    %c0_67 = arith.constant 0 : index
    %224 = vector.load %arg15[%223, %c0_67] : memref<64x32xf32, #tpu.memory_space<vmem>>, vector<8x32xf32>
    tpu.vector_store %arg15[%223, %c0_67], %222 {strides = array<i32>} : memref<64x32xf32, #tpu.memory_space<vmem>>, vector<8x32xf32>,
    %c1_i32_68 = arith.constant 1 : i32
    %c8_i32_69 = arith.constant 8 : i32
    %225 = arith.muli %c1_i32_68, %c8_i32_69 : i32
    %226 = tpu.assume_multiple %225, 8 : i32
    %227 = arith.index_cast %226 : i32 to index
    %c0_70 = arith.constant 0 : index
    %228 = vector.load %arg14[%227, %c0_70] : memref<64x128xf32, #tpu.memory_space<vmem>>, vector<8x128xf32>
    %cst_71 = arith.constant dense<0.000000e+00> : vector<8x128xf32>
    %229 = tpu.matmul %222, %195, %cst_71 {dimension_numbers = #tpu.dot_dimension_numbers<[1], [0], [0], [1], [0, 0, 1, 1], [], []>} : vector<8x32xf32>, vector<32x128xf32>, vector<8x128xf32> -> vector<8x128xf32>
    %230 = arith.addf %228, %229 : vector<8x128xf32>
    %231 = arith.negf %230 : vector<8x128xf32>
    %232 = math.exp %231 : vector<8x128xf32>
    %cst_72 = arith.constant 1.000000e+00 : f32
    %233 = vector.broadcast %cst_72 : f32 to vector<8x128xf32>
    %234 = arith.addf %233, %232 : vector<8x128xf32>
    %235 = arith.divf %233, %234 : vector<8x128xf32>
    %236 = math.tanh %230 : vector<8x128xf32>
    %237 = vector.extract_strided_slice %235 {offsets = [0, 0], sizes = [8, 32], strides = [1, 1]} : vector<8x128xf32> to vector<8x32xf32>
    %238 = vector.extract_strided_slice %235 {offsets = [0, 32], sizes = [8, 32], strides = [1, 1]} : vector<8x128xf32> to vector<8x32xf32>
    %239 = vector.extract_strided_slice %236 {offsets = [0, 64], sizes = [8, 32], strides = [1, 1]} : vector<8x128xf32> to vector<8x32xf32>
    %240 = vector.extract_strided_slice %235 {offsets = [0, 96], sizes = [8, 32], strides = [1, 1]} : vector<8x128xf32> to vector<8x32xf32>
    %241 = arith.mulf %238, %220 : vector<8x32xf32>
    %242 = arith.mulf %237, %239 : vector<8x32xf32>
    %243 = arith.addf %241, %242 : vector<8x32xf32>
    %244 = math.tanh %243 : vector<8x32xf32>
    %245 = arith.mulf %240, %244 : vector<8x32xf32>
    %246 = arith.index_cast %226 : i32 to index
    %c0_73 = arith.constant 0 : index
    %247 = vector.load %arg15[%246, %c0_73] : memref<64x32xf32, #tpu.memory_space<vmem>>, vector<8x32xf32>
    tpu.vector_store %arg15[%246, %c0_73], %245 {strides = array<i32>} : memref<64x32xf32, #tpu.memory_space<vmem>>, vector<8x32xf32>,
    %c2_i32_74 = arith.constant 2 : i32
    %c8_i32_75 = arith.constant 8 : i32
    %248 = arith.muli %c2_i32_74, %c8_i32_75 : i32
    %249 = tpu.assume_multiple %248, 8 : i32
    %250 = arith.index_cast %249 : i32 to index
    %c0_76 = arith.constant 0 : index
    %251 = vector.load %arg14[%250, %c0_76] : memref<64x128xf32, #tpu.memory_space<vmem>>, vector<8x128xf32>
    %cst_77 = arith.constant dense<0.000000e+00> : vector<8x128xf32>
    %252 = tpu.matmul %245, %195, %cst_77 {dimension_numbers = #tpu.dot_dimension_numbers<[1], [0], [0], [1], [0, 0, 1, 1], [], []>} : vector<8x32xf32>, vector<32x128xf32>, vector<8x128xf32> -> vector<8x128xf32>
    %253 = arith.addf %251, %252 : vector<8x128xf32>
    %254 = arith.negf %253 : vector<8x128xf32>
    %255 = math.exp %254 : vector<8x128xf32>
    %cst_78 = arith.constant 1.000000e+00 : f32
    %256 = vector.broadcast %cst_78 : f32 to vector<8x128xf32>
    %257 = arith.addf %256, %255 : vector<8x128xf32>
    %258 = arith.divf %256, %257 : vector<8x128xf32>
    %259 = math.tanh %253 : vector<8x128xf32>
    %260 = vector.extract_strided_slice %258 {offsets = [0, 0], sizes = [8, 32], strides = [1, 1]} : vector<8x128xf32> to vector<8x32xf32>
    %261 = vector.extract_strided_slice %258 {offsets = [0, 32], sizes = [8, 32], strides = [1, 1]} : vector<8x128xf32> to vector<8x32xf32>
    %262 = vector.extract_strided_slice %259 {offsets = [0, 64], sizes = [8, 32], strides = [1, 1]} : vector<8x128xf32> to vector<8x32xf32>
    %263 = vector.extract_strided_slice %258 {offsets = [0, 96], sizes = [8, 32], strides = [1, 1]} : vector<8x128xf32> to vector<8x32xf32>
    %264 = arith.mulf %261, %243 : vector<8x32xf32>
    %265 = arith.mulf %260, %262 : vector<8x32xf32>
    %266 = arith.addf %264, %265 : vector<8x32xf32>
    %267 = math.tanh %266 : vector<8x32xf32>
    %268 = arith.mulf %263, %267 : vector<8x32xf32>
    %269 = arith.index_cast %249 : i32 to index
    %c0_79 = arith.constant 0 : index
    %270 = vector.load %arg15[%269, %c0_79] : memref<64x32xf32, #tpu.memory_space<vmem>>, vector<8x32xf32>
    tpu.vector_store %arg15[%269, %c0_79], %268 {strides = array<i32>} : memref<64x32xf32, #tpu.memory_space<vmem>>, vector<8x32xf32>,
    %c3_i32_80 = arith.constant 3 : i32
    %c8_i32_81 = arith.constant 8 : i32
    %271 = arith.muli %c3_i32_80, %c8_i32_81 : i32
    %272 = tpu.assume_multiple %271, 8 : i32
    %273 = arith.index_cast %272 : i32 to index
    %c0_82 = arith.constant 0 : index
    %274 = vector.load %arg14[%273, %c0_82] : memref<64x128xf32, #tpu.memory_space<vmem>>, vector<8x128xf32>
    %cst_83 = arith.constant dense<0.000000e+00> : vector<8x128xf32>
    %275 = tpu.matmul %268, %195, %cst_83 {dimension_numbers = #tpu.dot_dimension_numbers<[1], [0], [0], [1], [0, 0, 1, 1], [], []>} : vector<8x32xf32>, vector<32x128xf32>, vector<8x128xf32> -> vector<8x128xf32>
    %276 = arith.addf %274, %275 : vector<8x128xf32>
    %277 = arith.negf %276 : vector<8x128xf32>
    %278 = math.exp %277 : vector<8x128xf32>
    %cst_84 = arith.constant 1.000000e+00 : f32
    %279 = vector.broadcast %cst_84 : f32 to vector<8x128xf32>
    %280 = arith.addf %279, %278 : vector<8x128xf32>
    %281 = arith.divf %279, %280 : vector<8x128xf32>
    %282 = math.tanh %276 : vector<8x128xf32>
    %283 = vector.extract_strided_slice %281 {offsets = [0, 0], sizes = [8, 32], strides = [1, 1]} : vector<8x128xf32> to vector<8x32xf32>
    %284 = vector.extract_strided_slice %281 {offsets = [0, 32], sizes = [8, 32], strides = [1, 1]} : vector<8x128xf32> to vector<8x32xf32>
    %285 = vector.extract_strided_slice %282 {offsets = [0, 64], sizes = [8, 32], strides = [1, 1]} : vector<8x128xf32> to vector<8x32xf32>
    %286 = vector.extract_strided_slice %281 {offsets = [0, 96], sizes = [8, 32], strides = [1, 1]} : vector<8x128xf32> to vector<8x32xf32>
    %287 = arith.mulf %284, %266 : vector<8x32xf32>
    %288 = arith.mulf %283, %285 : vector<8x32xf32>
    %289 = arith.addf %287, %288 : vector<8x32xf32>
    %290 = math.tanh %289 : vector<8x32xf32>
    %291 = arith.mulf %286, %290 : vector<8x32xf32>
    %292 = arith.index_cast %272 : i32 to index
    %c0_85 = arith.constant 0 : index
    %293 = vector.load %arg15[%292, %c0_85] : memref<64x32xf32, #tpu.memory_space<vmem>>, vector<8x32xf32>
    tpu.vector_store %arg15[%292, %c0_85], %291 {strides = array<i32>} : memref<64x32xf32, #tpu.memory_space<vmem>>, vector<8x32xf32>,
    %c4_i32_86 = arith.constant 4 : i32
    %c8_i32_87 = arith.constant 8 : i32
    %294 = arith.muli %c4_i32_86, %c8_i32_87 : i32
    %295 = tpu.assume_multiple %294, 8 : i32
    %296 = arith.index_cast %295 : i32 to index
    %c0_88 = arith.constant 0 : index
    %297 = vector.load %arg14[%296, %c0_88] : memref<64x128xf32, #tpu.memory_space<vmem>>, vector<8x128xf32>
    %cst_89 = arith.constant dense<0.000000e+00> : vector<8x128xf32>
    %298 = tpu.matmul %291, %195, %cst_89 {dimension_numbers = #tpu.dot_dimension_numbers<[1], [0], [0], [1], [0, 0, 1, 1], [], []>} : vector<8x32xf32>, vector<32x128xf32>, vector<8x128xf32> -> vector<8x128xf32>
    %299 = arith.addf %297, %298 : vector<8x128xf32>
    %300 = arith.negf %299 : vector<8x128xf32>
    %301 = math.exp %300 : vector<8x128xf32>
    %cst_90 = arith.constant 1.000000e+00 : f32
    %302 = vector.broadcast %cst_90 : f32 to vector<8x128xf32>
    %303 = arith.addf %302, %301 : vector<8x128xf32>
    %304 = arith.divf %302, %303 : vector<8x128xf32>
    %305 = math.tanh %299 : vector<8x128xf32>
    %306 = vector.extract_strided_slice %304 {offsets = [0, 0], sizes = [8, 32], strides = [1, 1]} : vector<8x128xf32> to vector<8x32xf32>
    %307 = vector.extract_strided_slice %304 {offsets = [0, 32], sizes = [8, 32], strides = [1, 1]} : vector<8x128xf32> to vector<8x32xf32>
    %308 = vector.extract_strided_slice %305 {offsets = [0, 64], sizes = [8, 32], strides = [1, 1]} : vector<8x128xf32> to vector<8x32xf32>
    %309 = vector.extract_strided_slice %304 {offsets = [0, 96], sizes = [8, 32], strides = [1, 1]} : vector<8x128xf32> to vector<8x32xf32>
    %310 = arith.mulf %307, %289 : vector<8x32xf32>
    %311 = arith.mulf %306, %308 : vector<8x32xf32>
    %312 = arith.addf %310, %311 : vector<8x32xf32>
    %313 = math.tanh %312 : vector<8x32xf32>
    %314 = arith.mulf %309, %313 : vector<8x32xf32>
    %315 = arith.index_cast %295 : i32 to index
    %c0_91 = arith.constant 0 : index
    %316 = vector.load %arg15[%315, %c0_91] : memref<64x32xf32, #tpu.memory_space<vmem>>, vector<8x32xf32>
    tpu.vector_store %arg15[%315, %c0_91], %314 {strides = array<i32>} : memref<64x32xf32, #tpu.memory_space<vmem>>, vector<8x32xf32>,
    %c5_i32_92 = arith.constant 5 : i32
    %c8_i32_93 = arith.constant 8 : i32
    %317 = arith.muli %c5_i32_92, %c8_i32_93 : i32
    %318 = tpu.assume_multiple %317, 8 : i32
    %319 = arith.index_cast %318 : i32 to index
    %c0_94 = arith.constant 0 : index
    %320 = vector.load %arg14[%319, %c0_94] : memref<64x128xf32, #tpu.memory_space<vmem>>, vector<8x128xf32>
    %cst_95 = arith.constant dense<0.000000e+00> : vector<8x128xf32>
    %321 = tpu.matmul %314, %195, %cst_95 {dimension_numbers = #tpu.dot_dimension_numbers<[1], [0], [0], [1], [0, 0, 1, 1], [], []>} : vector<8x32xf32>, vector<32x128xf32>, vector<8x128xf32> -> vector<8x128xf32>
    %322 = arith.addf %320, %321 : vector<8x128xf32>
    %323 = arith.negf %322 : vector<8x128xf32>
    %324 = math.exp %323 : vector<8x128xf32>
    %cst_96 = arith.constant 1.000000e+00 : f32
    %325 = vector.broadcast %cst_96 : f32 to vector<8x128xf32>
    %326 = arith.addf %325, %324 : vector<8x128xf32>
    %327 = arith.divf %325, %326 : vector<8x128xf32>
    %328 = math.tanh %322 : vector<8x128xf32>
    %329 = vector.extract_strided_slice %327 {offsets = [0, 0], sizes = [8, 32], strides = [1, 1]} : vector<8x128xf32> to vector<8x32xf32>
    %330 = vector.extract_strided_slice %327 {offsets = [0, 32], sizes = [8, 32], strides = [1, 1]} : vector<8x128xf32> to vector<8x32xf32>
    %331 = vector.extract_strided_slice %328 {offsets = [0, 64], sizes = [8, 32], strides = [1, 1]} : vector<8x128xf32> to vector<8x32xf32>
    %332 = vector.extract_strided_slice %327 {offsets = [0, 96], sizes = [8, 32], strides = [1, 1]} : vector<8x128xf32> to vector<8x32xf32>
    %333 = arith.mulf %330, %312 : vector<8x32xf32>
    %334 = arith.mulf %329, %331 : vector<8x32xf32>
    %335 = arith.addf %333, %334 : vector<8x32xf32>
    %336 = math.tanh %335 : vector<8x32xf32>
    %337 = arith.mulf %332, %336 : vector<8x32xf32>
    %338 = arith.index_cast %318 : i32 to index
    %c0_97 = arith.constant 0 : index
    %339 = vector.load %arg15[%338, %c0_97] : memref<64x32xf32, #tpu.memory_space<vmem>>, vector<8x32xf32>
    tpu.vector_store %arg15[%338, %c0_97], %337 {strides = array<i32>} : memref<64x32xf32, #tpu.memory_space<vmem>>, vector<8x32xf32>,
    %c6_i32_98 = arith.constant 6 : i32
    %c8_i32_99 = arith.constant 8 : i32
    %340 = arith.muli %c6_i32_98, %c8_i32_99 : i32
    %341 = tpu.assume_multiple %340, 8 : i32
    %342 = arith.index_cast %341 : i32 to index
    %c0_100 = arith.constant 0 : index
    %343 = vector.load %arg14[%342, %c0_100] : memref<64x128xf32, #tpu.memory_space<vmem>>, vector<8x128xf32>
    %cst_101 = arith.constant dense<0.000000e+00> : vector<8x128xf32>
    %344 = tpu.matmul %337, %195, %cst_101 {dimension_numbers = #tpu.dot_dimension_numbers<[1], [0], [0], [1], [0, 0, 1, 1], [], []>} : vector<8x32xf32>, vector<32x128xf32>, vector<8x128xf32> -> vector<8x128xf32>
    %345 = arith.addf %343, %344 : vector<8x128xf32>
    %346 = arith.negf %345 : vector<8x128xf32>
    %347 = math.exp %346 : vector<8x128xf32>
    %cst_102 = arith.constant 1.000000e+00 : f32
    %348 = vector.broadcast %cst_102 : f32 to vector<8x128xf32>
    %349 = arith.addf %348, %347 : vector<8x128xf32>
    %350 = arith.divf %348, %349 : vector<8x128xf32>
    %351 = math.tanh %345 : vector<8x128xf32>
    %352 = vector.extract_strided_slice %350 {offsets = [0, 0], sizes = [8, 32], strides = [1, 1]} : vector<8x128xf32> to vector<8x32xf32>
    %353 = vector.extract_strided_slice %350 {offsets = [0, 32], sizes = [8, 32], strides = [1, 1]} : vector<8x128xf32> to vector<8x32xf32>
    %354 = vector.extract_strided_slice %351 {offsets = [0, 64], sizes = [8, 32], strides = [1, 1]} : vector<8x128xf32> to vector<8x32xf32>
    %355 = vector.extract_strided_slice %350 {offsets = [0, 96], sizes = [8, 32], strides = [1, 1]} : vector<8x128xf32> to vector<8x32xf32>
    %356 = arith.mulf %353, %335 : vector<8x32xf32>
    %357 = arith.mulf %352, %354 : vector<8x32xf32>
    %358 = arith.addf %356, %357 : vector<8x32xf32>
    %359 = math.tanh %358 : vector<8x32xf32>
    %360 = arith.mulf %355, %359 : vector<8x32xf32>
    %361 = arith.index_cast %341 : i32 to index
    %c0_103 = arith.constant 0 : index
    %362 = vector.load %arg15[%361, %c0_103] : memref<64x32xf32, #tpu.memory_space<vmem>>, vector<8x32xf32>
    tpu.vector_store %arg15[%361, %c0_103], %360 {strides = array<i32>} : memref<64x32xf32, #tpu.memory_space<vmem>>, vector<8x32xf32>,
    %c7_i32_104 = arith.constant 7 : i32
    %c8_i32_105 = arith.constant 8 : i32
    %363 = arith.muli %c7_i32_104, %c8_i32_105 : i32
    %364 = tpu.assume_multiple %363, 8 : i32
    %365 = arith.index_cast %364 : i32 to index
    %c0_106 = arith.constant 0 : index
    %366 = vector.load %arg14[%365, %c0_106] : memref<64x128xf32, #tpu.memory_space<vmem>>, vector<8x128xf32>
    %cst_107 = arith.constant dense<0.000000e+00> : vector<8x128xf32>
    %367 = tpu.matmul %360, %195, %cst_107 {dimension_numbers = #tpu.dot_dimension_numbers<[1], [0], [0], [1], [0, 0, 1, 1], [], []>} : vector<8x32xf32>, vector<32x128xf32>, vector<8x128xf32> -> vector<8x128xf32>
    %368 = arith.addf %366, %367 : vector<8x128xf32>
    %369 = arith.negf %368 : vector<8x128xf32>
    %370 = math.exp %369 : vector<8x128xf32>
    %cst_108 = arith.constant 1.000000e+00 : f32
    %371 = vector.broadcast %cst_108 : f32 to vector<8x128xf32>
    %372 = arith.addf %371, %370 : vector<8x128xf32>
    %373 = arith.divf %371, %372 : vector<8x128xf32>
    %374 = math.tanh %368 : vector<8x128xf32>
    %375 = vector.extract_strided_slice %373 {offsets = [0, 0], sizes = [8, 32], strides = [1, 1]} : vector<8x128xf32> to vector<8x32xf32>
    %376 = vector.extract_strided_slice %373 {offsets = [0, 32], sizes = [8, 32], strides = [1, 1]} : vector<8x128xf32> to vector<8x32xf32>
    %377 = vector.extract_strided_slice %374 {offsets = [0, 64], sizes = [8, 32], strides = [1, 1]} : vector<8x128xf32> to vector<8x32xf32>
    %378 = vector.extract_strided_slice %373 {offsets = [0, 96], sizes = [8, 32], strides = [1, 1]} : vector<8x128xf32> to vector<8x32xf32>
    %379 = arith.mulf %376, %358 : vector<8x32xf32>
    %380 = arith.mulf %375, %377 : vector<8x32xf32>
    %381 = arith.addf %379, %380 : vector<8x32xf32>
    %382 = math.tanh %381 : vector<8x32xf32>
    %383 = arith.mulf %378, %382 : vector<8x32xf32>
    %384 = arith.index_cast %364 : i32 to index
    %c0_109 = arith.constant 0 : index
    %385 = vector.load %arg15[%384, %c0_109] : memref<64x32xf32, #tpu.memory_space<vmem>>, vector<8x32xf32>
    tpu.vector_store %arg15[%384, %c0_109], %383 {strides = array<i32>} : memref<64x32xf32, #tpu.memory_space<vmem>>, vector<8x32xf32>,
    %c8_i32_110 = arith.constant 8 : i32
    %c0_111 = arith.constant 0 : index
    %c0_112 = arith.constant 0 : index
    %386 = vector.load %arg15[%c0_111, %c0_112] : memref<64x32xf32, #tpu.memory_space<vmem>>, vector<64x32xf32>
    %c0_113 = arith.constant 0 : index
    %c0_114 = arith.constant 0 : index
    %387 = vector.load %arg8[%c0_113, %c0_114] : memref<32x128xf32, #tpu.memory_space<vmem>>, vector<32x128xf32>
    %c0_115 = arith.constant 0 : index
    %c0_116 = arith.constant 0 : index
    %388 = vector.load %arg9[%c0_115, %c0_116] : memref<32x128xf32, #tpu.memory_space<vmem>>, vector<32x128xf32>
    %c0_117 = arith.constant 0 : index
    %c0_118 = arith.constant 0 : index
    %389 = vector.load %arg10[%c0_117, %c0_118] : memref<1x128xf32, #tpu.memory_space<vmem>>, vector<1x128xf32>
    %cst_119 = arith.constant dense<0.000000e+00> : vector<64x128xf32>
    %390 = tpu.matmul %386, %387, %cst_119 {dimension_numbers = #tpu.dot_dimension_numbers<[1], [0], [0], [1], [0, 0, 1, 1], [], []>} : vector<64x32xf32>, vector<32x128xf32>, vector<64x128xf32> -> vector<64x128xf32>
    %391 = vector.broadcast %389 : vector<1x128xf32> to vector<64x128xf32>
    %392 = arith.addf %390, %391 : vector<64x128xf32>
    %c0_120 = arith.constant 0 : index
    %c0_121 = arith.constant 0 : index
    %393 = vector.load %arg14[%c0_120, %c0_121] : memref<64x128xf32, #tpu.memory_space<vmem>>, vector<64x128xf32>
    tpu.vector_store %arg14[%c0_120, %c0_121], %392 {strides = array<i32>} : memref<64x128xf32, #tpu.memory_space<vmem>>, vector<64x128xf32>,
    %cst_122 = arith.constant 0.000000e+00 : f32
    %394 = vector.broadcast %cst_122 : f32 to vector<8x32xf32>
    %c0_i32_123 = arith.constant 0 : i32
    %c8_i32_124 = arith.constant 8 : i32
    %395 = arith.muli %c0_i32_123, %c8_i32_124 : i32
    %396 = tpu.assume_multiple %395, 8 : i32
    %397 = arith.index_cast %396 : i32 to index
    %c0_125 = arith.constant 0 : index
    %398 = vector.load %arg14[%397, %c0_125] : memref<64x128xf32, #tpu.memory_space<vmem>>, vector<8x128xf32>
    %cst_126 = arith.constant dense<0.000000e+00> : vector<8x128xf32>
    %399 = tpu.matmul %394, %388, %cst_126 {dimension_numbers = #tpu.dot_dimension_numbers<[1], [0], [0], [1], [0, 0, 1, 1], [], []>} : vector<8x32xf32>, vector<32x128xf32>, vector<8x128xf32> -> vector<8x128xf32>
    %400 = arith.addf %398, %399 : vector<8x128xf32>
    %401 = arith.negf %400 : vector<8x128xf32>
    %402 = math.exp %401 : vector<8x128xf32>
    %cst_127 = arith.constant 1.000000e+00 : f32
    %403 = vector.broadcast %cst_127 : f32 to vector<8x128xf32>
    %404 = arith.addf %403, %402 : vector<8x128xf32>
    %405 = arith.divf %403, %404 : vector<8x128xf32>
    %406 = math.tanh %400 : vector<8x128xf32>
    %407 = vector.extract_strided_slice %405 {offsets = [0, 0], sizes = [8, 32], strides = [1, 1]} : vector<8x128xf32> to vector<8x32xf32>
    %408 = vector.extract_strided_slice %405 {offsets = [0, 32], sizes = [8, 32], strides = [1, 1]} : vector<8x128xf32> to vector<8x32xf32>
    %409 = vector.extract_strided_slice %406 {offsets = [0, 64], sizes = [8, 32], strides = [1, 1]} : vector<8x128xf32> to vector<8x32xf32>
    %410 = vector.extract_strided_slice %405 {offsets = [0, 96], sizes = [8, 32], strides = [1, 1]} : vector<8x128xf32> to vector<8x32xf32>
    %411 = arith.mulf %408, %394 : vector<8x32xf32>
    %412 = arith.mulf %407, %409 : vector<8x32xf32>
    %413 = arith.addf %411, %412 : vector<8x32xf32>
    %414 = math.tanh %413 : vector<8x32xf32>
    %415 = arith.mulf %410, %414 : vector<8x32xf32>
    %416 = arith.index_cast %396 : i32 to index
    %c0_128 = arith.constant 0 : index
    %417 = vector.load %arg15[%416, %c0_128] : memref<64x32xf32, #tpu.memory_space<vmem>>, vector<8x32xf32>
    tpu.vector_store %arg15[%416, %c0_128], %415 {strides = array<i32>} : memref<64x32xf32, #tpu.memory_space<vmem>>, vector<8x32xf32>,
    %c1_i32_129 = arith.constant 1 : i32
    %c8_i32_130 = arith.constant 8 : i32
    %418 = arith.muli %c1_i32_129, %c8_i32_130 : i32
    %419 = tpu.assume_multiple %418, 8 : i32
    %420 = arith.index_cast %419 : i32 to index
    %c0_131 = arith.constant 0 : index
    %421 = vector.load %arg14[%420, %c0_131] : memref<64x128xf32, #tpu.memory_space<vmem>>, vector<8x128xf32>
    %cst_132 = arith.constant dense<0.000000e+00> : vector<8x128xf32>
    %422 = tpu.matmul %415, %388, %cst_132 {dimension_numbers = #tpu.dot_dimension_numbers<[1], [0], [0], [1], [0, 0, 1, 1], [], []>} : vector<8x32xf32>, vector<32x128xf32>, vector<8x128xf32> -> vector<8x128xf32>
    %423 = arith.addf %421, %422 : vector<8x128xf32>
    %424 = arith.negf %423 : vector<8x128xf32>
    %425 = math.exp %424 : vector<8x128xf32>
    %cst_133 = arith.constant 1.000000e+00 : f32
    %426 = vector.broadcast %cst_133 : f32 to vector<8x128xf32>
    %427 = arith.addf %426, %425 : vector<8x128xf32>
    %428 = arith.divf %426, %427 : vector<8x128xf32>
    %429 = math.tanh %423 : vector<8x128xf32>
    %430 = vector.extract_strided_slice %428 {offsets = [0, 0], sizes = [8, 32], strides = [1, 1]} : vector<8x128xf32> to vector<8x32xf32>
    %431 = vector.extract_strided_slice %428 {offsets = [0, 32], sizes = [8, 32], strides = [1, 1]} : vector<8x128xf32> to vector<8x32xf32>
    %432 = vector.extract_strided_slice %429 {offsets = [0, 64], sizes = [8, 32], strides = [1, 1]} : vector<8x128xf32> to vector<8x32xf32>
    %433 = vector.extract_strided_slice %428 {offsets = [0, 96], sizes = [8, 32], strides = [1, 1]} : vector<8x128xf32> to vector<8x32xf32>
    %434 = arith.mulf %431, %413 : vector<8x32xf32>
    %435 = arith.mulf %430, %432 : vector<8x32xf32>
    %436 = arith.addf %434, %435 : vector<8x32xf32>
    %437 = math.tanh %436 : vector<8x32xf32>
    %438 = arith.mulf %433, %437 : vector<8x32xf32>
    %439 = arith.index_cast %419 : i32 to index
    %c0_134 = arith.constant 0 : index
    %440 = vector.load %arg15[%439, %c0_134] : memref<64x32xf32, #tpu.memory_space<vmem>>, vector<8x32xf32>
    tpu.vector_store %arg15[%439, %c0_134], %438 {strides = array<i32>} : memref<64x32xf32, #tpu.memory_space<vmem>>, vector<8x32xf32>,
    %c2_i32_135 = arith.constant 2 : i32
    %c8_i32_136 = arith.constant 8 : i32
    %441 = arith.muli %c2_i32_135, %c8_i32_136 : i32
    %442 = tpu.assume_multiple %441, 8 : i32
    %443 = arith.index_cast %442 : i32 to index
    %c0_137 = arith.constant 0 : index
    %444 = vector.load %arg14[%443, %c0_137] : memref<64x128xf32, #tpu.memory_space<vmem>>, vector<8x128xf32>
    %cst_138 = arith.constant dense<0.000000e+00> : vector<8x128xf32>
    %445 = tpu.matmul %438, %388, %cst_138 {dimension_numbers = #tpu.dot_dimension_numbers<[1], [0], [0], [1], [0, 0, 1, 1], [], []>} : vector<8x32xf32>, vector<32x128xf32>, vector<8x128xf32> -> vector<8x128xf32>
    %446 = arith.addf %444, %445 : vector<8x128xf32>
    %447 = arith.negf %446 : vector<8x128xf32>
    %448 = math.exp %447 : vector<8x128xf32>
    %cst_139 = arith.constant 1.000000e+00 : f32
    %449 = vector.broadcast %cst_139 : f32 to vector<8x128xf32>
    %450 = arith.addf %449, %448 : vector<8x128xf32>
    %451 = arith.divf %449, %450 : vector<8x128xf32>
    %452 = math.tanh %446 : vector<8x128xf32>
    %453 = vector.extract_strided_slice %451 {offsets = [0, 0], sizes = [8, 32], strides = [1, 1]} : vector<8x128xf32> to vector<8x32xf32>
    %454 = vector.extract_strided_slice %451 {offsets = [0, 32], sizes = [8, 32], strides = [1, 1]} : vector<8x128xf32> to vector<8x32xf32>
    %455 = vector.extract_strided_slice %452 {offsets = [0, 64], sizes = [8, 32], strides = [1, 1]} : vector<8x128xf32> to vector<8x32xf32>
    %456 = vector.extract_strided_slice %451 {offsets = [0, 96], sizes = [8, 32], strides = [1, 1]} : vector<8x128xf32> to vector<8x32xf32>
    %457 = arith.mulf %454, %436 : vector<8x32xf32>
    %458 = arith.mulf %453, %455 : vector<8x32xf32>
    %459 = arith.addf %457, %458 : vector<8x32xf32>
    %460 = math.tanh %459 : vector<8x32xf32>
    %461 = arith.mulf %456, %460 : vector<8x32xf32>
    %462 = arith.index_cast %442 : i32 to index
    %c0_140 = arith.constant 0 : index
    %463 = vector.load %arg15[%462, %c0_140] : memref<64x32xf32, #tpu.memory_space<vmem>>, vector<8x32xf32>
    tpu.vector_store %arg15[%462, %c0_140], %461 {strides = array<i32>} : memref<64x32xf32, #tpu.memory_space<vmem>>, vector<8x32xf32>,
    %c3_i32_141 = arith.constant 3 : i32
    %c8_i32_142 = arith.constant 8 : i32
    %464 = arith.muli %c3_i32_141, %c8_i32_142 : i32
    %465 = tpu.assume_multiple %464, 8 : i32
    %466 = arith.index_cast %465 : i32 to index
    %c0_143 = arith.constant 0 : index
    %467 = vector.load %arg14[%466, %c0_143] : memref<64x128xf32, #tpu.memory_space<vmem>>, vector<8x128xf32>
    %cst_144 = arith.constant dense<0.000000e+00> : vector<8x128xf32>
    %468 = tpu.matmul %461, %388, %cst_144 {dimension_numbers = #tpu.dot_dimension_numbers<[1], [0], [0], [1], [0, 0, 1, 1], [], []>} : vector<8x32xf32>, vector<32x128xf32>, vector<8x128xf32> -> vector<8x128xf32>
    %469 = arith.addf %467, %468 : vector<8x128xf32>
    %470 = arith.negf %469 : vector<8x128xf32>
    %471 = math.exp %470 : vector<8x128xf32>
    %cst_145 = arith.constant 1.000000e+00 : f32
    %472 = vector.broadcast %cst_145 : f32 to vector<8x128xf32>
    %473 = arith.addf %472, %471 : vector<8x128xf32>
    %474 = arith.divf %472, %473 : vector<8x128xf32>
    %475 = math.tanh %469 : vector<8x128xf32>
    %476 = vector.extract_strided_slice %474 {offsets = [0, 0], sizes = [8, 32], strides = [1, 1]} : vector<8x128xf32> to vector<8x32xf32>
    %477 = vector.extract_strided_slice %474 {offsets = [0, 32], sizes = [8, 32], strides = [1, 1]} : vector<8x128xf32> to vector<8x32xf32>
    %478 = vector.extract_strided_slice %475 {offsets = [0, 64], sizes = [8, 32], strides = [1, 1]} : vector<8x128xf32> to vector<8x32xf32>
    %479 = vector.extract_strided_slice %474 {offsets = [0, 96], sizes = [8, 32], strides = [1, 1]} : vector<8x128xf32> to vector<8x32xf32>
    %480 = arith.mulf %477, %459 : vector<8x32xf32>
    %481 = arith.mulf %476, %478 : vector<8x32xf32>
    %482 = arith.addf %480, %481 : vector<8x32xf32>
    %483 = math.tanh %482 : vector<8x32xf32>
    %484 = arith.mulf %479, %483 : vector<8x32xf32>
    %485 = arith.index_cast %465 : i32 to index
    %c0_146 = arith.constant 0 : index
    %486 = vector.load %arg15[%485, %c0_146] : memref<64x32xf32, #tpu.memory_space<vmem>>, vector<8x32xf32>
    tpu.vector_store %arg15[%485, %c0_146], %484 {strides = array<i32>} : memref<64x32xf32, #tpu.memory_space<vmem>>, vector<8x32xf32>,
    %c4_i32_147 = arith.constant 4 : i32
    %c8_i32_148 = arith.constant 8 : i32
    %487 = arith.muli %c4_i32_147, %c8_i32_148 : i32
    %488 = tpu.assume_multiple %487, 8 : i32
    %489 = arith.index_cast %488 : i32 to index
    %c0_149 = arith.constant 0 : index
    %490 = vector.load %arg14[%489, %c0_149] : memref<64x128xf32, #tpu.memory_space<vmem>>, vector<8x128xf32>
    %cst_150 = arith.constant dense<0.000000e+00> : vector<8x128xf32>
    %491 = tpu.matmul %484, %388, %cst_150 {dimension_numbers = #tpu.dot_dimension_numbers<[1], [0], [0], [1], [0, 0, 1, 1], [], []>} : vector<8x32xf32>, vector<32x128xf32>, vector<8x128xf32> -> vector<8x128xf32>
    %492 = arith.addf %490, %491 : vector<8x128xf32>
    %493 = arith.negf %492 : vector<8x128xf32>
    %494 = math.exp %493 : vector<8x128xf32>
    %cst_151 = arith.constant 1.000000e+00 : f32
    %495 = vector.broadcast %cst_151 : f32 to vector<8x128xf32>
    %496 = arith.addf %495, %494 : vector<8x128xf32>
    %497 = arith.divf %495, %496 : vector<8x128xf32>
    %498 = math.tanh %492 : vector<8x128xf32>
    %499 = vector.extract_strided_slice %497 {offsets = [0, 0], sizes = [8, 32], strides = [1, 1]} : vector<8x128xf32> to vector<8x32xf32>
    %500 = vector.extract_strided_slice %497 {offsets = [0, 32], sizes = [8, 32], strides = [1, 1]} : vector<8x128xf32> to vector<8x32xf32>
    %501 = vector.extract_strided_slice %498 {offsets = [0, 64], sizes = [8, 32], strides = [1, 1]} : vector<8x128xf32> to vector<8x32xf32>
    %502 = vector.extract_strided_slice %497 {offsets = [0, 96], sizes = [8, 32], strides = [1, 1]} : vector<8x128xf32> to vector<8x32xf32>
    %503 = arith.mulf %500, %482 : vector<8x32xf32>
    %504 = arith.mulf %499, %501 : vector<8x32xf32>
    %505 = arith.addf %503, %504 : vector<8x32xf32>
    %506 = math.tanh %505 : vector<8x32xf32>
    %507 = arith.mulf %502, %506 : vector<8x32xf32>
    %508 = arith.index_cast %488 : i32 to index
    %c0_152 = arith.constant 0 : index
    %509 = vector.load %arg15[%508, %c0_152] : memref<64x32xf32, #tpu.memory_space<vmem>>, vector<8x32xf32>
    tpu.vector_store %arg15[%508, %c0_152], %507 {strides = array<i32>} : memref<64x32xf32, #tpu.memory_space<vmem>>, vector<8x32xf32>,
    %c5_i32_153 = arith.constant 5 : i32
    %c8_i32_154 = arith.constant 8 : i32
    %510 = arith.muli %c5_i32_153, %c8_i32_154 : i32
    %511 = tpu.assume_multiple %510, 8 : i32
    %512 = arith.index_cast %511 : i32 to index
    %c0_155 = arith.constant 0 : index
    %513 = vector.load %arg14[%512, %c0_155] : memref<64x128xf32, #tpu.memory_space<vmem>>, vector<8x128xf32>
    %cst_156 = arith.constant dense<0.000000e+00> : vector<8x128xf32>
    %514 = tpu.matmul %507, %388, %cst_156 {dimension_numbers = #tpu.dot_dimension_numbers<[1], [0], [0], [1], [0, 0, 1, 1], [], []>} : vector<8x32xf32>, vector<32x128xf32>, vector<8x128xf32> -> vector<8x128xf32>
    %515 = arith.addf %513, %514 : vector<8x128xf32>
    %516 = arith.negf %515 : vector<8x128xf32>
    %517 = math.exp %516 : vector<8x128xf32>
    %cst_157 = arith.constant 1.000000e+00 : f32
    %518 = vector.broadcast %cst_157 : f32 to vector<8x128xf32>
    %519 = arith.addf %518, %517 : vector<8x128xf32>
    %520 = arith.divf %518, %519 : vector<8x128xf32>
    %521 = math.tanh %515 : vector<8x128xf32>
    %522 = vector.extract_strided_slice %520 {offsets = [0, 0], sizes = [8, 32], strides = [1, 1]} : vector<8x128xf32> to vector<8x32xf32>
    %523 = vector.extract_strided_slice %520 {offsets = [0, 32], sizes = [8, 32], strides = [1, 1]} : vector<8x128xf32> to vector<8x32xf32>
    %524 = vector.extract_strided_slice %521 {offsets = [0, 64], sizes = [8, 32], strides = [1, 1]} : vector<8x128xf32> to vector<8x32xf32>
    %525 = vector.extract_strided_slice %520 {offsets = [0, 96], sizes = [8, 32], strides = [1, 1]} : vector<8x128xf32> to vector<8x32xf32>
    %526 = arith.mulf %523, %505 : vector<8x32xf32>
    %527 = arith.mulf %522, %524 : vector<8x32xf32>
    %528 = arith.addf %526, %527 : vector<8x32xf32>
    %529 = math.tanh %528 : vector<8x32xf32>
    %530 = arith.mulf %525, %529 : vector<8x32xf32>
    %531 = arith.index_cast %511 : i32 to index
    %c0_158 = arith.constant 0 : index
    %532 = vector.load %arg15[%531, %c0_158] : memref<64x32xf32, #tpu.memory_space<vmem>>, vector<8x32xf32>
    tpu.vector_store %arg15[%531, %c0_158], %530 {strides = array<i32>} : memref<64x32xf32, #tpu.memory_space<vmem>>, vector<8x32xf32>,
    %c6_i32_159 = arith.constant 6 : i32
    %c8_i32_160 = arith.constant 8 : i32
    %533 = arith.muli %c6_i32_159, %c8_i32_160 : i32
    %534 = tpu.assume_multiple %533, 8 : i32
    %535 = arith.index_cast %534 : i32 to index
    %c0_161 = arith.constant 0 : index
    %536 = vector.load %arg14[%535, %c0_161] : memref<64x128xf32, #tpu.memory_space<vmem>>, vector<8x128xf32>
    %cst_162 = arith.constant dense<0.000000e+00> : vector<8x128xf32>
    %537 = tpu.matmul %530, %388, %cst_162 {dimension_numbers = #tpu.dot_dimension_numbers<[1], [0], [0], [1], [0, 0, 1, 1], [], []>} : vector<8x32xf32>, vector<32x128xf32>, vector<8x128xf32> -> vector<8x128xf32>
    %538 = arith.addf %536, %537 : vector<8x128xf32>
    %539 = arith.negf %538 : vector<8x128xf32>
    %540 = math.exp %539 : vector<8x128xf32>
    %cst_163 = arith.constant 1.000000e+00 : f32
    %541 = vector.broadcast %cst_163 : f32 to vector<8x128xf32>
    %542 = arith.addf %541, %540 : vector<8x128xf32>
    %543 = arith.divf %541, %542 : vector<8x128xf32>
    %544 = math.tanh %538 : vector<8x128xf32>
    %545 = vector.extract_strided_slice %543 {offsets = [0, 0], sizes = [8, 32], strides = [1, 1]} : vector<8x128xf32> to vector<8x32xf32>
    %546 = vector.extract_strided_slice %543 {offsets = [0, 32], sizes = [8, 32], strides = [1, 1]} : vector<8x128xf32> to vector<8x32xf32>
    %547 = vector.extract_strided_slice %544 {offsets = [0, 64], sizes = [8, 32], strides = [1, 1]} : vector<8x128xf32> to vector<8x32xf32>
    %548 = vector.extract_strided_slice %543 {offsets = [0, 96], sizes = [8, 32], strides = [1, 1]} : vector<8x128xf32> to vector<8x32xf32>
    %549 = arith.mulf %546, %528 : vector<8x32xf32>
    %550 = arith.mulf %545, %547 : vector<8x32xf32>
    %551 = arith.addf %549, %550 : vector<8x32xf32>
    %552 = math.tanh %551 : vector<8x32xf32>
    %553 = arith.mulf %548, %552 : vector<8x32xf32>
    %554 = arith.index_cast %534 : i32 to index
    %c0_164 = arith.constant 0 : index
    %555 = vector.load %arg15[%554, %c0_164] : memref<64x32xf32, #tpu.memory_space<vmem>>, vector<8x32xf32>
    tpu.vector_store %arg15[%554, %c0_164], %553 {strides = array<i32>} : memref<64x32xf32, #tpu.memory_space<vmem>>, vector<8x32xf32>,
    %c7_i32_165 = arith.constant 7 : i32
    %c8_i32_166 = arith.constant 8 : i32
    %556 = arith.muli %c7_i32_165, %c8_i32_166 : i32
    %557 = tpu.assume_multiple %556, 8 : i32
    %558 = arith.index_cast %557 : i32 to index
    %c0_167 = arith.constant 0 : index
    %559 = vector.load %arg14[%558, %c0_167] : memref<64x128xf32, #tpu.memory_space<vmem>>, vector<8x128xf32>
    %cst_168 = arith.constant dense<0.000000e+00> : vector<8x128xf32>
    %560 = tpu.matmul %553, %388, %cst_168 {dimension_numbers = #tpu.dot_dimension_numbers<[1], [0], [0], [1], [0, 0, 1, 1], [], []>} : vector<8x32xf32>, vector<32x128xf32>, vector<8x128xf32> -> vector<8x128xf32>
    %561 = arith.addf %559, %560 : vector<8x128xf32>
    %562 = arith.negf %561 : vector<8x128xf32>
    %563 = math.exp %562 : vector<8x128xf32>
    %cst_169 = arith.constant 1.000000e+00 : f32
    %564 = vector.broadcast %cst_169 : f32 to vector<8x128xf32>
    %565 = arith.addf %564, %563 : vector<8x128xf32>
    %566 = arith.divf %564, %565 : vector<8x128xf32>
    %567 = math.tanh %561 : vector<8x128xf32>
    %568 = vector.extract_strided_slice %566 {offsets = [0, 0], sizes = [8, 32], strides = [1, 1]} : vector<8x128xf32> to vector<8x32xf32>
    %569 = vector.extract_strided_slice %566 {offsets = [0, 32], sizes = [8, 32], strides = [1, 1]} : vector<8x128xf32> to vector<8x32xf32>
    %570 = vector.extract_strided_slice %567 {offsets = [0, 64], sizes = [8, 32], strides = [1, 1]} : vector<8x128xf32> to vector<8x32xf32>
    %571 = vector.extract_strided_slice %566 {offsets = [0, 96], sizes = [8, 32], strides = [1, 1]} : vector<8x128xf32> to vector<8x32xf32>
    %572 = arith.mulf %569, %551 : vector<8x32xf32>
    %573 = arith.mulf %568, %570 : vector<8x32xf32>
    %574 = arith.addf %572, %573 : vector<8x32xf32>
    %575 = math.tanh %574 : vector<8x32xf32>
    %576 = arith.mulf %571, %575 : vector<8x32xf32>
    %577 = arith.index_cast %557 : i32 to index
    %c0_170 = arith.constant 0 : index
    %578 = vector.load %arg15[%577, %c0_170] : memref<64x32xf32, #tpu.memory_space<vmem>>, vector<8x32xf32>
    tpu.vector_store %arg15[%577, %c0_170], %576 {strides = array<i32>} : memref<64x32xf32, #tpu.memory_space<vmem>>, vector<8x32xf32>,
    %c8_i32_171 = arith.constant 8 : i32
    %c0_172 = arith.constant 0 : index
    %c0_173 = arith.constant 0 : index
    %579 = vector.load %arg15[%c0_172, %c0_173] : memref<64x32xf32, #tpu.memory_space<vmem>>, vector<64x32xf32>
    %c0_174 = arith.constant 0 : index
    %c0_175 = arith.constant 0 : index
    %580 = vector.load %arg11[%c0_174, %c0_175] : memref<32x128xf32, #tpu.memory_space<vmem>>, vector<32x128xf32>
    %cst_176 = arith.constant dense<0.000000e+00> : vector<64x128xf32>
    %581 = tpu.matmul %579, %580, %cst_176 {dimension_numbers = #tpu.dot_dimension_numbers<[1], [0], [0], [1], [0, 0, 1, 1], [], []>} : vector<64x32xf32>, vector<32x128xf32>, vector<64x128xf32> -> vector<64x128xf32>
    %c0_177 = arith.constant 0 : index
    %c0_178 = arith.constant 0 : index
    %582 = vector.load %arg12[%c0_177, %c0_178] : memref<1x128xf32, #tpu.memory_space<vmem>>, vector<1x128xf32>
    %583 = vector.broadcast %582 : vector<1x128xf32> to vector<64x128xf32>
    %584 = arith.addf %581, %583 : vector<64x128xf32>
    %c0_179 = arith.constant 0 : index
    %c0_180 = arith.constant 0 : index
    %585 = vector.load %arg13[%c0_179, %c0_180] : memref<64x128xf32, #tpu.memory_space<vmem>>, vector<64x128xf32>
    tpu.vector_store %arg13[%c0_179, %c0_180], %584 {strides = array<i32>} : memref<64x128xf32, #tpu.memory_space<vmem>>, vector<64x128xf32>,
    return
  }
  func.func @transform_0(%arg0: i32) -> (i32, i32) {
    %c0_i32 = arith.constant 0 : i32
    %c0_i32_0 = arith.constant 0 : i32
    %c0_i32_1 = arith.constant 0 : i32
    return %c0_i32, %c0_i32_0 : i32, i32
  }
  func.func @transform_1(%arg0: i32) -> (i32, i32) {
    %c0_i32 = arith.constant 0 : i32
    %c0_i32_0 = arith.constant 0 : i32
    %c0_i32_1 = arith.constant 0 : i32
    return %c0_i32, %c0_i32_0 : i32, i32
  }
  func.func @transform_2(%arg0: i32) -> (i32, i32) {
    %c0_i32 = arith.constant 0 : i32
    %c0_i32_0 = arith.constant 0 : i32
    %c0_i32_1 = arith.constant 0 : i32
    return %c0_i32, %c0_i32_0 : i32, i32
  }
  func.func @transform_3(%arg0: i32) -> (i32, i32) {
    %c0_i32 = arith.constant 0 : i32
    %c0_i32_0 = arith.constant 0 : i32
    %c0_i32_1 = arith.constant 0 : i32
    return %c0_i32, %c0_i32_0 : i32, i32
  }
  func.func @transform_4(%arg0: i32) -> (i32, i32) {
    %c0_i32 = arith.constant 0 : i32
    %c0_i32_0 = arith.constant 0 : i32
    %c0_i32_1 = arith.constant 0 : i32
    return %c0_i32, %c0_i32_0 : i32, i32
  }
  func.func @transform_5(%arg0: i32) -> (i32, i32) {
    %c0_i32 = arith.constant 0 : i32
    %c0_i32_0 = arith.constant 0 : i32
    %c0_i32_1 = arith.constant 0 : i32
    return %c0_i32, %c0_i32_0 : i32, i32
  }
  func.func @transform_6(%arg0: i32) -> (i32, i32) {
    %c0_i32 = arith.constant 0 : i32
    %c0_i32_0 = arith.constant 0 : i32
    %c0_i32_1 = arith.constant 0 : i32
    return %c0_i32, %c0_i32_0 : i32, i32
  }
  func.func @transform_7(%arg0: i32) -> (i32, i32) {
    %c0_i32 = arith.constant 0 : i32
    %c0_i32_0 = arith.constant 0 : i32
    %c0_i32_1 = arith.constant 0 : i32
    return %c0_i32, %c0_i32_0 : i32, i32
  }
  func.func @transform_8(%arg0: i32) -> (i32, i32) {
    %c0_i32 = arith.constant 0 : i32
    %c0_i32_0 = arith.constant 0 : i32
    %c0_i32_1 = arith.constant 0 : i32
    return %c0_i32, %c0_i32_0 : i32, i32
  }
  func.func @transform_9(%arg0: i32) -> (i32, i32) {
    %c0_i32 = arith.constant 0 : i32
    %c0_i32_0 = arith.constant 0 : i32
    %c0_i32_1 = arith.constant 0 : i32
    return %c0_i32, %c0_i32_0 : i32, i32
  }
  func.func @transform_10(%arg0: i32) -> (i32, i32) {
    %c0_i32 = arith.constant 0 : i32
    %c0_i32_0 = arith.constant 0 : i32
    %c0_i32_1 = arith.constant 0 : i32
    return %c0_i32, %c0_i32_0 : i32, i32
  }
  func.func @transform_11(%arg0: i32) -> (i32, i32) {
    %c0_i32 = arith.constant 0 : i32
    %c0_i32_0 = arith.constant 0 : i32
    %c0_i32_1 = arith.constant 0 : i32
    return %c0_i32, %c0_i32_0 : i32, i32
  }
  func.func @transform_12(%arg0: i32) -> (i32, i32) {
    %c0_i32 = arith.constant 0 : i32
    %c0_i32_0 = arith.constant 0 : i32
    %c0_i32_1 = arith.constant 0 : i32
    return %c0_i32, %c0_i32_0 : i32, i32
  }
}

</mosaic_0001>

<llo_original>
// kernel: layer_rnn_forward.1
$region0: #{layer_rnn_forward.1}
  #allocation0 [shape = 'u32[]', space=smem, size = 0x4, offset = 0x4, fixed_abs, tag = 'smem constant byte address 0x4 - core index']
  #allocation1 [shape = 'u32[144,128]{1,0:T(1,128)}', space=vmem, size = 0x12000, scoped, tag = 'internal scratch']
  #allocation2 [shape = 'f32[64,128]{1,0:T(8,128)}', space=vmem, size = 0x8000, scoped, tag = 'scratch operand']
  #allocation3 [shape = 'f32[64,32]{1,0:T(8,128)}', space=vmem, size = 0x8000, scoped, tag = 'scratch operand']
  %s0 = inlined_call_operand.vmem [shape: f32[64,64], index: 0, kind: input, shape index: {}]
  %s1 = inlined_call_operand.vmem [shape: f32[64,128], index: 1, kind: input, shape index: {}]
  %s2 = inlined_call_operand.hbm [shape: f32[32,128], index: 2, kind: input, shape index: {}]
  %s3 = inlined_call_operand.hbm [shape: f32[1,128], index: 3, kind: input, shape index: {}]
  %s4 = inlined_call_operand.hbm [shape: f32[32,128], index: 4, kind: input, shape index: {}]
  %s5 = inlined_call_operand.hbm [shape: f32[32,128], index: 5, kind: input, shape index: {}]
  %s6 = inlined_call_operand.hbm [shape: f32[1,128], index: 6, kind: input, shape index: {}]
  %s7 = inlined_call_operand.hbm [shape: f32[32,128], index: 7, kind: input, shape index: {}]
  %s8 = inlined_call_operand.hbm [shape: f32[32,128], index: 8, kind: input, shape index: {}]
  %s9 = inlined_call_operand.hbm [shape: f32[1,128], index: 9, kind: input, shape index: {}]
  %s10 = inlined_call_operand.vmem [shape: f32[32,128], index: 10, kind: input, shape index: {}]
  %s11 = inlined_call_operand.vmem [shape: f32[1,128], index: 11, kind: input, shape index: {}]
  %s12 = inlined_call_operand.vmem [shape: f32[64,128], index: 12, kind: output, shape index: {}]
  %s13 = sld [smem:[#allocation0]]
  $region90: #{layer_rnn_forward.1} parent=0
    _
  %s15 = ssub.s32 1, %s13
  %s16 = scalar_select 0, %s15, %s13
  $region1: #{layer_rnn_forward.1} parent=0
    #allocation4 [shape = 'u8[16384]{0}', space=vmem, size = 0x4000, scoped, tag = 'input window, operand 2, single buffered']
    #allocation5 [shape = 's32[1]{0}', space=sflag, size = 0x4, scoped, tag = 'scoped memory for layer_rnn_forward.1']
    #allocation6 [shape = 'u8[512]{0}', space=vmem, size = 0x400, scoped, tag = 'input window, operand 3, single buffered']
    #allocation7 [shape = 's32[1]{0}', space=sflag, size = 0x4, scoped, tag = 'scoped memory for layer_rnn_forward.1']
    #allocation8 [shape = 'u8[16384]{0}', space=vmem, size = 0x4000, scoped, tag = 'input window, operand 4, single buffered']
    #allocation9 [shape = 'u8[16384]{0}', space=vmem, size = 0x4000, scoped, tag = 'input window, operand 5, single buffered']
    #allocation10 [shape = 's32[1]{0}', space=sflag, size = 0x4, scoped, tag = 'scoped memory for layer_rnn_forward.1']
    #allocation11 [shape = 'u8[512]{0}', space=vmem, size = 0x400, scoped, tag = 'input window, operand 6, single buffered']
    #allocation12 [shape = 'u8[16384]{0}', space=vmem, size = 0x4000, scoped, tag = 'input window, operand 7, single buffered']
    #allocation13 [shape = 's32[1]{0}', space=sflag, size = 0x4, scoped, tag = 'scoped memory for layer_rnn_forward.1']
    #allocation14 [shape = 'u8[16384]{0}', space=vmem, size = 0x4000, scoped, tag = 'input window, operand 8, single buffered']
    #allocation15 [shape = 'u8[512]{0}', space=vmem, size = 0x400, scoped, tag = 'input window, operand 9, single buffered']
    #allocation16 [shape = 's32[1]{0}', space=sflag, size = 0x4, scoped, tag = 'scoped memory for layer_rnn_forward.1']
    %17 = vsyncpa [#allocation5], 0
    %18 = vsyncpa [#allocation7], 0
    %19 = vsyncpa [#allocation10], 0
    %20 = vsyncpa [#allocation13], 0
    %21 = vsyncpa [#allocation16], 0
    // Predicated region
    $region2: #{layer_rnn_forward.1} parent=1 // pred_check
      _
    $region3: #{layer_rnn_forward.1} parent=1 // pred_check_branch
      %23 = sbr.rel (0) target = $region5
    $region4: #{layer_rnn_forward.1} parent=1 // pred_region
      _
    $region5: #{layer_rnn_forward.1} parent=1 // pred_fallthru
      _
    // Predicated region
    $region6: #{layer_rnn_forward.1} parent=1 // pred_check
      _
    $region7: #{layer_rnn_forward.1} parent=1 // pred_check_branch
      %25 = sbr.rel (0) target = $region9
    $region8: #{layer_rnn_forward.1} parent=1 // pred_region
      _
    $region9: #{layer_rnn_forward.1} parent=1 // pred_fallthru
      _
    // Predicated region
    $region10: #{layer_rnn_forward.1} parent=1 // pred_check
      _
    $region11: #{layer_rnn_forward.1} parent=1 // pred_check_branch
      %27 = sbr.rel (0) target = $region13
    $region12: #{layer_rnn_forward.1} parent=1 // pred_region
      %s29 = ssub.s32 512, 512
      %30 = vsyncadd [#allocation5], %s29
      %s31 = sshll.u32 [#allocation4], 4
      %s32 = int_to_ptr.vmem [resolvable:$true] %s31
      %37 = dma.hbm_to_vmem [thread:$0]  %s2, 512, %s32, [#allocation5], 128, 128, 8
    $region13: #{layer_rnn_forward.1} parent=1 // pred_fallthru
      _
    // Predicated region
    $region14: #{layer_rnn_forward.1} parent=1 // pred_check
      _
    $region15: #{layer_rnn_forward.1} parent=1 // pred_check_branch
      %39 = sbr.rel (0) target = $region17
    $region16: #{layer_rnn_forward.1} parent=1 // pred_region
      %s41 = ssub.s32 16, 16
      %42 = vsyncadd [#allocation7], %s41
      %s44 = sshll.u32 [#allocation6], 4
      %s45 = int_to_ptr.vmem [resolvable:$true] %s44
      %47 = dma.hbm_to_vmem [thread:$0]  %s3, 16, %s45, [#allocation7]
    $region17: #{layer_rnn_forward.1} parent=1 // pred_fallthru
      _
    // Predicated region
    $region18: #{layer_rnn_forward.1} parent=1 // pred_check
      _
    $region19: #{layer_rnn_forward.1} parent=1 // pred_check_branch
      %49 = sbr.rel (0) target = $region21
    $region20: #{layer_rnn_forward.1} parent=1 // pred_region
      %s51 = ssub.s32 512, 512
      %52 = vsyncadd [#allocation7], %s51
      %s53 = sshll.u32 [#allocation8], 4
      %s54 = int_to_ptr.vmem [resolvable:$true] %s53
      %59 = dma.hbm_to_vmem [thread:$0]  %s4, 512, %s54, [#allocation7], 128, 128, 8
    $region21: #{layer_rnn_forward.1} parent=1 // pred_fallthru
      _
    // Predicated region
    $region22: #{layer_rnn_forward.1} parent=1 // pred_check
      _
    $region23: #{layer_rnn_forward.1} parent=1 // pred_check_branch
      %61 = sbr.rel (0) target = $region25
    $region24: #{layer_rnn_forward.1} parent=1 // pred_region
      %s63 = ssub.s32 512, 512
      %64 = vsyncadd [#allocation10], %s63
      %s65 = sshll.u32 [#allocation9], 4
      %s66 = int_to_ptr.vmem [resolvable:$true] %s65
      %71 = dma.hbm_to_vmem [thread:$0]  %s5, 512, %s66, [#allocation10], 128, 128, 8
    $region25: #{layer_rnn_forward.1} parent=1 // pred_fallthru
      _
    // Predicated region
    $region26: #{layer_rnn_forward.1} parent=1 // pred_check
      _
    $region27: #{layer_rnn_forward.1} parent=1 // pred_check_branch
      %73 = sbr.rel (0) target = $region29
    $region28: #{layer_rnn_forward.1} parent=1 // pred_region
      %s75 = ssub.s32 16, 16
      %76 = vsyncadd [#allocation10], %s75
      %s78 = sshll.u32 [#allocation11], 4
      %s79 = int_to_ptr.vmem [resolvable:$true] %s78
      %81 = dma.hbm_to_vmem [thread:$0]  %s6, 16, %s79, [#allocation10]
    $region29: #{layer_rnn_forward.1} parent=1 // pred_fallthru
      _
    // Predicated region
    $region30: #{layer_rnn_forward.1} parent=1 // pred_check
      _
    $region31: #{layer_rnn_forward.1} parent=1 // pred_check_branch
      %83 = sbr.rel (0) target = $region33
    $region32: #{layer_rnn_forward.1} parent=1 // pred_region
      %s85 = ssub.s32 512, 512
      %86 = vsyncadd [#allocation13], %s85
      %s87 = sshll.u32 [#allocation12], 4
      %s88 = int_to_ptr.vmem [resolvable:$true] %s87
      %93 = dma.hbm_to_vmem [thread:$0]  %s7, 512, %s88, [#allocation13], 128, 128, 8
    $region33: #{layer_rnn_forward.1} parent=1 // pred_fallthru
      _
    // Predicated region
    $region34: #{layer_rnn_forward.1} parent=1 // pred_check
      _
    $region35: #{layer_rnn_forward.1} parent=1 // pred_check_branch
      %95 = sbr.rel (0) target = $region37
    $region36: #{layer_rnn_forward.1} parent=1 // pred_region
      %s97 = ssub.s32 512, 512
      %98 = vsyncadd [#allocation13], %s97
      %s99 = sshll.u32 [#allocation14], 4
      %s100 = int_to_ptr.vmem [resolvable:$true] %s99
      %105 = dma.hbm_to_vmem [thread:$0]  %s8, 512, %s100, [#allocation13], 128, 128, 8
    $region37: #{layer_rnn_forward.1} parent=1 // pred_fallthru
      _
    // Predicated region
    $region38: #{layer_rnn_forward.1} parent=1 // pred_check
      _
    $region39: #{layer_rnn_forward.1} parent=1 // pred_check_branch
      %107 = sbr.rel (0) target = $region41
    $region40: #{layer_rnn_forward.1} parent=1 // pred_region
      %s109 = ssub.s32 16, 16
      %110 = vsyncadd [#allocation16], %s109
      %s112 = sshll.u32 [#allocation15], 4
      %s113 = int_to_ptr.vmem [resolvable:$true] %s112
      %115 = dma.hbm_to_vmem [thread:$0]  %s9, 16, %s113, [#allocation16]
    $region41: #{layer_rnn_forward.1} parent=1 // pred_fallthru
      _
    // Predicated region
    $region42: #{layer_rnn_forward.1} parent=1 // pred_check
      _
    $region43: #{layer_rnn_forward.1} parent=1 // pred_check_branch
      %117 = sbr.rel (0) target = $region45
    $region44: #{layer_rnn_forward.1} parent=1 // pred_region
      _
    $region45: #{layer_rnn_forward.1} parent=1 // pred_fallthru
      _
    // Predicated region
    $region46: #{layer_rnn_forward.1} parent=1 // pred_check
      _
    $region47: #{layer_rnn_forward.1} parent=1 // pred_check_branch
      %119 = sbr.rel (0) target = $region49
    $region48: #{layer_rnn_forward.1} parent=1 // pred_region
      _
    $region49: #{layer_rnn_forward.1} parent=1 // pred_fallthru
      _
    // Predicated region
    $region50: #{layer_rnn_forward.1} parent=1 // pred_check
      _
    $region51: #{layer_rnn_forward.1} parent=1 // pred_check_branch
      %121 = sbr.rel (0) target = $region53
    $region52: #{layer_rnn_forward.1} parent=1 // pred_region
      %122 = dma.done [#allocation5], 512
    $region53: #{layer_rnn_forward.1} parent=1 // pred_fallthru
      _
    // Predicated region
    $region54: #{layer_rnn_forward.1} parent=1 // pred_check
      _
    $region55: #{layer_rnn_forward.1} parent=1 // pred_check_branch
      %124 = sbr.rel (0) target = $region57
    $region56: #{layer_rnn_forward.1} parent=1 // pred_region
      %125 = dma.done [#allocation7], 16
    $region57: #{layer_rnn_forward.1} parent=1 // pred_fallthru
      _
    // Predicated region
    $region58: #{layer_rnn_forward.1} parent=1 // pred_check
      _
    $region59: #{layer_rnn_forward.1} parent=1 // pred_check_branch
      %127 = sbr.rel (0) target = $region61
    $region60: #{layer_rnn_forward.1} parent=1 // pred_region
      %128 = dma.done [#allocation7], 512
    $region61: #{layer_rnn_forward.1} parent=1 // pred_fallthru
      _
    // Predicated region
    $region62: #{layer_rnn_forward.1} parent=1 // pred_check
      _
    $region63: #{layer_rnn_forward.1} parent=1 // pred_check_branch
      %130 = sbr.rel (0) target = $region65
    $region64: #{layer_rnn_forward.1} parent=1 // pred_region
      %131 = dma.done [#allocation10], 512
    $region65: #{layer_rnn_forward.1} parent=1 // pred_fallthru
      _
    // Predicated region
    $region66: #{layer_rnn_forward.1} parent=1 // pred_check
      _
    $region67: #{layer_rnn_forward.1} parent=1 // pred_check_branch
      %133 = sbr.rel (0) target = $region69
    $region68: #{layer_rnn_forward.1} parent=1 // pred_region
      %134 = dma.done [#allocation10], 16
    $region69: #{layer_rnn_forward.1} parent=1 // pred_fallthru
      _
    // Predicated region
    $region70: #{layer_rnn_forward.1} parent=1 // pred_check
      _
    $region71: #{layer_rnn_forward.1} parent=1 // pred_check_branch
      %136 = sbr.rel (0) target = $region73
    $region72: #{layer_rnn_forward.1} parent=1 // pred_region
      %137 = dma.done [#allocation13], 512
    $region73: #{layer_rnn_forward.1} parent=1 // pred_fallthru
      _
    // Predicated region
    $region74: #{layer_rnn_forward.1} parent=1 // pred_check
      _
    $region75: #{layer_rnn_forward.1} parent=1 // pred_check_branch
      %139 = sbr.rel (0) target = $region77
    $region76: #{layer_rnn_forward.1} parent=1 // pred_region
      %140 = dma.done [#allocation13], 512
    $region77: #{layer_rnn_forward.1} parent=1 // pred_fallthru
      _
    // Predicated region
    $region78: #{layer_rnn_forward.1} parent=1 // pred_check
      _
    $region79: #{layer_rnn_forward.1} parent=1 // pred_check_branch
      %142 = sbr.rel (0) target = $region81
    $region80: #{layer_rnn_forward.1} parent=1 // pred_region
      %143 = dma.done [#allocation16], 16
    $region81: #{layer_rnn_forward.1} parent=1 // pred_fallthru
      _
    %v144 = vld [vmem:[%s0] sm:$0xff]
    %v145 = vld [vmem:[%s0 + $0x8] sm:$0xff]
    %v146 = vld [vmem:[%s0 + $0x10] sm:$0xff]
    %v147 = vld [vmem:[%s0 + $0x18] sm:$0xff]
    %v148 = vld [vmem:[%s0 + $0x20] sm:$0xff]
    %v149 = vld [vmem:[%s0 + $0x28] sm:$0xff]
    %v150 = vld [vmem:[%s0 + $0x30] sm:$0xff]
    %v151 = vld [vmem:[%s0 + $0x38] sm:$0xff]
    %v152 = vld [vmem:[%s1] sm:$0xff]
    %v153 = vld [vmem:[%s1 + $0x8] sm:$0xff]
    %v154 = vld [vmem:[%s1 + $0x10] sm:$0xff]
    %v155 = vld [vmem:[%s1 + $0x18] sm:$0xff]
    %v156 = vld [vmem:[%s1 + $0x20] sm:$0xff]
    %v157 = vld [vmem:[%s1 + $0x28] sm:$0xff]
    %v158 = vld [vmem:[%s1 + $0x30] sm:$0xff]
    %v159 = vld [vmem:[%s1 + $0x38] sm:$0xff]
    %v160 = vld [vmem:[#allocation4] sm:$0xff]
    %v161 = vld [vmem:[#allocation4 + $0x8] sm:$0xff]
    %v162 = vld [vmem:[#allocation4 + $0x10] sm:$0xff]
    %v163 = vld [vmem:[#allocation4 + $0x18] sm:$0xff]
    %v164 = vld [vmem:[#allocation6] sm:$0x1]
    %v166 = vlaneseq
    %v167 = vshrl.u32 %v166, 7
    %v168 = vsub.s32 0, %v167
    %v169 = vrot.slane %v164, %v168
    %vm171 = vcmask 523264
    %v173 = vsel %vm171, %v144, 0
    %v176 = vsel %vm171, %v145, 0
    %v179 = vsel %vm171, %v146, 0
    %v182 = vsel %vm171, %v147, 0
    %v185 = vsel %vm171, %v148, 0
    %v188 = vsel %vm171, %v149, 0
    %v191 = vsel %vm171, %v150, 0
    %v194 = vsel %vm171, %v151, 0
    %196 = vmatprep.subr.mxu0 0.0
    %197 = vmatpush1.msra.mxu0 0.0
    %198 = vmatprep.subr.mxu0 0.0
    %199 = vmatpush1.msra.mxu0 0.0
    %200 = vmatprep.subr.mxu0 0.0
    %201 = vmatpush1.msra.mxu0 0.0
    %202 = vmatprep.subr.mxu0 0.0
    %203 = vmatpush1.msra.mxu0 0.0
    %204 = vmatprep.subr.mxu0 0.0
    %205 = vmatpush1.msra.mxu0 0.0
    %206 = vmatprep.subr.mxu0 0.0
    %207 = vmatpush1.msra.mxu0 0.0
    %208 = vmatprep.subr.mxu0 0.0
    %209 = vmatpush1.msra.mxu0 0.0
    %210 = vmatprep.subr.mxu0 0.0
    %211 = vmatpush1.msra.mxu0 0.0
    %212 = vmatprep.subr.mxu0 0.0
    %213 = vmatpush1.msra.mxu0 %v159
    %214 = vmatprep.subr.mxu0 0.0
    %215 = vmatpush1.msra.mxu0 %v158
    %216 = vmatprep.subr.mxu0 0.0
    %217 = vmatpush1.msra.mxu0 %v157
    %218 = vmatprep.subr.mxu0 0.0
    %219 = vmatpush1.msra.mxu0 %v156
    %220 = vmatprep.subr.mxu0 0.0
    %221 = vmatpush1.msra.mxu0 %v155
    %222 = vmatprep.subr.mxu0 0.0
    %223 = vmatpush1.msra.mxu0 %v154
    %224 = vmatprep.subr.mxu0 0.0
    %225 = vmatpush1.msra.mxu0 %v153
    %226 = vmatprep.subr.mxu0 0.0
    %227 = vmatpush1.msra.mxu0 %v152
    %228 = vmatprep.subr.mxu0 0.0
    %229 = vmatpush2.msra.mxu0 0.0
    %230 = vmatprep.subr.mxu0 0.0
    %231 = vmatpush2.msra.mxu0 0.0
    %232 = vmatprep.subr.mxu0 0.0
    %233 = vmatpush2.msra.mxu0 0.0
    %234 = vmatprep.subr.mxu0 0.0
    %235 = vmatpush2.msra.mxu0 0.0
    %236 = vmatprep.subr.mxu0 0.0
    %237 = vmatpush2.msra.mxu0 0.0
    %238 = vmatprep.subr.mxu0 0.0
    %239 = vmatpush2.msra.mxu0 0.0
    %240 = vmatprep.subr.mxu0 0.0
    %241 = vmatpush2.msra.mxu0 0.0
    %242 = vmatprep.subr.mxu0 0.0
    %243 = vmatpush2.msra.mxu0 0.0
    %244 = vmatprep.subr.mxu0 0.0
    %245 = vmatpush2.msra.mxu0 0.0
    %246 = vmatprep.subr.mxu0 0.0
    %247 = vmatpush2.msra.mxu0 0.0
    %248 = vmatprep.subr.mxu0 0.0
    %249 = vmatpush2.msra.mxu0 0.0
    %250 = vmatprep.subr.mxu0 0.0
    %251 = vmatpush2.msra.mxu0 0.0
    %252 = vmatprep.subr.mxu0 0.0
    %253 = vmatpush2.msra.mxu0 0.0
    %254 = vmatprep.subr.mxu0 0.0
    %255 = vmatpush2.msra.mxu0 0.0
    %256 = vmatprep.subr.mxu0 0.0
    %257 = vmatpush2.msra.mxu0 0.0
    %258 = vmatprep.subr.mxu0 0.0
    %259 = vmatpush2.msra.mxu0 0.0
    %260 = vmatprep.mubr.f32.mxu0 0.0
    %261 = vmatmul.mubr.f32.gmra.mxu0 %v173
    %v262 = vpop.f32.mrf.mxu0
    %v263 = vadd.f32 %v169, %v262
    %v264 = vpop.f32.mrf.mxu0
    %265 = vmatprep.mubr.f32.mxu0 0.0
    %266 = vmatmul.mubr.f32.gmra.mxu0 %v176
    %v267 = vpop.f32.mrf.mxu0
    %v268 = vadd.f32 %v169, %v267
    %v269 = vpop.f32.mrf.mxu0
    %270 = vmatprep.mubr.f32.mxu0 0.0
    %271 = vmatmul.mubr.f32.gmra.mxu0 %v179
    %v272 = vpop.f32.mrf.mxu0
    %v273 = vadd.f32 %v169, %v272
    %v274 = vpop.f32.mrf.mxu0
    %275 = vmatprep.mubr.f32.mxu0 0.0
    %276 = vmatmul.mubr.f32.gmra.mxu0 %v182
    %v277 = vpop.f32.mrf.mxu0
    %v278 = vadd.f32 %v169, %v277
    %v279 = vpop.f32.mrf.mxu0
    %280 = vmatprep.mubr.f32.mxu0 0.0
    %281 = vmatmul.mubr.f32.gmra.mxu0 %v185
    %v282 = vpop.f32.mrf.mxu0
    %v283 = vadd.f32 %v169, %v282
    %v284 = vpop.f32.mrf.mxu0
    %285 = vmatprep.mubr.f32.mxu0 0.0
    %286 = vmatmul.mubr.f32.gmra.mxu0 %v188
    %v287 = vpop.f32.mrf.mxu0
    %v288 = vadd.f32 %v169, %v287
    %v289 = vpop.f32.mrf.mxu0
    %290 = vmatprep.mubr.f32.mxu0 0.0
    %291 = vmatmul.mubr.f32.gmra.mxu0 %v191
    %v292 = vpop.f32.mrf.mxu0
    %v293 = vadd.f32 %v169, %v292
    %v294 = vpop.f32.mrf.mxu0
    %295 = vmatprep.mubr.f32.mxu0 0.0
    %296 = vmatmul.mubr.f32.gmra.mxu0 %v194
    %v297 = vpop.f32.mrf.mxu0
    %v298 = vadd.f32 %v169, %v297
    %v299 = vpop.f32.mrf.mxu0
    %300 = vdwg.mxu0
    %301 = vst [vmem:[#allocation2] sm:$0xff] %v263
    %302 = vst [vmem:[#allocation2 + $0x8] sm:$0xff] %v268
    %303 = vst [vmem:[#allocation2 + $0x10] sm:$0xff] %v273
    %304 = vst [vmem:[#allocation2 + $0x18] sm:$0xff] %v278
    %305 = vst [vmem:[#allocation2 + $0x20] sm:$0xff] %v283
    %306 = vst [vmem:[#allocation2 + $0x28] sm:$0xff] %v288
    %307 = vst [vmem:[#allocation2 + $0x30] sm:$0xff] %v293
    %308 = vst [vmem:[#allocation2 + $0x38] sm:$0xff] %v298
    %v309 = vld [vmem:[#allocation2] sm:$0xff]
    %vm310 = vcmask 261120
    %v312 = vsel %vm310, 0.0, 0
    %314 = vmatprep.subr.mxu0 0.0
    %315 = vmatpush1.msra.mxu0 0.0
    %316 = vmatprep.subr.mxu0 0.0
    %317 = vmatpush1.msra.mxu0 0.0
    %318 = vmatprep.subr.mxu0 0.0
    %319 = vmatpush1.msra.mxu0 0.0
    %320 = vmatprep.subr.mxu0 0.0
    %321 = vmatpush1.msra.mxu0 0.0
    %322 = vmatprep.subr.mxu0 0.0
    %323 = vmatpush1.msra.mxu0 0.0
    %324 = vmatprep.subr.mxu0 0.0
    %325 = vmatpush1.msra.mxu0 0.0
    %326 = vmatprep.subr.mxu0 0.0
    %327 = vmatpush1.msra.mxu0 0.0
    %328 = vmatprep.subr.mxu0 0.0
    %329 = vmatpush1.msra.mxu0 0.0
    %330 = vmatprep.subr.mxu0 0.0
    %331 = vmatpush1.msra.mxu0 0.0
    %332 = vmatprep.subr.mxu0 0.0
    %333 = vmatpush1.msra.mxu0 0.0
    %334 = vmatprep.subr.mxu0 0.0
    %335 = vmatpush1.msra.mxu0 0.0
    %336 = vmatprep.subr.mxu0 0.0
    %337 = vmatpush1.msra.mxu0 0.0
    %338 = vmatprep.subr.mxu0 0.0
    %339 = vmatpush1.msra.mxu0 %v163
    %340 = vmatprep.subr.mxu0 0.0
    %341 = vmatpush1.msra.mxu0 %v162
    %342 = vmatprep.subr.mxu0 0.0
    %343 = vmatpush1.msra.mxu0 %v161
    %344 = vmatprep.subr.mxu0 0.0
    %345 = vmatpush1.msra.mxu0 %v160
    %346 = vmatprep.subr.mxu0 0.0
    %347 = vmatpush2.msra.mxu0 0.0
    %348 = vmatprep.subr.mxu0 0.0
    %349 = vmatpush2.msra.mxu0 0.0
    %350 = vmatprep.subr.mxu0 0.0
    %351 = vmatpush2.msra.mxu0 0.0
    %352 = vmatprep.subr.mxu0 0.0
    %353 = vmatpush2.msra.mxu0 0.0
    %354 = vmatprep.subr.mxu0 0.0
    %355 = vmatpush2.msra.mxu0 0.0
    %356 = vmatprep.subr.mxu0 0.0
    %357 = vmatpush2.msra.mxu0 0.0
    %358 = vmatprep.subr.mxu0 0.0
    %359 = vmatpush2.msra.mxu0 0.0
    %360 = vmatprep.subr.mxu0 0.0
    %361 = vmatpush2.msra.mxu0 0.0
    %362 = vmatprep.subr.mxu0 0.0
    %363 = vmatpush2.msra.mxu0 0.0
    %364 = vmatprep.subr.mxu0 0.0
    %365 = vmatpush2.msra.mxu0 0.0
    %366 = vmatprep.subr.mxu0 0.0
    %367 = vmatpush2.msra.mxu0 0.0
    %368 = vmatprep.subr.mxu0 0.0
    %369 = vmatpush2.msra.mxu0 0.0
    %370 = vmatprep.subr.mxu0 0.0
    %371 = vmatpush2.msra.mxu0 0.0
    %372 = vmatprep.subr.mxu0 0.0
    %373 = vmatpush2.msra.mxu0 0.0
    %374 = vmatprep.subr.mxu0 0.0
    %375 = vmatpush2.msra.mxu0 0.0
    %376 = vmatprep.subr.mxu0 0.0
    %377 = vmatpush2.msra.mxu0 0.0
    %378 = vmatprep.mubr.f32.mxu0 0.0
    %379 = vmatmul.mubr.f32.gmra.mxu0 %v312
    %v380 = vpop.f32.mrf.mxu0
    %v381 = vadd.f32 0.0, %v380
    %v382 = vpop.f32.mrf.mxu0
    %383 = vdwg.mxu0
    %v384 = vadd.f32 %v309, %v381
    %v385 = vxor.u32 %v384, 2147483648
    %v386 = vmul.f32 %v385, 1.442695
    %v387 = vpow.pop %v386
    %v388 = vadd.f32 %v387, 1.0
    %v389 = vrcp.pop %v388
    %v390 = vmul.f32 1.0, %v389
    %v391 = vtanh.pop %v384
    %v392 = vmul.f32 %v390, 0.0
    %394 = vrot.lane.b32.xlu0 %v391, 64
    %v395 = vpop.permute.xlu0 %394
    %v397 = vmul.f32 %v390, %v395
    %399 = vrot.lane.b32.xlu0 %v397, 32
    %v400 = vpop.permute.xlu0 %399
    %v402 = vadd.f32 %v392, %v400
    %v403 = vtanh.pop %v402
    %405 = vrot.lane.b32.xlu0 %v403, 64
    %v406 = vpop.permute.xlu0 %405
    %v408 = vmul.f32 %v390, %v406
    %410 = vrot.lane.b32.xlu0 %v408, 32
    %v411 = vpop.permute.xlu0 %410
    %413 = vst.msk [vmem:[#allocation3] sm:$0xff] %vm310, %v411
    %s414 = scalar_lea.vmem [#allocation2], 8
    %v415 = vld [vmem:[%s414] sm:$0xff]
    %v416 = vsel %vm310, %v411, 0
    %418 = vmatprep.subr.mxu0 0.0
    %419 = vmatpush1.msra.mxu0 0.0
    %420 = vmatprep.subr.mxu0 0.0
    %421 = vmatpush1.msra.mxu0 0.0
    %422 = vmatprep.subr.mxu0 0.0
    %423 = vmatpush1.msra.mxu0 0.0
    %424 = vmatprep.subr.mxu0 0.0
    %425 = vmatpush1.msra.mxu0 0.0
    %426 = vmatprep.subr.mxu0 0.0
    %427 = vmatpush1.msra.mxu0 0.0
    %428 = vmatprep.subr.mxu0 0.0
    %429 = vmatpush1.msra.mxu0 0.0
    %430 = vmatprep.subr.mxu0 0.0
    %431 = vmatpush1.msra.mxu0 0.0
    %432 = vmatprep.subr.mxu0 0.0
    %433 = vmatpush1.msra.mxu0 0.0
    %434 = vmatprep.subr.mxu0 0.0
    %435 = vmatpush1.msra.mxu0 0.0
    %436 = vmatprep.subr.mxu0 0.0
    %437 = vmatpush1.msra.mxu0 0.0
    %438 = vmatprep.subr.mxu0 0.0
    %439 = vmatpush1.msra.mxu0 0.0
    %440 = vmatprep.subr.mxu0 0.0
    %441 = vmatpush1.msra.mxu0 0.0
    %442 = vmatprep.subr.mxu0 0.0
    %443 = vmatpush1.msra.mxu0 %v163
    %444 = vmatprep.subr.mxu0 0.0
    %445 = vmatpush1.msra.mxu0 %v162
    %446 = vmatprep.subr.mxu0 0.0
    %447 = vmatpush1.msra.mxu0 %v161
    %448 = vmatprep.subr.mxu0 0.0
    %449 = vmatpush1.msra.mxu0 %v160
    %450 = vmatprep.subr.mxu0 0.0
    %451 = vmatpush2.msra.mxu0 0.0
    %452 = vmatprep.subr.mxu0 0.0
    %453 = vmatpush2.msra.mxu0 0.0
    %454 = vmatprep.subr.mxu0 0.0
    %455 = vmatpush2.msra.mxu0 0.0
    %456 = vmatprep.subr.mxu0 0.0
    %457 = vmatpush2.msra.mxu0 0.0
    %458 = vmatprep.subr.mxu0 0.0
    %459 = vmatpush2.msra.mxu0 0.0
    %460 = vmatprep.subr.mxu0 0.0
    %461 = vmatpush2.msra.mxu0 0.0
    %462 = vmatprep.subr.mxu0 0.0
    %463 = vmatpush2.msra.mxu0 0.0
    %464 = vmatprep.subr.mxu0 0.0
    %465 = vmatpush2.msra.mxu0 0.0
    %466 = vmatprep.subr.mxu0 0.0
    %467 = vmatpush2.msra.mxu0 0.0
    %468 = vmatprep.subr.mxu0 0.0
    %469 = vmatpush2.msra.mxu0 0.0
    %470 = vmatprep.subr.mxu0 0.0
    %471 = vmatpush2.msra.mxu0 0.0
    %472 = vmatprep.subr.mxu0 0.0
    %473 = vmatpush2.msra.mxu0 0.0
    %474 = vmatprep.subr.mxu0 0.0
    %475 = vmatpush2.msra.mxu0 0.0
    %476 = vmatprep.subr.mxu0 0.0
    %477 = vmatpush2.msra.mxu0 0.0
    %478 = vmatprep.subr.mxu0 0.0
    %479 = vmatpush2.msra.mxu0 0.0
    %480 = vmatprep.subr.mxu0 0.0
    %481 = vmatpush2.msra.mxu0 0.0
    %482 = vmatprep.mubr.f32.mxu0 0.0
    %483 = vmatmul.mubr.f32.gmra.mxu0 %v416
    %v484 = vpop.f32.mrf.mxu0
    %v485 = vadd.f32 0.0, %v484
    %v486 = vpop.f32.mrf.mxu0
    %487 = vdwg.mxu0
    %v488 = vadd.f32 %v415, %v485
    %v489 = vxor.u32 %v488, 2147483648
    %v490 = vmul.f32 %v489, 1.442695
    %v491 = vpow.pop %v490
    %v492 = vadd.f32 %v491, 1.0
    %v493 = vrcp.pop %v492
    %v494 = vmul.f32 1.0, %v493
    %v495 = vtanh.pop %v488
    %v496 = vmul.f32 %v494, %v402
    %498 = vrot.lane.b32.xlu0 %v495, 64
    %v499 = vpop.permute.xlu0 %498
    %v501 = vmul.f32 %v494, %v499
    %503 = vrot.lane.b32.xlu0 %v501, 32
    %v504 = vpop.permute.xlu0 %503
    %v506 = vadd.f32 %v496, %v504
    %v507 = vtanh.pop %v506
    %509 = vrot.lane.b32.xlu0 %v507, 64
    %v510 = vpop.permute.xlu0 %509
    %v512 = vmul.f32 %v494, %v510
    %514 = vrot.lane.b32.xlu0 %v512, 32
    %v515 = vpop.permute.xlu0 %514
    %s517 = scalar_lea.vmem [#allocation3], 8
    %518 = vst.msk [vmem:[%s517] sm:$0xff] %vm310, %v515
    %s519 = scalar_lea.vmem [#allocation2], 16
    %v520 = vld [vmem:[%s519] sm:$0xff]
    %v521 = vsel %vm310, %v515, 0
    %523 = vmatprep.subr.mxu0 0.0
    %524 = vmatpush1.msra.mxu0 0.0
    %525 = vmatprep.subr.mxu0 0.0
    %526 = vmatpush1.msra.mxu0 0.0
    %527 = vmatprep.subr.mxu0 0.0
    %528 = vmatpush1.msra.mxu0 0.0
    %529 = vmatprep.subr.mxu0 0.0
    %530 = vmatpush1.msra.mxu0 0.0
    %531 = vmatprep.subr.mxu0 0.0
    %532 = vmatpush1.msra.mxu0 0.0
    %533 = vmatprep.subr.mxu0 0.0
    %534 = vmatpush1.msra.mxu0 0.0
    %535 = vmatprep.subr.mxu0 0.0
    %536 = vmatpush1.msra.mxu0 0.0
    %537 = vmatprep.subr.mxu0 0.0
    %538 = vmatpush1.msra.mxu0 0.0
    %539 = vmatprep.subr.mxu0 0.0
    %540 = vmatpush1.msra.mxu0 0.0
    %541 = vmatprep.subr.mxu0 0.0
    %542 = vmatpush1.msra.mxu0 0.0
    %543 = vmatprep.subr.mxu0 0.0
    %544 = vmatpush1.msra.mxu0 0.0
    %545 = vmatprep.subr.mxu0 0.0
    %546 = vmatpush1.msra.mxu0 0.0
    %547 = vmatprep.subr.mxu0 0.0
    %548 = vmatpush1.msra.mxu0 %v163
    %549 = vmatprep.subr.mxu0 0.0
    %550 = vmatpush1.msra.mxu0 %v162
    %551 = vmatprep.subr.mxu0 0.0
    %552 = vmatpush1.msra.mxu0 %v161
    %553 = vmatprep.subr.mxu0 0.0
    %554 = vmatpush1.msra.mxu0 %v160
    %555 = vmatprep.subr.mxu0 0.0
    %556 = vmatpush2.msra.mxu0 0.0
    %557 = vmatprep.subr.mxu0 0.0
    %558 = vmatpush2.msra.mxu0 0.0
    %559 = vmatprep.subr.mxu0 0.0
    %560 = vmatpush2.msra.mxu0 0.0
    %561 = vmatprep.subr.mxu0 0.0
    %562 = vmatpush2.msra.mxu0 0.0
    %563 = vmatprep.subr.mxu0 0.0
    %564 = vmatpush2.msra.mxu0 0.0
    %565 = vmatprep.subr.mxu0 0.0
    %566 = vmatpush2.msra.mxu0 0.0
    %567 = vmatprep.subr.mxu0 0.0
    %568 = vmatpush2.msra.mxu0 0.0
    %569 = vmatprep.subr.mxu0 0.0
    %570 = vmatpush2.msra.mxu0 0.0
    %571 = vmatprep.subr.mxu0 0.0
    %572 = vmatpush2.msra.mxu0 0.0
    %573 = vmatprep.subr.mxu0 0.0
    %574 = vmatpush2.msra.mxu0 0.0
    %575 = vmatprep.subr.mxu0 0.0
    %576 = vmatpush2.msra.mxu0 0.0
    %577 = vmatprep.subr.mxu0 0.0
    %578 = vmatpush2.msra.mxu0 0.0
    %579 = vmatprep.subr.mxu0 0.0
    %580 = vmatpush2.msra.mxu0 0.0
    %581 = vmatprep.subr.mxu0 0.0
    %582 = vmatpush2.msra.mxu0 0.0
    %583 = vmatprep.subr.mxu0 0.0
    %584 = vmatpush2.msra.mxu0 0.0
    %585 = vmatprep.subr.mxu0 0.0
    %586 = vmatpush2.msra.mxu0 0.0
    %587 = vmatprep.mubr.f32.mxu0 0.0
    %588 = vmatmul.mubr.f32.gmra.mxu0 %v521
    %v589 = vpop.f32.mrf.mxu0
    %v590 = vadd.f32 0.0, %v589
    %v591 = vpop.f32.mrf.mxu0
    %592 = vdwg.mxu0
    %v593 = vadd.f32 %v520, %v590
    %v594 = vxor.u32 %v593, 2147483648
    %v595 = vmul.f32 %v594, 1.442695
    %v596 = vpow.pop %v595
    %v597 = vadd.f32 %v596, 1.0
    %v598 = vrcp.pop %v597
    %v599 = vmul.f32 1.0, %v598
    %v600 = vtanh.pop %v593
    %v601 = vmul.f32 %v599, %v506
    %603 = vrot.lane.b32.xlu0 %v600, 64
    %v604 = vpop.permute.xlu0 %603
    %v606 = vmul.f32 %v599, %v604
    %608 = vrot.lane.b32.xlu0 %v606, 32
    %v609 = vpop.permute.xlu0 %608
    %v611 = vadd.f32 %v601, %v609
    %v612 = vtanh.pop %v611
    %614 = vrot.lane.b32.xlu0 %v612, 64
    %v615 = vpop.permute.xlu0 %614
    %v617 = vmul.f32 %v599, %v615
    %619 = vrot.lane.b32.xlu0 %v617, 32
    %v620 = vpop.permute.xlu0 %619
    %s622 = scalar_lea.vmem [#allocation3], 16
    %623 = vst.msk [vmem:[%s622] sm:$0xff] %vm310, %v620
    %s624 = scalar_lea.vmem [#allocation2], 24
    %v625 = vld [vmem:[%s624] sm:$0xff]
    %v626 = vsel %vm310, %v620, 0
    %628 = vmatprep.subr.mxu0 0.0
    %629 = vmatpush1.msra.mxu0 0.0
    %630 = vmatprep.subr.mxu0 0.0
    %631 = vmatpush1.msra.mxu0 0.0
    %632 = vmatprep.subr.mxu0 0.0
    %633 = vmatpush1.msra.mxu0 0.0
    %634 = vmatprep.subr.mxu0 0.0
    %635 = vmatpush1.msra.mxu0 0.0
    %636 = vmatprep.subr.mxu0 0.0
    %637 = vmatpush1.msra.mxu0 0.0
    %638 = vmatprep.subr.mxu0 0.0
    %639 = vmatpush1.msra.mxu0 0.0
    %640 = vmatprep.subr.mxu0 0.0
    %641 = vmatpush1.msra.mxu0 0.0
    %642 = vmatprep.subr.mxu0 0.0
    %643 = vmatpush1.msra.mxu0 0.0
    %644 = vmatprep.subr.mxu0 0.0
    %645 = vmatpush1.msra.mxu0 0.0
    %646 = vmatprep.subr.mxu0 0.0
    %647 = vmatpush1.msra.mxu0 0.0
    %648 = vmatprep.subr.mxu0 0.0
    %649 = vmatpush1.msra.mxu0 0.0
    %650 = vmatprep.subr.mxu0 0.0
    %651 = vmatpush1.msra.mxu0 0.0
    %652 = vmatprep.subr.mxu0 0.0
    %653 = vmatpush1.msra.mxu0 %v163
    %654 = vmatprep.subr.mxu0 0.0
    %655 = vmatpush1.msra.mxu0 %v162
    %656 = vmatprep.subr.mxu0 0.0
    %657 = vmatpush1.msra.mxu0 %v161
    %658 = vmatprep.subr.mxu0 0.0
    %659 = vmatpush1.msra.mxu0 %v160
    %660 = vmatprep.subr.mxu0 0.0
    %661 = vmatpush2.msra.mxu0 0.0
    %662 = vmatprep.subr.mxu0 0.0
    %663 = vmatpush2.msra.mxu0 0.0
    %664 = vmatprep.subr.mxu0 0.0
    %665 = vmatpush2.msra.mxu0 0.0
    %666 = vmatprep.subr.mxu0 0.0
    %667 = vmatpush2.msra.mxu0 0.0
    %668 = vmatprep.subr.mxu0 0.0
    %669 = vmatpush2.msra.mxu0 0.0
    %670 = vmatprep.subr.mxu0 0.0
    %671 = vmatpush2.msra.mxu0 0.0
    %672 = vmatprep.subr.mxu0 0.0
    %673 = vmatpush2.msra.mxu0 0.0
    %674 = vmatprep.subr.mxu0 0.0
    %675 = vmatpush2.msra.mxu0 0.0
    %676 = vmatprep.subr.mxu0 0.0
    %677 = vmatpush2.msra.mxu0 0.0
    %678 = vmatprep.subr.mxu0 0.0
    %679 = vmatpush2.msra.mxu0 0.0
    %680 = vmatprep.subr.mxu0 0.0
    %681 = vmatpush2.msra.mxu0 0.0
    %682 = vmatprep.subr.mxu0 0.0
    %683 = vmatpush2.msra.mxu0 0.0
    %684 = vmatprep.subr.mxu0 0.0
    %685 = vmatpush2.msra.mxu0 0.0
    %686 = vmatprep.subr.mxu0 0.0
    %687 = vmatpush2.msra.mxu0 0.0
    %688 = vmatprep.subr.mxu0 0.0
    %689 = vmatpush2.msra.mxu0 0.0
    %690 = vmatprep.subr.mxu0 0.0
    %691 = vmatpush2.msra.mxu0 0.0
    %692 = vmatprep.mubr.f32.mxu0 0.0
    %693 = vmatmul.mubr.f32.gmra.mxu0 %v626
    %v694 = vpop.f32.mrf.mxu0
    %v695 = vadd.f32 0.0, %v694
    %v696 = vpop.f32.mrf.mxu0
    %697 = vdwg.mxu0
    %v698 = vadd.f32 %v625, %v695
    %v699 = vxor.u32 %v698, 2147483648
    %v700 = vmul.f32 %v699, 1.442695
    %v701 = vpow.pop %v700
    %v702 = vadd.f32 %v701, 1.0
    %v703 = vrcp.pop %v702
    %v704 = vmul.f32 1.0, %v703
    %v705 = vtanh.pop %v698
    %v706 = vmul.f32 %v704, %v611
    %708 = vrot.lane.b32.xlu0 %v705, 64
    %v709 = vpop.permute.xlu0 %708
    %v711 = vmul.f32 %v704, %v709
    %713 = vrot.lane.b32.xlu0 %v711, 32
    %v714 = vpop.permute.xlu0 %713
    %v716 = vadd.f32 %v706, %v714
    %v717 = vtanh.pop %v716
    %719 = vrot.lane.b32.xlu0 %v717, 64
    %v720 = vpop.permute.xlu0 %719
    %v722 = vmul.f32 %v704, %v720
    %724 = vrot.lane.b32.xlu0 %v722, 32
    %v725 = vpop.permute.xlu0 %724
    %s727 = scalar_lea.vmem [#allocation3], 24
    %728 = vst.msk [vmem:[%s727] sm:$0xff] %vm310, %v725
    %s729 = scalar_lea.vmem [#allocation2], 32
    %v730 = vld [vmem:[%s729] sm:$0xff]
    %v731 = vsel %vm310, %v725, 0
    %733 = vmatprep.subr.mxu0 0.0
    %734 = vmatpush1.msra.mxu0 0.0
    %735 = vmatprep.subr.mxu0 0.0
    %736 = vmatpush1.msra.mxu0 0.0
    %737 = vmatprep.subr.mxu0 0.0
    %738 = vmatpush1.msra.mxu0 0.0
    %739 = vmatprep.subr.mxu0 0.0
    %740 = vmatpush1.msra.mxu0 0.0
    %741 = vmatprep.subr.mxu0 0.0
    %742 = vmatpush1.msra.mxu0 0.0
    %743 = vmatprep.subr.mxu0 0.0
    %744 = vmatpush1.msra.mxu0 0.0
    %745 = vmatprep.subr.mxu0 0.0
    %746 = vmatpush1.msra.mxu0 0.0
    %747 = vmatprep.subr.mxu0 0.0
    %748 = vmatpush1.msra.mxu0 0.0
    %749 = vmatprep.subr.mxu0 0.0
    %750 = vmatpush1.msra.mxu0 0.0
    %751 = vmatprep.subr.mxu0 0.0
    %752 = vmatpush1.msra.mxu0 0.0
    %753 = vmatprep.subr.mxu0 0.0
    %754 = vmatpush1.msra.mxu0 0.0
    %755 = vmatprep.subr.mxu0 0.0
    %756 = vmatpush1.msra.mxu0 0.0
    %757 = vmatprep.subr.mxu0 0.0
    %758 = vmatpush1.msra.mxu0 %v163
    %759 = vmatprep.subr.mxu0 0.0
    %760 = vmatpush1.msra.mxu0 %v162
    %761 = vmatprep.subr.mxu0 0.0
    %762 = vmatpush1.msra.mxu0 %v161
    %763 = vmatprep.subr.mxu0 0.0
    %764 = vmatpush1.msra.mxu0 %v160
    %765 = vmatprep.subr.mxu0 0.0
    %766 = vmatpush2.msra.mxu0 0.0
    %767 = vmatprep.subr.mxu0 0.0
    %768 = vmatpush2.msra.mxu0 0.0
    %769 = vmatprep.subr.mxu0 0.0
    %770 = vmatpush2.msra.mxu0 0.0
    %771 = vmatprep.subr.mxu0 0.0
    %772 = vmatpush2.msra.mxu0 0.0
    %773 = vmatprep.subr.mxu0 0.0
    %774 = vmatpush2.msra.mxu0 0.0
    %775 = vmatprep.subr.mxu0 0.0
    %776 = vmatpush2.msra.mxu0 0.0
    %777 = vmatprep.subr.mxu0 0.0
    %778 = vmatpush2.msra.mxu0 0.0
    %779 = vmatprep.subr.mxu0 0.0
    %780 = vmatpush2.msra.mxu0 0.0
    %781 = vmatprep.subr.mxu0 0.0
    %782 = vmatpush2.msra.mxu0 0.0
    %783 = vmatprep.subr.mxu0 0.0
    %784 = vmatpush2.msra.mxu0 0.0
    %785 = vmatprep.subr.mxu0 0.0
    %786 = vmatpush2.msra.mxu0 0.0
    %787 = vmatprep.subr.mxu0 0.0
    %788 = vmatpush2.msra.mxu0 0.0
    %789 = vmatprep.subr.mxu0 0.0
    %790 = vmatpush2.msra.mxu0 0.0
    %791 = vmatprep.subr.mxu0 0.0
    %792 = vmatpush2.msra.mxu0 0.0
    %793 = vmatprep.subr.mxu0 0.0
    %794 = vmatpush2.msra.mxu0 0.0
    %795 = vmatprep.subr.mxu0 0.0
    %796 = vmatpush2.msra.mxu0 0.0
    %797 = vmatprep.mubr.f32.mxu0 0.0
    %798 = vmatmul.mubr.f32.gmra.mxu0 %v731
    %v799 = vpop.f32.mrf.mxu0
    %v800 = vadd.f32 0.0, %v799
    %v801 = vpop.f32.mrf.mxu0
    %802 = vdwg.mxu0
    %v803 = vadd.f32 %v730, %v800
    %v804 = vxor.u32 %v803, 2147483648
    %v805 = vmul.f32 %v804, 1.442695
    %v806 = vpow.pop %v805
    %v807 = vadd.f32 %v806, 1.0
    %v808 = vrcp.pop %v807
    %v809 = vmul.f32 1.0, %v808
    %v810 = vtanh.pop %v803
    %v811 = vmul.f32 %v809, %v716
    %813 = vrot.lane.b32.xlu0 %v810, 64
    %v814 = vpop.permute.xlu0 %813
    %v816 = vmul.f32 %v809, %v814
    %818 = vrot.lane.b32.xlu0 %v816, 32
    %v819 = vpop.permute.xlu0 %818
    %v821 = vadd.f32 %v811, %v819
    %v822 = vtanh.pop %v821
    %824 = vrot.lane.b32.xlu0 %v822, 64
    %v825 = vpop.permute.xlu0 %824
    %v827 = vmul.f32 %v809, %v825
    %829 = vrot.lane.b32.xlu0 %v827, 32
    %v830 = vpop.permute.xlu0 %829
    %s832 = scalar_lea.vmem [#allocation3], 32
    %833 = vst.msk [vmem:[%s832] sm:$0xff] %vm310, %v830
    %s834 = scalar_lea.vmem [#allocation2], 40
    %v835 = vld [vmem:[%s834] sm:$0xff]
    %v836 = vsel %vm310, %v830, 0
    %838 = vmatprep.subr.mxu0 0.0
    %839 = vmatpush1.msra.mxu0 0.0
    %840 = vmatprep.subr.mxu0 0.0
    %841 = vmatpush1.msra.mxu0 0.0
    %842 = vmatprep.subr.mxu0 0.0
    %843 = vmatpush1.msra.mxu0 0.0
    %844 = vmatprep.subr.mxu0 0.0
    %845 = vmatpush1.msra.mxu0 0.0
    %846 = vmatprep.subr.mxu0 0.0
    %847 = vmatpush1.msra.mxu0 0.0
    %848 = vmatprep.subr.mxu0 0.0
    %849 = vmatpush1.msra.mxu0 0.0
    %850 = vmatprep.subr.mxu0 0.0
    %851 = vmatpush1.msra.mxu0 0.0
    %852 = vmatprep.subr.mxu0 0.0
    %853 = vmatpush1.msra.mxu0 0.0
    %854 = vmatprep.subr.mxu0 0.0
    %855 = vmatpush1.msra.mxu0 0.0
    %856 = vmatprep.subr.mxu0 0.0
    %857 = vmatpush1.msra.mxu0 0.0
    %858 = vmatprep.subr.mxu0 0.0
    %859 = vmatpush1.msra.mxu0 0.0
    %860 = vmatprep.subr.mxu0 0.0
    %861 = vmatpush1.msra.mxu0 0.0
    %862 = vmatprep.subr.mxu0 0.0
    %863 = vmatpush1.msra.mxu0 %v163
    %864 = vmatprep.subr.mxu0 0.0
    %865 = vmatpush1.msra.mxu0 %v162
    %866 = vmatprep.subr.mxu0 0.0
    %867 = vmatpush1.msra.mxu0 %v161
    %868 = vmatprep.subr.mxu0 0.0
    %869 = vmatpush1.msra.mxu0 %v160
    %870 = vmatprep.subr.mxu0 0.0
    %871 = vmatpush2.msra.mxu0 0.0
    %872 = vmatprep.subr.mxu0 0.0
    %873 = vmatpush2.msra.mxu0 0.0
    %874 = vmatprep.subr.mxu0 0.0
    %875 = vmatpush2.msra.mxu0 0.0
    %876 = vmatprep.subr.mxu0 0.0
    %877 = vmatpush2.msra.mxu0 0.0
    %878 = vmatprep.subr.mxu0 0.0
    %879 = vmatpush2.msra.mxu0 0.0
    %880 = vmatprep.subr.mxu0 0.0
    %881 = vmatpush2.msra.mxu0 0.0
    %882 = vmatprep.subr.mxu0 0.0
    %883 = vmatpush2.msra.mxu0 0.0
    %884 = vmatprep.subr.mxu0 0.0
    %885 = vmatpush2.msra.mxu0 0.0
    %886 = vmatprep.subr.mxu0 0.0
    %887 = vmatpush2.msra.mxu0 0.0
    %888 = vmatprep.subr.mxu0 0.0
    %889 = vmatpush2.msra.mxu0 0.0
    %890 = vmatprep.subr.mxu0 0.0
    %891 = vmatpush2.msra.mxu0 0.0
    %892 = vmatprep.subr.mxu0 0.0
    %893 = vmatpush2.msra.mxu0 0.0
    %894 = vmatprep.subr.mxu0 0.0
    %895 = vmatpush2.msra.mxu0 0.0
    %896 = vmatprep.subr.mxu0 0.0
    %897 = vmatpush2.msra.mxu0 0.0
    %898 = vmatprep.subr.mxu0 0.0
    %899 = vmatpush2.msra.mxu0 0.0
    %900 = vmatprep.subr.mxu0 0.0
    %901 = vmatpush2.msra.mxu0 0.0
    %902 = vmatprep.mubr.f32.mxu0 0.0
    %903 = vmatmul.mubr.f32.gmra.mxu0 %v836
    %v904 = vpop.f32.mrf.mxu0
    %v905 = vadd.f32 0.0, %v904
    %v906 = vpop.f32.mrf.mxu0
    %907 = vdwg.mxu0
    %v908 = vadd.f32 %v835, %v905
    %v909 = vxor.u32 %v908, 2147483648
    %v910 = vmul.f32 %v909, 1.442695
    %v911 = vpow.pop %v910
    %v912 = vadd.f32 %v911, 1.0
    %v913 = vrcp.pop %v912
    %v914 = vmul.f32 1.0, %v913
    %v915 = vtanh.pop %v908
    %v916 = vmul.f32 %v914, %v821
    %918 = vrot.lane.b32.xlu0 %v915, 64
    %v919 = vpop.permute.xlu0 %918
    %v921 = vmul.f32 %v914, %v919
    %923 = vrot.lane.b32.xlu0 %v921, 32
    %v924 = vpop.permute.xlu0 %923
    %v926 = vadd.f32 %v916, %v924
    %v927 = vtanh.pop %v926
    %929 = vrot.lane.b32.xlu0 %v927, 64
    %v930 = vpop.permute.xlu0 %929
    %v932 = vmul.f32 %v914, %v930
    %934 = vrot.lane.b32.xlu0 %v932, 32
    %v935 = vpop.permute.xlu0 %934
    %s937 = scalar_lea.vmem [#allocation3], 40
    %938 = vst.msk [vmem:[%s937] sm:$0xff] %vm310, %v935
    %s939 = scalar_lea.vmem [#allocation2], 48
    %v940 = vld [vmem:[%s939] sm:$0xff]
    %v941 = vsel %vm310, %v935, 0
    %943 = vmatprep.subr.mxu0 0.0
    %944 = vmatpush1.msra.mxu0 0.0
    %945 = vmatprep.subr.mxu0 0.0
    %946 = vmatpush1.msra.mxu0 0.0
    %947 = vmatprep.subr.mxu0 0.0
    %948 = vmatpush1.msra.mxu0 0.0
    %949 = vmatprep.subr.mxu0 0.0
    %950 = vmatpush1.msra.mxu0 0.0
    %951 = vmatprep.subr.mxu0 0.0
    %952 = vmatpush1.msra.mxu0 0.0
    %953 = vmatprep.subr.mxu0 0.0
    %954 = vmatpush1.msra.mxu0 0.0
    %955 = vmatprep.subr.mxu0 0.0
    %956 = vmatpush1.msra.mxu0 0.0
    %957 = vmatprep.subr.mxu0 0.0
    %958 = vmatpush1.msra.mxu0 0.0
    %959 = vmatprep.subr.mxu0 0.0
    %960 = vmatpush1.msra.mxu0 0.0
    %961 = vmatprep.subr.mxu0 0.0
    %962 = vmatpush1.msra.mxu0 0.0
    %963 = vmatprep.subr.mxu0 0.0
    %964 = vmatpush1.msra.mxu0 0.0
    %965 = vmatprep.subr.mxu0 0.0
    %966 = vmatpush1.msra.mxu0 0.0
    %967 = vmatprep.subr.mxu0 0.0
    %968 = vmatpush1.msra.mxu0 %v163
    %969 = vmatprep.subr.mxu0 0.0
    %970 = vmatpush1.msra.mxu0 %v162
    %971 = vmatprep.subr.mxu0 0.0
    %972 = vmatpush1.msra.mxu0 %v161
    %973 = vmatprep.subr.mxu0 0.0
    %974 = vmatpush1.msra.mxu0 %v160
    %975 = vmatprep.subr.mxu0 0.0
    %976 = vmatpush2.msra.mxu0 0.0
    %977 = vmatprep.subr.mxu0 0.0
    %978 = vmatpush2.msra.mxu0 0.0
    %979 = vmatprep.subr.mxu0 0.0
    %980 = vmatpush2.msra.mxu0 0.0
    %981 = vmatprep.subr.mxu0 0.0
    %982 = vmatpush2.msra.mxu0 0.0
    %983 = vmatprep.subr.mxu0 0.0
    %984 = vmatpush2.msra.mxu0 0.0
    %985 = vmatprep.subr.mxu0 0.0
    %986 = vmatpush2.msra.mxu0 0.0
    %987 = vmatprep.subr.mxu0 0.0
    %988 = vmatpush2.msra.mxu0 0.0
    %989 = vmatprep.subr.mxu0 0.0
    %990 = vmatpush2.msra.mxu0 0.0
    %991 = vmatprep.subr.mxu0 0.0
    %992 = vmatpush2.msra.mxu0 0.0
    %993 = vmatprep.subr.mxu0 0.0
    %994 = vmatpush2.msra.mxu0 0.0
    %995 = vmatprep.subr.mxu0 0.0
    %996 = vmatpush2.msra.mxu0 0.0
    %997 = vmatprep.subr.mxu0 0.0
    %998 = vmatpush2.msra.mxu0 0.0
    %999 = vmatprep.subr.mxu0 0.0
    %1000 = vmatpush2.msra.mxu0 0.0
    %1001 = vmatprep.subr.mxu0 0.0
    %1002 = vmatpush2.msra.mxu0 0.0
    %1003 = vmatprep.subr.mxu0 0.0
    %1004 = vmatpush2.msra.mxu0 0.0
    %1005 = vmatprep.subr.mxu0 0.0
    %1006 = vmatpush2.msra.mxu0 0.0
    %1007 = vmatprep.mubr.f32.mxu0 0.0
    %1008 = vmatmul.mubr.f32.gmra.mxu0 %v941
    %v1009 = vpop.f32.mrf.mxu0
    %v1010 = vadd.f32 0.0, %v1009
    %v1011 = vpop.f32.mrf.mxu0
    %1012 = vdwg.mxu0
    %v1013 = vadd.f32 %v940, %v1010
    %v1014 = vxor.u32 %v1013, 2147483648
    %v1015 = vmul.f32 %v1014, 1.442695
    %v1016 = vpow.pop %v1015
    %v1017 = vadd.f32 %v1016, 1.0
    %v1018 = vrcp.pop %v1017
    %v1019 = vmul.f32 1.0, %v1018
    %v1020 = vtanh.pop %v1013
    %v1021 = vmul.f32 %v1019, %v926
    %1023 = vrot.lane.b32.xlu0 %v1020, 64
    %v1024 = vpop.permute.xlu0 %1023
    %v1026 = vmul.f32 %v1019, %v1024
    %1028 = vrot.lane.b32.xlu0 %v1026, 32
    %v1029 = vpop.permute.xlu0 %1028
    %v1031 = vadd.f32 %v1021, %v1029
    %v1032 = vtanh.pop %v1031
    %1034 = vrot.lane.b32.xlu0 %v1032, 64
    %v1035 = vpop.permute.xlu0 %1034
    %v1037 = vmul.f32 %v1019, %v1035
    %1039 = vrot.lane.b32.xlu0 %v1037, 32
    %v1040 = vpop.permute.xlu0 %1039
    %s1042 = scalar_lea.vmem [#allocation3], 48
    %1043 = vst.msk [vmem:[%s1042] sm:$0xff] %vm310, %v1040
    %s1044 = scalar_lea.vmem [#allocation2], 56
    %v1045 = vld [vmem:[%s1044] sm:$0xff]
    %v1046 = vsel %vm310, %v1040, 0
    %1048 = vmatprep.subr.mxu0 0.0
    %1049 = vmatpush1.msra.mxu0 0.0
    %1050 = vmatprep.subr.mxu0 0.0
    %1051 = vmatpush1.msra.mxu0 0.0
    %1052 = vmatprep.subr.mxu0 0.0
    %1053 = vmatpush1.msra.mxu0 0.0
    %1054 = vmatprep.subr.mxu0 0.0
    %1055 = vmatpush1.msra.mxu0 0.0
    %1056 = vmatprep.subr.mxu0 0.0
    %1057 = vmatpush1.msra.mxu0 0.0
    %1058 = vmatprep.subr.mxu0 0.0
    %1059 = vmatpush1.msra.mxu0 0.0
    %1060 = vmatprep.subr.mxu0 0.0
    %1061 = vmatpush1.msra.mxu0 0.0
    %1062 = vmatprep.subr.mxu0 0.0
    %1063 = vmatpush1.msra.mxu0 0.0
    %1064 = vmatprep.subr.mxu0 0.0
    %1065 = vmatpush1.msra.mxu0 0.0
    %1066 = vmatprep.subr.mxu0 0.0
    %1067 = vmatpush1.msra.mxu0 0.0
    %1068 = vmatprep.subr.mxu0 0.0
    %1069 = vmatpush1.msra.mxu0 0.0
    %1070 = vmatprep.subr.mxu0 0.0
    %1071 = vmatpush1.msra.mxu0 0.0
    %1072 = vmatprep.subr.mxu0 0.0
    %1073 = vmatpush1.msra.mxu0 %v163
    %1074 = vmatprep.subr.mxu0 0.0
    %1075 = vmatpush1.msra.mxu0 %v162
    %1076 = vmatprep.subr.mxu0 0.0
    %1077 = vmatpush1.msra.mxu0 %v161
    %1078 = vmatprep.subr.mxu0 0.0
    %1079 = vmatpush1.msra.mxu0 %v160
    %1080 = vmatprep.subr.mxu0 0.0
    %1081 = vmatpush2.msra.mxu0 0.0
    %1082 = vmatprep.subr.mxu0 0.0
    %1083 = vmatpush2.msra.mxu0 0.0
    %1084 = vmatprep.subr.mxu0 0.0
    %1085 = vmatpush2.msra.mxu0 0.0
    %1086 = vmatprep.subr.mxu0 0.0
    %1087 = vmatpush2.msra.mxu0 0.0
    %1088 = vmatprep.subr.mxu0 0.0
    %1089 = vmatpush2.msra.mxu0 0.0
    %1090 = vmatprep.subr.mxu0 0.0
    %1091 = vmatpush2.msra.mxu0 0.0
    %1092 = vmatprep.subr.mxu0 0.0
    %1093 = vmatpush2.msra.mxu0 0.0
    %1094 = vmatprep.subr.mxu0 0.0
    %1095 = vmatpush2.msra.mxu0 0.0
    %1096 = vmatprep.subr.mxu0 0.0
    %1097 = vmatpush2.msra.mxu0 0.0
    %1098 = vmatprep.subr.mxu0 0.0
    %1099 = vmatpush2.msra.mxu0 0.0
    %1100 = vmatprep.subr.mxu0 0.0
    %1101 = vmatpush2.msra.mxu0 0.0
    %1102 = vmatprep.subr.mxu0 0.0
    %1103 = vmatpush2.msra.mxu0 0.0
    %1104 = vmatprep.subr.mxu0 0.0
    %1105 = vmatpush2.msra.mxu0 0.0
    %1106 = vmatprep.subr.mxu0 0.0
    %1107 = vmatpush2.msra.mxu0 0.0
    %1108 = vmatprep.subr.mxu0 0.0
    %1109 = vmatpush2.msra.mxu0 0.0
    %1110 = vmatprep.subr.mxu0 0.0
    %1111 = vmatpush2.msra.mxu0 0.0
    %1112 = vmatprep.mubr.f32.mxu0 0.0
    %1113 = vmatmul.mubr.f32.gmra.mxu0 %v1046
    %v1114 = vpop.f32.mrf.mxu0
    %v1115 = vadd.f32 0.0, %v1114
    %v1116 = vpop.f32.mrf.mxu0
    %1117 = vdwg.mxu0
    %v1118 = vadd.f32 %v1045, %v1115
    %v1119 = vxor.u32 %v1118, 2147483648
    %v1120 = vmul.f32 %v1119, 1.442695
    %v1121 = vpow.pop %v1120
    %v1122 = vadd.f32 %v1121, 1.0
    %v1123 = vrcp.pop %v1122
    %v1124 = vmul.f32 1.0, %v1123
    %v1125 = vtanh.pop %v1118
    %v1126 = vmul.f32 %v1124, %v1031
    %1128 = vrot.lane.b32.xlu0 %v1125, 64
    %v1129 = vpop.permute.xlu0 %1128
    %v1131 = vmul.f32 %v1124, %v1129
    %1133 = vrot.lane.b32.xlu0 %v1131, 32
    %v1134 = vpop.permute.xlu0 %1133
    %v1136 = vadd.f32 %v1126, %v1134
    %v1137 = vtanh.pop %v1136
    %1139 = vrot.lane.b32.xlu0 %v1137, 64
    %v1140 = vpop.permute.xlu0 %1139
    %v1142 = vmul.f32 %v1124, %v1140
    %1144 = vrot.lane.b32.xlu0 %v1142, 32
    %v1145 = vpop.permute.xlu0 %1144
    %s1147 = scalar_lea.vmem [#allocation3], 56
    %1148 = vst.msk [vmem:[%s1147] sm:$0xff] %vm310, %v1145
    %v1149 = vld [vmem:[#allocation3] sm:$0xff]
    %v1150 = vld [vmem:[#allocation3 + $0x8] sm:$0xff]
    %v1151 = vld [vmem:[#allocation3 + $0x10] sm:$0xff]
    %v1152 = vld [vmem:[#allocation3 + $0x18] sm:$0xff]
    %v1153 = vld [vmem:[#allocation3 + $0x20] sm:$0xff]
    %v1154 = vld [vmem:[#allocation3 + $0x28] sm:$0xff]
    %v1155 = vld [vmem:[#allocation3 + $0x30] sm:$0xff]
    %v1156 = vld [vmem:[#allocation3 + $0x38] sm:$0xff]
    %v1157 = vld [vmem:[#allocation8] sm:$0xff]
    %v1158 = vld [vmem:[#allocation8 + $0x8] sm:$0xff]
    %v1159 = vld [vmem:[#allocation8 + $0x10] sm:$0xff]
    %v1160 = vld [vmem:[#allocation8 + $0x18] sm:$0xff]
    %v1161 = vld [vmem:[#allocation9] sm:$0xff]
    %v1162 = vld [vmem:[#allocation9 + $0x8] sm:$0xff]
    %v1163 = vld [vmem:[#allocation9 + $0x10] sm:$0xff]
    %v1164 = vld [vmem:[#allocation9 + $0x18] sm:$0xff]
    %v1165 = vld [vmem:[#allocation11] sm:$0x1]
    %v1167 = vlaneseq
    %v1168 = vshrl.u32 %v1167, 7
    %v1169 = vsub.s32 0, %v1168
    %v1170 = vrot.slane %v1165, %v1169
    %v1173 = vsel %vm310, %v1149, 0
    %v1176 = vsel %vm310, %v1150, 0
    %v1179 = vsel %vm310, %v1151, 0
    %v1182 = vsel %vm310, %v1152, 0
    %v1185 = vsel %vm310, %v1153, 0
    %v1188 = vsel %vm310, %v1154, 0
    %v1191 = vsel %vm310, %v1155, 0
    %v1194 = vsel %vm310, %v1156, 0
    %1196 = vmatprep.subr.mxu0 0.0
    %1197 = vmatpush1.msra.mxu0 0.0
    %1198 = vmatprep.subr.mxu0 0.0
    %1199 = vmatpush1.msra.mxu0 0.0
    %1200 = vmatprep.subr.mxu0 0.0
    %1201 = vmatpush1.msra.mxu0 0.0
    %1202 = vmatprep.subr.mxu0 0.0
    %1203 = vmatpush1.msra.mxu0 0.0
    %1204 = vmatprep.subr.mxu0 0.0
    %1205 = vmatpush1.msra.mxu0 0.0
    %1206 = vmatprep.subr.mxu0 0.0
    %1207 = vmatpush1.msra.mxu0 0.0
    %1208 = vmatprep.subr.mxu0 0.0
    %1209 = vmatpush1.msra.mxu0 0.0
    %1210 = vmatprep.subr.mxu0 0.0
    %1211 = vmatpush1.msra.mxu0 0.0
    %1212 = vmatprep.subr.mxu0 0.0
    %1213 = vmatpush1.msra.mxu0 0.0
    %1214 = vmatprep.subr.mxu0 0.0
    %1215 = vmatpush1.msra.mxu0 0.0
    %1216 = vmatprep.subr.mxu0 0.0
    %1217 = vmatpush1.msra.mxu0 0.0
    %1218 = vmatprep.subr.mxu0 0.0
    %1219 = vmatpush1.msra.mxu0 0.0
    %1220 = vmatprep.subr.mxu0 0.0
    %1221 = vmatpush1.msra.mxu0 %v1160
    %1222 = vmatprep.subr.mxu0 0.0
    %1223 = vmatpush1.msra.mxu0 %v1159
    %1224 = vmatprep.subr.mxu0 0.0
    %1225 = vmatpush1.msra.mxu0 %v1158
    %1226 = vmatprep.subr.mxu0 0.0
    %1227 = vmatpush1.msra.mxu0 %v1157
    %1228 = vmatprep.subr.mxu0 0.0
    %1229 = vmatpush2.msra.mxu0 0.0
    %1230 = vmatprep.subr.mxu0 0.0
    %1231 = vmatpush2.msra.mxu0 0.0
    %1232 = vmatprep.subr.mxu0 0.0
    %1233 = vmatpush2.msra.mxu0 0.0
    %1234 = vmatprep.subr.mxu0 0.0
    %1235 = vmatpush2.msra.mxu0 0.0
    %1236 = vmatprep.subr.mxu0 0.0
    %1237 = vmatpush2.msra.mxu0 0.0
    %1238 = vmatprep.subr.mxu0 0.0
    %1239 = vmatpush2.msra.mxu0 0.0
    %1240 = vmatprep.subr.mxu0 0.0
    %1241 = vmatpush2.msra.mxu0 0.0
    %1242 = vmatprep.subr.mxu0 0.0
    %1243 = vmatpush2.msra.mxu0 0.0
    %1244 = vmatprep.subr.mxu0 0.0
    %1245 = vmatpush2.msra.mxu0 0.0
    %1246 = vmatprep.subr.mxu0 0.0
    %1247 = vmatpush2.msra.mxu0 0.0
    %1248 = vmatprep.subr.mxu0 0.0
    %1249 = vmatpush2.msra.mxu0 0.0
    %1250 = vmatprep.subr.mxu0 0.0
    %1251 = vmatpush2.msra.mxu0 0.0
    %1252 = vmatprep.subr.mxu0 0.0
    %1253 = vmatpush2.msra.mxu0 0.0
    %1254 = vmatprep.subr.mxu0 0.0
    %1255 = vmatpush2.msra.mxu0 0.0
    %1256 = vmatprep.subr.mxu0 0.0
    %1257 = vmatpush2.msra.mxu0 0.0
    %1258 = vmatprep.subr.mxu0 0.0
    %1259 = vmatpush2.msra.mxu0 0.0
    %1260 = vmatprep.mubr.f32.mxu0 0.0
    %1261 = vmatmul.mubr.f32.gmra.mxu0 %v1173
    %v1262 = vpop.f32.mrf.mxu0
    %v1263 = vadd.f32 %v1170, %v1262
    %v1264 = vpop.f32.mrf.mxu0
    %1265 = vmatprep.mubr.f32.mxu0 0.0
    %1266 = vmatmul.mubr.f32.gmra.mxu0 %v1176
    %v1267 = vpop.f32.mrf.mxu0
    %v1268 = vadd.f32 %v1170, %v1267
    %v1269 = vpop.f32.mrf.mxu0
    %1270 = vmatprep.mubr.f32.mxu0 0.0
    %1271 = vmatmul.mubr.f32.gmra.mxu0 %v1179
    %v1272 = vpop.f32.mrf.mxu0
    %v1273 = vadd.f32 %v1170, %v1272
    %v1274 = vpop.f32.mrf.mxu0
    %1275 = vmatprep.mubr.f32.mxu0 0.0
    %1276 = vmatmul.mubr.f32.gmra.mxu0 %v1182
    %v1277 = vpop.f32.mrf.mxu0
    %v1278 = vadd.f32 %v1170, %v1277
    %v1279 = vpop.f32.mrf.mxu0
    %1280 = vmatprep.mubr.f32.mxu0 0.0
    %1281 = vmatmul.mubr.f32.gmra.mxu0 %v1185
    %v1282 = vpop.f32.mrf.mxu0
    %v1283 = vadd.f32 %v1170, %v1282
    %v1284 = vpop.f32.mrf.mxu0
    %1285 = vmatprep.mubr.f32.mxu0 0.0
    %1286 = vmatmul.mubr.f32.gmra.mxu0 %v1188
    %v1287 = vpop.f32.mrf.mxu0
    %v1288 = vadd.f32 %v1170, %v1287
    %v1289 = vpop.f32.mrf.mxu0
    %1290 = vmatprep.mubr.f32.mxu0 0.0
    %1291 = vmatmul.mubr.f32.gmra.mxu0 %v1191
    %v1292 = vpop.f32.mrf.mxu0
    %v1293 = vadd.f32 %v1170, %v1292
    %v1294 = vpop.f32.mrf.mxu0
    %1295 = vmatprep.mubr.f32.mxu0 0.0
    %1296 = vmatmul.mubr.f32.gmra.mxu0 %v1194
    %v1297 = vpop.f32.mrf.mxu0
    %v1298 = vadd.f32 %v1170, %v1297
    %v1299 = vpop.f32.mrf.mxu0
    %1300 = vdwg.mxu0
    %1301 = vst [vmem:[#allocation2] sm:$0xff] %v1263
    %1302 = vst [vmem:[#allocation2 + $0x8] sm:$0xff] %v1268
    %1303 = vst [vmem:[#allocation2 + $0x10] sm:$0xff] %v1273
    %1304 = vst [vmem:[#allocation2 + $0x18] sm:$0xff] %v1278
    %1305 = vst [vmem:[#allocation2 + $0x20] sm:$0xff] %v1283
    %1306 = vst [vmem:[#allocation2 + $0x28] sm:$0xff] %v1288
    %1307 = vst [vmem:[#allocation2 + $0x30] sm:$0xff] %v1293
    %1308 = vst [vmem:[#allocation2 + $0x38] sm:$0xff] %v1298
    %v1309 = vld [vmem:[#allocation2] sm:$0xff]
    %1310 = vmatprep.subr.mxu0 0.0
    %1311 = vmatpush1.msra.mxu0 0.0
    %1312 = vmatprep.subr.mxu0 0.0
    %1313 = vmatpush1.msra.mxu0 0.0
    %1314 = vmatprep.subr.mxu0 0.0
    %1315 = vmatpush1.msra.mxu0 0.0
    %1316 = vmatprep.subr.mxu0 0.0
    %1317 = vmatpush1.msra.mxu0 0.0
    %1318 = vmatprep.subr.mxu0 0.0
    %1319 = vmatpush1.msra.mxu0 0.0
    %1320 = vmatprep.subr.mxu0 0.0
    %1321 = vmatpush1.msra.mxu0 0.0
    %1322 = vmatprep.subr.mxu0 0.0
    %1323 = vmatpush1.msra.mxu0 0.0
    %1324 = vmatprep.subr.mxu0 0.0
    %1325 = vmatpush1.msra.mxu0 0.0
    %1326 = vmatprep.subr.mxu0 0.0
    %1327 = vmatpush1.msra.mxu0 0.0
    %1328 = vmatprep.subr.mxu0 0.0
    %1329 = vmatpush1.msra.mxu0 0.0
    %1330 = vmatprep.subr.mxu0 0.0
    %1331 = vmatpush1.msra.mxu0 0.0
    %1332 = vmatprep.subr.mxu0 0.0
    %1333 = vmatpush1.msra.mxu0 0.0
    %1334 = vmatprep.subr.mxu0 0.0
    %1335 = vmatpush1.msra.mxu0 %v1164
    %1336 = vmatprep.subr.mxu0 0.0
    %1337 = vmatpush1.msra.mxu0 %v1163
    %1338 = vmatprep.subr.mxu0 0.0
    %1339 = vmatpush1.msra.mxu0 %v1162
    %1340 = vmatprep.subr.mxu0 0.0
    %1341 = vmatpush1.msra.mxu0 %v1161
    %1342 = vmatprep.subr.mxu0 0.0
    %1343 = vmatpush2.msra.mxu0 0.0
    %1344 = vmatprep.subr.mxu0 0.0
    %1345 = vmatpush2.msra.mxu0 0.0
    %1346 = vmatprep.subr.mxu0 0.0
    %1347 = vmatpush2.msra.mxu0 0.0
    %1348 = vmatprep.subr.mxu0 0.0
    %1349 = vmatpush2.msra.mxu0 0.0
    %1350 = vmatprep.subr.mxu0 0.0
    %1351 = vmatpush2.msra.mxu0 0.0
    %1352 = vmatprep.subr.mxu0 0.0
    %1353 = vmatpush2.msra.mxu0 0.0
    %1354 = vmatprep.subr.mxu0 0.0
    %1355 = vmatpush2.msra.mxu0 0.0
    %1356 = vmatprep.subr.mxu0 0.0
    %1357 = vmatpush2.msra.mxu0 0.0
    %1358 = vmatprep.subr.mxu0 0.0
    %1359 = vmatpush2.msra.mxu0 0.0
    %1360 = vmatprep.subr.mxu0 0.0
    %1361 = vmatpush2.msra.mxu0 0.0
    %1362 = vmatprep.subr.mxu0 0.0
    %1363 = vmatpush2.msra.mxu0 0.0
    %1364 = vmatprep.subr.mxu0 0.0
    %1365 = vmatpush2.msra.mxu0 0.0
    %1366 = vmatprep.subr.mxu0 0.0
    %1367 = vmatpush2.msra.mxu0 0.0
    %1368 = vmatprep.subr.mxu0 0.0
    %1369 = vmatpush2.msra.mxu0 0.0
    %1370 = vmatprep.subr.mxu0 0.0
    %1371 = vmatpush2.msra.mxu0 0.0
    %1372 = vmatprep.subr.mxu0 0.0
    %1373 = vmatpush2.msra.mxu0 0.0
    %1374 = vmatprep.mubr.f32.mxu0 0.0
    %1375 = vmatmul.mubr.f32.gmra.mxu0 %v312
    %v1376 = vpop.f32.mrf.mxu0
    %v1377 = vadd.f32 0.0, %v1376
    %v1378 = vpop.f32.mrf.mxu0
    %1379 = vdwg.mxu0
    %v1380 = vadd.f32 %v1309, %v1377
    %v1381 = vxor.u32 %v1380, 2147483648
    %v1382 = vmul.f32 %v1381, 1.442695
    %v1383 = vpow.pop %v1382
    %v1384 = vadd.f32 %v1383, 1.0
    %v1385 = vrcp.pop %v1384
    %v1386 = vmul.f32 1.0, %v1385
    %v1387 = vtanh.pop %v1380
    %v1388 = vmul.f32 %v1386, 0.0
    %1390 = vrot.lane.b32.xlu0 %v1387, 64
    %v1391 = vpop.permute.xlu0 %1390
    %v1393 = vmul.f32 %v1386, %v1391
    %1395 = vrot.lane.b32.xlu0 %v1393, 32
    %v1396 = vpop.permute.xlu0 %1395
    %v1398 = vadd.f32 %v1388, %v1396
    %v1399 = vtanh.pop %v1398
    %1401 = vrot.lane.b32.xlu0 %v1399, 64
    %v1402 = vpop.permute.xlu0 %1401
    %v1404 = vmul.f32 %v1386, %v1402
    %1406 = vrot.lane.b32.xlu0 %v1404, 32
    %v1407 = vpop.permute.xlu0 %1406
    %1409 = vst.msk [vmem:[#allocation3] sm:$0xff] %vm310, %v1407
    %v1410 = vld [vmem:[%s414] sm:$0xff]
    %v1411 = vsel %vm310, %v1407, 0
    %1413 = vmatprep.subr.mxu0 0.0
    %1414 = vmatpush1.msra.mxu0 0.0
    %1415 = vmatprep.subr.mxu0 0.0
    %1416 = vmatpush1.msra.mxu0 0.0
    %1417 = vmatprep.subr.mxu0 0.0
    %1418 = vmatpush1.msra.mxu0 0.0
    %1419 = vmatprep.subr.mxu0 0.0
    %1420 = vmatpush1.msra.mxu0 0.0
    %1421 = vmatprep.subr.mxu0 0.0
    %1422 = vmatpush1.msra.mxu0 0.0
    %1423 = vmatprep.subr.mxu0 0.0
    %1424 = vmatpush1.msra.mxu0 0.0
    %1425 = vmatprep.subr.mxu0 0.0
    %1426 = vmatpush1.msra.mxu0 0.0
    %1427 = vmatprep.subr.mxu0 0.0
    %1428 = vmatpush1.msra.mxu0 0.0
    %1429 = vmatprep.subr.mxu0 0.0
    %1430 = vmatpush1.msra.mxu0 0.0
    %1431 = vmatprep.subr.mxu0 0.0
    %1432 = vmatpush1.msra.mxu0 0.0
    %1433 = vmatprep.subr.mxu0 0.0
    %1434 = vmatpush1.msra.mxu0 0.0
    %1435 = vmatprep.subr.mxu0 0.0
    %1436 = vmatpush1.msra.mxu0 0.0
    %1437 = vmatprep.subr.mxu0 0.0
    %1438 = vmatpush1.msra.mxu0 %v1164
    %1439 = vmatprep.subr.mxu0 0.0
    %1440 = vmatpush1.msra.mxu0 %v1163
    %1441 = vmatprep.subr.mxu0 0.0
    %1442 = vmatpush1.msra.mxu0 %v1162
    %1443 = vmatprep.subr.mxu0 0.0
    %1444 = vmatpush1.msra.mxu0 %v1161
    %1445 = vmatprep.subr.mxu0 0.0
    %1446 = vmatpush2.msra.mxu0 0.0
    %1447 = vmatprep.subr.mxu0 0.0
    %1448 = vmatpush2.msra.mxu0 0.0
    %1449 = vmatprep.subr.mxu0 0.0
    %1450 = vmatpush2.msra.mxu0 0.0
    %1451 = vmatprep.subr.mxu0 0.0
    %1452 = vmatpush2.msra.mxu0 0.0
    %1453 = vmatprep.subr.mxu0 0.0
    %1454 = vmatpush2.msra.mxu0 0.0
    %1455 = vmatprep.subr.mxu0 0.0
    %1456 = vmatpush2.msra.mxu0 0.0
    %1457 = vmatprep.subr.mxu0 0.0
    %1458 = vmatpush2.msra.mxu0 0.0
    %1459 = vmatprep.subr.mxu0 0.0
    %1460 = vmatpush2.msra.mxu0 0.0
    %1461 = vmatprep.subr.mxu0 0.0
    %1462 = vmatpush2.msra.mxu0 0.0
    %1463 = vmatprep.subr.mxu0 0.0
    %1464 = vmatpush2.msra.mxu0 0.0
    %1465 = vmatprep.subr.mxu0 0.0
    %1466 = vmatpush2.msra.mxu0 0.0
    %1467 = vmatprep.subr.mxu0 0.0
    %1468 = vmatpush2.msra.mxu0 0.0
    %1469 = vmatprep.subr.mxu0 0.0
    %1470 = vmatpush2.msra.mxu0 0.0
    %1471 = vmatprep.subr.mxu0 0.0
    %1472 = vmatpush2.msra.mxu0 0.0
    %1473 = vmatprep.subr.mxu0 0.0
    %1474 = vmatpush2.msra.mxu0 0.0
    %1475 = vmatprep.subr.mxu0 0.0
    %1476 = vmatpush2.msra.mxu0 0.0
    %1477 = vmatprep.mubr.f32.mxu0 0.0
    %1478 = vmatmul.mubr.f32.gmra.mxu0 %v1411
    %v1479 = vpop.f32.mrf.mxu0
    %v1480 = vadd.f32 0.0, %v1479
    %v1481 = vpop.f32.mrf.mxu0
    %1482 = vdwg.mxu0
    %v1483 = vadd.f32 %v1410, %v1480
    %v1484 = vxor.u32 %v1483, 2147483648
    %v1485 = vmul.f32 %v1484, 1.442695
    %v1486 = vpow.pop %v1485
    %v1487 = vadd.f32 %v1486, 1.0
    %v1488 = vrcp.pop %v1487
    %v1489 = vmul.f32 1.0, %v1488
    %v1490 = vtanh.pop %v1483
    %v1491 = vmul.f32 %v1489, %v1398
    %1493 = vrot.lane.b32.xlu0 %v1490, 64
    %v1494 = vpop.permute.xlu0 %1493
    %v1496 = vmul.f32 %v1489, %v1494
    %1498 = vrot.lane.b32.xlu0 %v1496, 32
    %v1499 = vpop.permute.xlu0 %1498
    %v1501 = vadd.f32 %v1491, %v1499
    %v1502 = vtanh.pop %v1501
    %1504 = vrot.lane.b32.xlu0 %v1502, 64
    %v1505 = vpop.permute.xlu0 %1504
    %v1507 = vmul.f32 %v1489, %v1505
    %1509 = vrot.lane.b32.xlu0 %v1507, 32
    %v1510 = vpop.permute.xlu0 %1509
    %1512 = vst.msk [vmem:[%s517] sm:$0xff] %vm310, %v1510
    %v1513 = vld [vmem:[%s519] sm:$0xff]
    %v1514 = vsel %vm310, %v1510, 0
    %1516 = vmatprep.subr.mxu0 0.0
    %1517 = vmatpush1.msra.mxu0 0.0
    %1518 = vmatprep.subr.mxu0 0.0
    %1519 = vmatpush1.msra.mxu0 0.0
    %1520 = vmatprep.subr.mxu0 0.0
    %1521 = vmatpush1.msra.mxu0 0.0
    %1522 = vmatprep.subr.mxu0 0.0
    %1523 = vmatpush1.msra.mxu0 0.0
    %1524 = vmatprep.subr.mxu0 0.0
    %1525 = vmatpush1.msra.mxu0 0.0
    %1526 = vmatprep.subr.mxu0 0.0
    %1527 = vmatpush1.msra.mxu0 0.0
    %1528 = vmatprep.subr.mxu0 0.0
    %1529 = vmatpush1.msra.mxu0 0.0
    %1530 = vmatprep.subr.mxu0 0.0
    %1531 = vmatpush1.msra.mxu0 0.0
    %1532 = vmatprep.subr.mxu0 0.0
    %1533 = vmatpush1.msra.mxu0 0.0
    %1534 = vmatprep.subr.mxu0 0.0
    %1535 = vmatpush1.msra.mxu0 0.0
    %1536 = vmatprep.subr.mxu0 0.0
    %1537 = vmatpush1.msra.mxu0 0.0
    %1538 = vmatprep.subr.mxu0 0.0
    %1539 = vmatpush1.msra.mxu0 0.0
    %1540 = vmatprep.subr.mxu0 0.0
    %1541 = vmatpush1.msra.mxu0 %v1164
    %1542 = vmatprep.subr.mxu0 0.0
    %1543 = vmatpush1.msra.mxu0 %v1163
    %1544 = vmatprep.subr.mxu0 0.0
    %1545 = vmatpush1.msra.mxu0 %v1162
    %1546 = vmatprep.subr.mxu0 0.0
    %1547 = vmatpush1.msra.mxu0 %v1161
    %1548 = vmatprep.subr.mxu0 0.0
    %1549 = vmatpush2.msra.mxu0 0.0
    %1550 = vmatprep.subr.mxu0 0.0
    %1551 = vmatpush2.msra.mxu0 0.0
    %1552 = vmatprep.subr.mxu0 0.0
    %1553 = vmatpush2.msra.mxu0 0.0
    %1554 = vmatprep.subr.mxu0 0.0
    %1555 = vmatpush2.msra.mxu0 0.0
    %1556 = vmatprep.subr.mxu0 0.0
    %1557 = vmatpush2.msra.mxu0 0.0
    %1558 = vmatprep.subr.mxu0 0.0
    %1559 = vmatpush2.msra.mxu0 0.0
    %1560 = vmatprep.subr.mxu0 0.0
    %1561 = vmatpush2.msra.mxu0 0.0
    %1562 = vmatprep.subr.mxu0 0.0
    %1563 = vmatpush2.msra.mxu0 0.0
    %1564 = vmatprep.subr.mxu0 0.0
    %1565 = vmatpush2.msra.mxu0 0.0
    %1566 = vmatprep.subr.mxu0 0.0
    %1567 = vmatpush2.msra.mxu0 0.0
    %1568 = vmatprep.subr.mxu0 0.0
    %1569 = vmatpush2.msra.mxu0 0.0
    %1570 = vmatprep.subr.mxu0 0.0
    %1571 = vmatpush2.msra.mxu0 0.0
    %1572 = vmatprep.subr.mxu0 0.0
    %1573 = vmatpush2.msra.mxu0 0.0
    %1574 = vmatprep.subr.mxu0 0.0
    %1575 = vmatpush2.msra.mxu0 0.0
    %1576 = vmatprep.subr.mxu0 0.0
    %1577 = vmatpush2.msra.mxu0 0.0
    %1578 = vmatprep.subr.mxu0 0.0
    %1579 = vmatpush2.msra.mxu0 0.0
    %1580 = vmatprep.mubr.f32.mxu0 0.0
    %1581 = vmatmul.mubr.f32.gmra.mxu0 %v1514
    %v1582 = vpop.f32.mrf.mxu0
    %v1583 = vadd.f32 0.0, %v1582
    %v1584 = vpop.f32.mrf.mxu0
    %1585 = vdwg.mxu0
    %v1586 = vadd.f32 %v1513, %v1583
    %v1587 = vxor.u32 %v1586, 2147483648
    %v1588 = vmul.f32 %v1587, 1.442695
    %v1589 = vpow.pop %v1588
    %v1590 = vadd.f32 %v1589, 1.0
    %v1591 = vrcp.pop %v1590
    %v1592 = vmul.f32 1.0, %v1591
    %v1593 = vtanh.pop %v1586
    %v1594 = vmul.f32 %v1592, %v1501
    %1596 = vrot.lane.b32.xlu0 %v1593, 64
    %v1597 = vpop.permute.xlu0 %1596
    %v1599 = vmul.f32 %v1592, %v1597
    %1601 = vrot.lane.b32.xlu0 %v1599, 32
    %v1602 = vpop.permute.xlu0 %1601
    %v1604 = vadd.f32 %v1594, %v1602
    %v1605 = vtanh.pop %v1604
    %1607 = vrot.lane.b32.xlu0 %v1605, 64
    %v1608 = vpop.permute.xlu0 %1607
    %v1610 = vmul.f32 %v1592, %v1608
    %1612 = vrot.lane.b32.xlu0 %v1610, 32
    %v1613 = vpop.permute.xlu0 %1612
    %1615 = vst.msk [vmem:[%s622] sm:$0xff] %vm310, %v1613
    %v1616 = vld [vmem:[%s624] sm:$0xff]
    %v1617 = vsel %vm310, %v1613, 0
    %1619 = vmatprep.subr.mxu0 0.0
    %1620 = vmatpush1.msra.mxu0 0.0
    %1621 = vmatprep.subr.mxu0 0.0
    %1622 = vmatpush1.msra.mxu0 0.0
    %1623 = vmatprep.subr.mxu0 0.0
    %1624 = vmatpush1.msra.mxu0 0.0
    %1625 = vmatprep.subr.mxu0 0.0
    %1626 = vmatpush1.msra.mxu0 0.0
    %1627 = vmatprep.subr.mxu0 0.0
    %1628 = vmatpush1.msra.mxu0 0.0
    %1629 = vmatprep.subr.mxu0 0.0
    %1630 = vmatpush1.msra.mxu0 0.0
    %1631 = vmatprep.subr.mxu0 0.0
    %1632 = vmatpush1.msra.mxu0 0.0
    %1633 = vmatprep.subr.mxu0 0.0
    %1634 = vmatpush1.msra.mxu0 0.0
    %1635 = vmatprep.subr.mxu0 0.0
    %1636 = vmatpush1.msra.mxu0 0.0
    %1637 = vmatprep.subr.mxu0 0.0
    %1638 = vmatpush1.msra.mxu0 0.0
    %1639 = vmatprep.subr.mxu0 0.0
    %1640 = vmatpush1.msra.mxu0 0.0
    %1641 = vmatprep.subr.mxu0 0.0
    %1642 = vmatpush1.msra.mxu0 0.0
    %1643 = vmatprep.subr.mxu0 0.0
    %1644 = vmatpush1.msra.mxu0 %v1164
    %1645 = vmatprep.subr.mxu0 0.0
    %1646 = vmatpush1.msra.mxu0 %v1163
    %1647 = vmatprep.subr.mxu0 0.0
    %1648 = vmatpush1.msra.mxu0 %v1162
    %1649 = vmatprep.subr.mxu0 0.0
    %1650 = vmatpush1.msra.mxu0 %v1161
    %1651 = vmatprep.subr.mxu0 0.0
    %1652 = vmatpush2.msra.mxu0 0.0
    %1653 = vmatprep.subr.mxu0 0.0
    %1654 = vmatpush2.msra.mxu0 0.0
    %1655 = vmatprep.subr.mxu0 0.0
    %1656 = vmatpush2.msra.mxu0 0.0
    %1657 = vmatprep.subr.mxu0 0.0
    %1658 = vmatpush2.msra.mxu0 0.0
    %1659 = vmatprep.subr.mxu0 0.0
    %1660 = vmatpush2.msra.mxu0 0.0
    %1661 = vmatprep.subr.mxu0 0.0
    %1662 = vmatpush2.msra.mxu0 0.0
    %1663 = vmatprep.subr.mxu0 0.0
    %1664 = vmatpush2.msra.mxu0 0.0
    %1665 = vmatprep.subr.mxu0 0.0
    %1666 = vmatpush2.msra.mxu0 0.0
    %1667 = vmatprep.subr.mxu0 0.0
    %1668 = vmatpush2.msra.mxu0 0.0
    %1669 = vmatprep.subr.mxu0 0.0
    %1670 = vmatpush2.msra.mxu0 0.0
    %1671 = vmatprep.subr.mxu0 0.0
    %1672 = vmatpush2.msra.mxu0 0.0
    %1673 = vmatprep.subr.mxu0 0.0
    %1674 = vmatpush2.msra.mxu0 0.0
    %1675 = vmatprep.subr.mxu0 0.0
    %1676 = vmatpush2.msra.mxu0 0.0
    %1677 = vmatprep.subr.mxu0 0.0
    %1678 = vmatpush2.msra.mxu0 0.0
    %1679 = vmatprep.subr.mxu0 0.0
    %1680 = vmatpush2.msra.mxu0 0.0
    %1681 = vmatprep.subr.mxu0 0.0
    %1682 = vmatpush2.msra.mxu0 0.0
    %1683 = vmatprep.mubr.f32.mxu0 0.0
    %1684 = vmatmul.mubr.f32.gmra.mxu0 %v1617
    %v1685 = vpop.f32.mrf.mxu0
    %v1686 = vadd.f32 0.0, %v1685
    %v1687 = vpop.f32.mrf.mxu0
    %1688 = vdwg.mxu0
    %v1689 = vadd.f32 %v1616, %v1686
    %v1690 = vxor.u32 %v1689, 2147483648
    %v1691 = vmul.f32 %v1690, 1.442695
    %v1692 = vpow.pop %v1691
    %v1693 = vadd.f32 %v1692, 1.0
    %v1694 = vrcp.pop %v1693
    %v1695 = vmul.f32 1.0, %v1694
    %v1696 = vtanh.pop %v1689
    %v1697 = vmul.f32 %v1695, %v1604
    %1699 = vrot.lane.b32.xlu0 %v1696, 64
    %v1700 = vpop.permute.xlu0 %1699
    %v1702 = vmul.f32 %v1695, %v1700
    %1704 = vrot.lane.b32.xlu0 %v1702, 32
    %v1705 = vpop.permute.xlu0 %1704
    %v1707 = vadd.f32 %v1697, %v1705
    %v1708 = vtanh.pop %v1707
    %1710 = vrot.lane.b32.xlu0 %v1708, 64
    %v1711 = vpop.permute.xlu0 %1710
    %v1713 = vmul.f32 %v1695, %v1711
    %1715 = vrot.lane.b32.xlu0 %v1713, 32
    %v1716 = vpop.permute.xlu0 %1715
    %1718 = vst.msk [vmem:[%s727] sm:$0xff] %vm310, %v1716
    %v1719 = vld [vmem:[%s729] sm:$0xff]
    %v1720 = vsel %vm310, %v1716, 0
    %1722 = vmatprep.subr.mxu0 0.0
    %1723 = vmatpush1.msra.mxu0 0.0
    %1724 = vmatprep.subr.mxu0 0.0
    %1725 = vmatpush1.msra.mxu0 0.0
    %1726 = vmatprep.subr.mxu0 0.0
    %1727 = vmatpush1.msra.mxu0 0.0
    %1728 = vmatprep.subr.mxu0 0.0
    %1729 = vmatpush1.msra.mxu0 0.0
    %1730 = vmatprep.subr.mxu0 0.0
    %1731 = vmatpush1.msra.mxu0 0.0
    %1732 = vmatprep.subr.mxu0 0.0
    %1733 = vmatpush1.msra.mxu0 0.0
    %1734 = vmatprep.subr.mxu0 0.0
    %1735 = vmatpush1.msra.mxu0 0.0
    %1736 = vmatprep.subr.mxu0 0.0
    %1737 = vmatpush1.msra.mxu0 0.0
    %1738 = vmatprep.subr.mxu0 0.0
    %1739 = vmatpush1.msra.mxu0 0.0
    %1740 = vmatprep.subr.mxu0 0.0
    %1741 = vmatpush1.msra.mxu0 0.0
    %1742 = vmatprep.subr.mxu0 0.0
    %1743 = vmatpush1.msra.mxu0 0.0
    %1744 = vmatprep.subr.mxu0 0.0
    %1745 = vmatpush1.msra.mxu0 0.0
    %1746 = vmatprep.subr.mxu0 0.0
    %1747 = vmatpush1.msra.mxu0 %v1164
    %1748 = vmatprep.subr.mxu0 0.0
    %1749 = vmatpush1.msra.mxu0 %v1163
    %1750 = vmatprep.subr.mxu0 0.0
    %1751 = vmatpush1.msra.mxu0 %v1162
    %1752 = vmatprep.subr.mxu0 0.0
    %1753 = vmatpush1.msra.mxu0 %v1161
    %1754 = vmatprep.subr.mxu0 0.0
    %1755 = vmatpush2.msra.mxu0 0.0
    %1756 = vmatprep.subr.mxu0 0.0
    %1757 = vmatpush2.msra.mxu0 0.0
    %1758 = vmatprep.subr.mxu0 0.0
    %1759 = vmatpush2.msra.mxu0 0.0
    %1760 = vmatprep.subr.mxu0 0.0
    %1761 = vmatpush2.msra.mxu0 0.0
    %1762 = vmatprep.subr.mxu0 0.0
    %1763 = vmatpush2.msra.mxu0 0.0
    %1764 = vmatprep.subr.mxu0 0.0
    %1765 = vmatpush2.msra.mxu0 0.0
    %1766 = vmatprep.subr.mxu0 0.0
    %1767 = vmatpush2.msra.mxu0 0.0
    %1768 = vmatprep.subr.mxu0 0.0
    %1769 = vmatpush2.msra.mxu0 0.0
    %1770 = vmatprep.subr.mxu0 0.0
    %1771 = vmatpush2.msra.mxu0 0.0
    %1772 = vmatprep.subr.mxu0 0.0
    %1773 = vmatpush2.msra.mxu0 0.0
    %1774 = vmatprep.subr.mxu0 0.0
    %1775 = vmatpush2.msra.mxu0 0.0
    %1776 = vmatprep.subr.mxu0 0.0
    %1777 = vmatpush2.msra.mxu0 0.0
    %1778 = vmatprep.subr.mxu0 0.0
    %1779 = vmatpush2.msra.mxu0 0.0
    %1780 = vmatprep.subr.mxu0 0.0
    %1781 = vmatpush2.msra.mxu0 0.0
    %1782 = vmatprep.subr.mxu0 0.0
    %1783 = vmatpush2.msra.mxu0 0.0
    %1784 = vmatprep.subr.mxu0 0.0
    %1785 = vmatpush2.msra.mxu0 0.0
    %1786 = vmatprep.mubr.f32.mxu0 0.0
    %1787 = vmatmul.mubr.f32.gmra.mxu0 %v1720
    %v1788 = vpop.f32.mrf.mxu0
    %v1789 = vadd.f32 0.0, %v1788
    %v1790 = vpop.f32.mrf.mxu0
    %1791 = vdwg.mxu0
    %v1792 = vadd.f32 %v1719, %v1789
    %v1793 = vxor.u32 %v1792, 2147483648
    %v1794 = vmul.f32 %v1793, 1.442695
    %v1795 = vpow.pop %v1794
    %v1796 = vadd.f32 %v1795, 1.0
    %v1797 = vrcp.pop %v1796
    %v1798 = vmul.f32 1.0, %v1797
    %v1799 = vtanh.pop %v1792
    %v1800 = vmul.f32 %v1798, %v1707
    %1802 = vrot.lane.b32.xlu0 %v1799, 64
    %v1803 = vpop.permute.xlu0 %1802
    %v1805 = vmul.f32 %v1798, %v1803
    %1807 = vrot.lane.b32.xlu0 %v1805, 32
    %v1808 = vpop.permute.xlu0 %1807
    %v1810 = vadd.f32 %v1800, %v1808
    %v1811 = vtanh.pop %v1810
    %1813 = vrot.lane.b32.xlu0 %v1811, 64
    %v1814 = vpop.permute.xlu0 %1813
    %v1816 = vmul.f32 %v1798, %v1814
    %1818 = vrot.lane.b32.xlu0 %v1816, 32
    %v1819 = vpop.permute.xlu0 %1818
    %1821 = vst.msk [vmem:[%s832] sm:$0xff] %vm310, %v1819
    %v1822 = vld [vmem:[%s834] sm:$0xff]
    %v1823 = vsel %vm310, %v1819, 0
    %1825 = vmatprep.subr.mxu0 0.0
    %1826 = vmatpush1.msra.mxu0 0.0
    %1827 = vmatprep.subr.mxu0 0.0
    %1828 = vmatpush1.msra.mxu0 0.0
    %1829 = vmatprep.subr.mxu0 0.0
    %1830 = vmatpush1.msra.mxu0 0.0
    %1831 = vmatprep.subr.mxu0 0.0
    %1832 = vmatpush1.msra.mxu0 0.0
    %1833 = vmatprep.subr.mxu0 0.0
    %1834 = vmatpush1.msra.mxu0 0.0
    %1835 = vmatprep.subr.mxu0 0.0
    %1836 = vmatpush1.msra.mxu0 0.0
    %1837 = vmatprep.subr.mxu0 0.0
    %1838 = vmatpush1.msra.mxu0 0.0
    %1839 = vmatprep.subr.mxu0 0.0
    %1840 = vmatpush1.msra.mxu0 0.0
    %1841 = vmatprep.subr.mxu0 0.0
    %1842 = vmatpush1.msra.mxu0 0.0
    %1843 = vmatprep.subr.mxu0 0.0
    %1844 = vmatpush1.msra.mxu0 0.0
    %1845 = vmatprep.subr.mxu0 0.0
    %1846 = vmatpush1.msra.mxu0 0.0
    %1847 = vmatprep.subr.mxu0 0.0
    %1848 = vmatpush1.msra.mxu0 0.0
    %1849 = vmatprep.subr.mxu0 0.0
    %1850 = vmatpush1.msra.mxu0 %v1164
    %1851 = vmatprep.subr.mxu0 0.0
    %1852 = vmatpush1.msra.mxu0 %v1163
    %1853 = vmatprep.subr.mxu0 0.0
    %1854 = vmatpush1.msra.mxu0 %v1162
    %1855 = vmatprep.subr.mxu0 0.0
    %1856 = vmatpush1.msra.mxu0 %v1161
    %1857 = vmatprep.subr.mxu0 0.0
    %1858 = vmatpush2.msra.mxu0 0.0
    %1859 = vmatprep.subr.mxu0 0.0
    %1860 = vmatpush2.msra.mxu0 0.0
    %1861 = vmatprep.subr.mxu0 0.0
    %1862 = vmatpush2.msra.mxu0 0.0
    %1863 = vmatprep.subr.mxu0 0.0
    %1864 = vmatpush2.msra.mxu0 0.0
    %1865 = vmatprep.subr.mxu0 0.0
    %1866 = vmatpush2.msra.mxu0 0.0
    %1867 = vmatprep.subr.mxu0 0.0
    %1868 = vmatpush2.msra.mxu0 0.0
    %1869 = vmatprep.subr.mxu0 0.0
    %1870 = vmatpush2.msra.mxu0 0.0
    %1871 = vmatprep.subr.mxu0 0.0
    %1872 = vmatpush2.msra.mxu0 0.0
    %1873 = vmatprep.subr.mxu0 0.0
    %1874 = vmatpush2.msra.mxu0 0.0
    %1875 = vmatprep.subr.mxu0 0.0
    %1876 = vmatpush2.msra.mxu0 0.0
    %1877 = vmatprep.subr.mxu0 0.0
    %1878 = vmatpush2.msra.mxu0 0.0
    %1879 = vmatprep.subr.mxu0 0.0
    %1880 = vmatpush2.msra.mxu0 0.0
    %1881 = vmatprep.subr.mxu0 0.0
    %1882 = vmatpush2.msra.mxu0 0.0
    %1883 = vmatprep.subr.mxu0 0.0
    %1884 = vmatpush2.msra.mxu0 0.0
    %1885 = vmatprep.subr.mxu0 0.0
    %1886 = vmatpush2.msra.mxu0 0.0
    %1887 = vmatprep.subr.mxu0 0.0
    %1888 = vmatpush2.msra.mxu0 0.0
    %1889 = vmatprep.mubr.f32.mxu0 0.0
    %1890 = vmatmul.mubr.f32.gmra.mxu0 %v1823
    %v1891 = vpop.f32.mrf.mxu0
    %v1892 = vadd.f32 0.0, %v1891
    %v1893 = vpop.f32.mrf.mxu0
    %1894 = vdwg.mxu0
    %v1895 = vadd.f32 %v1822, %v1892
    %v1896 = vxor.u32 %v1895, 2147483648
    %v1897 = vmul.f32 %v1896, 1.442695
    %v1898 = vpow.pop %v1897
    %v1899 = vadd.f32 %v1898, 1.0
    %v1900 = vrcp.pop %v1899
    %v1901 = vmul.f32 1.0, %v1900
    %v1902 = vtanh.pop %v1895
    %v1903 = vmul.f32 %v1901, %v1810
    %1905 = vrot.lane.b32.xlu0 %v1902, 64
    %v1906 = vpop.permute.xlu0 %1905
    %v1908 = vmul.f32 %v1901, %v1906
    %1910 = vrot.lane.b32.xlu0 %v1908, 32
    %v1911 = vpop.permute.xlu0 %1910
    %v1913 = vadd.f32 %v1903, %v1911
    %v1914 = vtanh.pop %v1913
    %1916 = vrot.lane.b32.xlu0 %v1914, 64
    %v1917 = vpop.permute.xlu0 %1916
    %v1919 = vmul.f32 %v1901, %v1917
    %1921 = vrot.lane.b32.xlu0 %v1919, 32
    %v1922 = vpop.permute.xlu0 %1921
    %1924 = vst.msk [vmem:[%s937] sm:$0xff] %vm310, %v1922
    %v1925 = vld [vmem:[%s939] sm:$0xff]
    %v1926 = vsel %vm310, %v1922, 0
    %1928 = vmatprep.subr.mxu0 0.0
    %1929 = vmatpush1.msra.mxu0 0.0
    %1930 = vmatprep.subr.mxu0 0.0
    %1931 = vmatpush1.msra.mxu0 0.0
    %1932 = vmatprep.subr.mxu0 0.0
    %1933 = vmatpush1.msra.mxu0 0.0
    %1934 = vmatprep.subr.mxu0 0.0
    %1935 = vmatpush1.msra.mxu0 0.0
    %1936 = vmatprep.subr.mxu0 0.0
    %1937 = vmatpush1.msra.mxu0 0.0
    %1938 = vmatprep.subr.mxu0 0.0
    %1939 = vmatpush1.msra.mxu0 0.0
    %1940 = vmatprep.subr.mxu0 0.0
    %1941 = vmatpush1.msra.mxu0 0.0
    %1942 = vmatprep.subr.mxu0 0.0
    %1943 = vmatpush1.msra.mxu0 0.0
    %1944 = vmatprep.subr.mxu0 0.0
    %1945 = vmatpush1.msra.mxu0 0.0
    %1946 = vmatprep.subr.mxu0 0.0
    %1947 = vmatpush1.msra.mxu0 0.0
    %1948 = vmatprep.subr.mxu0 0.0
    %1949 = vmatpush1.msra.mxu0 0.0
    %1950 = vmatprep.subr.mxu0 0.0
    %1951 = vmatpush1.msra.mxu0 0.0
    %1952 = vmatprep.subr.mxu0 0.0
    %1953 = vmatpush1.msra.mxu0 %v1164
    %1954 = vmatprep.subr.mxu0 0.0
    %1955 = vmatpush1.msra.mxu0 %v1163
    %1956 = vmatprep.subr.mxu0 0.0
    %1957 = vmatpush1.msra.mxu0 %v1162
    %1958 = vmatprep.subr.mxu0 0.0
    %1959 = vmatpush1.msra.mxu0 %v1161
    %1960 = vmatprep.subr.mxu0 0.0
    %1961 = vmatpush2.msra.mxu0 0.0
    %1962 = vmatprep.subr.mxu0 0.0
    %1963 = vmatpush2.msra.mxu0 0.0
    %1964 = vmatprep.subr.mxu0 0.0
    %1965 = vmatpush2.msra.mxu0 0.0
    %1966 = vmatprep.subr.mxu0 0.0
    %1967 = vmatpush2.msra.mxu0 0.0
    %1968 = vmatprep.subr.mxu0 0.0
    %1969 = vmatpush2.msra.mxu0 0.0
    %1970 = vmatprep.subr.mxu0 0.0
    %1971 = vmatpush2.msra.mxu0 0.0
    %1972 = vmatprep.subr.mxu0 0.0
    %1973 = vmatpush2.msra.mxu0 0.0
    %1974 = vmatprep.subr.mxu0 0.0
    %1975 = vmatpush2.msra.mxu0 0.0
    %1976 = vmatprep.subr.mxu0 0.0
    %1977 = vmatpush2.msra.mxu0 0.0
    %1978 = vmatprep.subr.mxu0 0.0
    %1979 = vmatpush2.msra.mxu0 0.0
    %1980 = vmatprep.subr.mxu0 0.0
    %1981 = vmatpush2.msra.mxu0 0.0
    %1982 = vmatprep.subr.mxu0 0.0
    %1983 = vmatpush2.msra.mxu0 0.0
    %1984 = vmatprep.subr.mxu0 0.0
    %1985 = vmatpush2.msra.mxu0 0.0
    %1986 = vmatprep.subr.mxu0 0.0
    %1987 = vmatpush2.msra.mxu0 0.0
    %1988 = vmatprep.subr.mxu0 0.0
    %1989 = vmatpush2.msra.mxu0 0.0
    %1990 = vmatprep.subr.mxu0 0.0
    %1991 = vmatpush2.msra.mxu0 0.0
    %1992 = vmatprep.mubr.f32.mxu0 0.0
    %1993 = vmatmul.mubr.f32.gmra.mxu0 %v1926
    %v1994 = vpop.f32.mrf.mxu0
    %v1995 = vadd.f32 0.0, %v1994
    %v1996 = vpop.f32.mrf.mxu0
    %1997 = vdwg.mxu0
    %v1998 = vadd.f32 %v1925, %v1995
    %v1999 = vxor.u32 %v1998, 2147483648
    %v2000 = vmul.f32 %v1999, 1.442695
    %v2001 = vpow.pop %v2000
    %v2002 = vadd.f32 %v2001, 1.0
    %v2003 = vrcp.pop %v2002
    %v2004 = vmul.f32 1.0, %v2003
    %v2005 = vtanh.pop %v1998
    %v2006 = vmul.f32 %v2004, %v1913
    %2008 = vrot.lane.b32.xlu0 %v2005, 64
    %v2009 = vpop.permute.xlu0 %2008
    %v2011 = vmul.f32 %v2004, %v2009
    %2013 = vrot.lane.b32.xlu0 %v2011, 32
    %v2014 = vpop.permute.xlu0 %2013
    %v2016 = vadd.f32 %v2006, %v2014
    %v2017 = vtanh.pop %v2016
    %2019 = vrot.lane.b32.xlu0 %v2017, 64
    %v2020 = vpop.permute.xlu0 %2019
    %v2022 = vmul.f32 %v2004, %v2020
    %2024 = vrot.lane.b32.xlu0 %v2022, 32
    %v2025 = vpop.permute.xlu0 %2024
    %2027 = vst.msk [vmem:[%s1042] sm:$0xff] %vm310, %v2025
    %v2028 = vld [vmem:[%s1044] sm:$0xff]
    %v2029 = vsel %vm310, %v2025, 0
    %2031 = vmatprep.subr.mxu0 0.0
    %2032 = vmatpush1.msra.mxu0 0.0
    %2033 = vmatprep.subr.mxu0 0.0
    %2034 = vmatpush1.msra.mxu0 0.0
    %2035 = vmatprep.subr.mxu0 0.0
    %2036 = vmatpush1.msra.mxu0 0.0
    %2037 = vmatprep.subr.mxu0 0.0
    %2038 = vmatpush1.msra.mxu0 0.0
    %2039 = vmatprep.subr.mxu0 0.0
    %2040 = vmatpush1.msra.mxu0 0.0
    %2041 = vmatprep.subr.mxu0 0.0
    %2042 = vmatpush1.msra.mxu0 0.0
    %2043 = vmatprep.subr.mxu0 0.0
    %2044 = vmatpush1.msra.mxu0 0.0
    %2045 = vmatprep.subr.mxu0 0.0
    %2046 = vmatpush1.msra.mxu0 0.0
    %2047 = vmatprep.subr.mxu0 0.0
    %2048 = vmatpush1.msra.mxu0 0.0
    %2049 = vmatprep.subr.mxu0 0.0
    %2050 = vmatpush1.msra.mxu0 0.0
    %2051 = vmatprep.subr.mxu0 0.0
    %2052 = vmatpush1.msra.mxu0 0.0
    %2053 = vmatprep.subr.mxu0 0.0
    %2054 = vmatpush1.msra.mxu0 0.0
    %2055 = vmatprep.subr.mxu0 0.0
    %2056 = vmatpush1.msra.mxu0 %v1164
    %2057 = vmatprep.subr.mxu0 0.0
    %2058 = vmatpush1.msra.mxu0 %v1163
    %2059 = vmatprep.subr.mxu0 0.0
    %2060 = vmatpush1.msra.mxu0 %v1162
    %2061 = vmatprep.subr.mxu0 0.0
    %2062 = vmatpush1.msra.mxu0 %v1161
    %2063 = vmatprep.subr.mxu0 0.0
    %2064 = vmatpush2.msra.mxu0 0.0
    %2065 = vmatprep.subr.mxu0 0.0
    %2066 = vmatpush2.msra.mxu0 0.0
    %2067 = vmatprep.subr.mxu0 0.0
    %2068 = vmatpush2.msra.mxu0 0.0
    %2069 = vmatprep.subr.mxu0 0.0
    %2070 = vmatpush2.msra.mxu0 0.0
    %2071 = vmatprep.subr.mxu0 0.0
    %2072 = vmatpush2.msra.mxu0 0.0
    %2073 = vmatprep.subr.mxu0 0.0
    %2074 = vmatpush2.msra.mxu0 0.0
    %2075 = vmatprep.subr.mxu0 0.0
    %2076 = vmatpush2.msra.mxu0 0.0
    %2077 = vmatprep.subr.mxu0 0.0
    %2078 = vmatpush2.msra.mxu0 0.0
    %2079 = vmatprep.subr.mxu0 0.0
    %2080 = vmatpush2.msra.mxu0 0.0
    %2081 = vmatprep.subr.mxu0 0.0
    %2082 = vmatpush2.msra.mxu0 0.0
    %2083 = vmatprep.subr.mxu0 0.0
    %2084 = vmatpush2.msra.mxu0 0.0
    %2085 = vmatprep.subr.mxu0 0.0
    %2086 = vmatpush2.msra.mxu0 0.0
    %2087 = vmatprep.subr.mxu0 0.0
    %2088 = vmatpush2.msra.mxu0 0.0
    %2089 = vmatprep.subr.mxu0 0.0
    %2090 = vmatpush2.msra.mxu0 0.0
    %2091 = vmatprep.subr.mxu0 0.0
    %2092 = vmatpush2.msra.mxu0 0.0
    %2093 = vmatprep.subr.mxu0 0.0
    %2094 = vmatpush2.msra.mxu0 0.0
    %2095 = vmatprep.mubr.f32.mxu0 0.0
    %2096 = vmatmul.mubr.f32.gmra.mxu0 %v2029
    %v2097 = vpop.f32.mrf.mxu0
    %v2098 = vadd.f32 0.0, %v2097
    %v2099 = vpop.f32.mrf.mxu0
    %2100 = vdwg.mxu0
    %v2101 = vadd.f32 %v2028, %v2098
    %v2102 = vxor.u32 %v2101, 2147483648
    %v2103 = vmul.f32 %v2102, 1.442695
    %v2104 = vpow.pop %v2103
    %v2105 = vadd.f32 %v2104, 1.0
    %v2106 = vrcp.pop %v2105
    %v2107 = vmul.f32 1.0, %v2106
    %v2108 = vtanh.pop %v2101
    %v2109 = vmul.f32 %v2107, %v2016
    %2111 = vrot.lane.b32.xlu0 %v2108, 64
    %v2112 = vpop.permute.xlu0 %2111
    %v2114 = vmul.f32 %v2107, %v2112
    %2116 = vrot.lane.b32.xlu0 %v2114, 32
    %v2117 = vpop.permute.xlu0 %2116
    %v2119 = vadd.f32 %v2109, %v2117
    %v2120 = vtanh.pop %v2119
    %2122 = vrot.lane.b32.xlu0 %v2120, 64
    %v2123 = vpop.permute.xlu0 %2122
    %v2125 = vmul.f32 %v2107, %v2123
    %2127 = vrot.lane.b32.xlu0 %v2125, 32
    %v2128 = vpop.permute.xlu0 %2127
    %2130 = vst.msk [vmem:[%s1147] sm:$0xff] %vm310, %v2128
    %v2131 = vld [vmem:[#allocation3] sm:$0xff]
    %v2132 = vld [vmem:[#allocation3 + $0x8] sm:$0xff]
    %v2133 = vld [vmem:[#allocation3 + $0x10] sm:$0xff]
    %v2134 = vld [vmem:[#allocation3 + $0x18] sm:$0xff]
    %v2135 = vld [vmem:[#allocation3 + $0x20] sm:$0xff]
    %v2136 = vld [vmem:[#allocation3 + $0x28] sm:$0xff]
    %v2137 = vld [vmem:[#allocation3 + $0x30] sm:$0xff]
    %v2138 = vld [vmem:[#allocation3 + $0x38] sm:$0xff]
    %v2139 = vld [vmem:[#allocation12] sm:$0xff]
    %v2140 = vld [vmem:[#allocation12 + $0x8] sm:$0xff]
    %v2141 = vld [vmem:[#allocation12 + $0x10] sm:$0xff]
    %v2142 = vld [vmem:[#allocation12 + $0x18] sm:$0xff]
    %v2143 = vld [vmem:[#allocation14] sm:$0xff]
    %v2144 = vld [vmem:[#allocation14 + $0x8] sm:$0xff]
    %v2145 = vld [vmem:[#allocation14 + $0x10] sm:$0xff]
    %v2146 = vld [vmem:[#allocation14 + $0x18] sm:$0xff]
    %v2147 = vld [vmem:[#allocation15] sm:$0x1]
    %v2149 = vlaneseq
    %v2150 = vshrl.u32 %v2149, 7
    %v2151 = vsub.s32 0, %v2150
    %v2152 = vrot.slane %v2147, %v2151
    %v2155 = vsel %vm310, %v2131, 0
    %v2158 = vsel %vm310, %v2132, 0
    %v2161 = vsel %vm310, %v2133, 0
    %v2164 = vsel %vm310, %v2134, 0
    %v2167 = vsel %vm310, %v2135, 0
    %v2170 = vsel %vm310, %v2136, 0
    %v2173 = vsel %vm310, %v2137, 0
    %v2176 = vsel %vm310, %v2138, 0
    %2178 = vmatprep.subr.mxu0 0.0
    %2179 = vmatpush1.msra.mxu0 0.0
    %2180 = vmatprep.subr.mxu0 0.0
    %2181 = vmatpush1.msra.mxu0 0.0
    %2182 = vmatprep.subr.mxu0 0.0
    %2183 = vmatpush1.msra.mxu0 0.0
    %2184 = vmatprep.subr.mxu0 0.0
    %2185 = vmatpush1.msra.mxu0 0.0
    %2186 = vmatprep.subr.mxu0 0.0
    %2187 = vmatpush1.msra.mxu0 0.0
    %2188 = vmatprep.subr.mxu0 0.0
    %2189 = vmatpush1.msra.mxu0 0.0
    %2190 = vmatprep.subr.mxu0 0.0
    %2191 = vmatpush1.msra.mxu0 0.0
    %2192 = vmatprep.subr.mxu0 0.0
    %2193 = vmatpush1.msra.mxu0 0.0
    %2194 = vmatprep.subr.mxu0 0.0
    %2195 = vmatpush1.msra.mxu0 0.0
    %2196 = vmatprep.subr.mxu0 0.0
    %2197 = vmatpush1.msra.mxu0 0.0
    %2198 = vmatprep.subr.mxu0 0.0
    %2199 = vmatpush1.msra.mxu0 0.0
    %2200 = vmatprep.subr.mxu0 0.0
    %2201 = vmatpush1.msra.mxu0 0.0
    %2202 = vmatprep.subr.mxu0 0.0
    %2203 = vmatpush1.msra.mxu0 %v2142
    %2204 = vmatprep.subr.mxu0 0.0
    %2205 = vmatpush1.msra.mxu0 %v2141
    %2206 = vmatprep.subr.mxu0 0.0
    %2207 = vmatpush1.msra.mxu0 %v2140
    %2208 = vmatprep.subr.mxu0 0.0
    %2209 = vmatpush1.msra.mxu0 %v2139
    %2210 = vmatprep.subr.mxu0 0.0
    %2211 = vmatpush2.msra.mxu0 0.0
    %2212 = vmatprep.subr.mxu0 0.0
    %2213 = vmatpush2.msra.mxu0 0.0
    %2214 = vmatprep.subr.mxu0 0.0
    %2215 = vmatpush2.msra.mxu0 0.0
    %2216 = vmatprep.subr.mxu0 0.0
    %2217 = vmatpush2.msra.mxu0 0.0
    %2218 = vmatprep.subr.mxu0 0.0
    %2219 = vmatpush2.msra.mxu0 0.0
    %2220 = vmatprep.subr.mxu0 0.0
    %2221 = vmatpush2.msra.mxu0 0.0
    %2222 = vmatprep.subr.mxu0 0.0
    %2223 = vmatpush2.msra.mxu0 0.0
    %2224 = vmatprep.subr.mxu0 0.0
    %2225 = vmatpush2.msra.mxu0 0.0
    %2226 = vmatprep.subr.mxu0 0.0
    %2227 = vmatpush2.msra.mxu0 0.0
    %2228 = vmatprep.subr.mxu0 0.0
    %2229 = vmatpush2.msra.mxu0 0.0
    %2230 = vmatprep.subr.mxu0 0.0
    %2231 = vmatpush2.msra.mxu0 0.0
    %2232 = vmatprep.subr.mxu0 0.0
    %2233 = vmatpush2.msra.mxu0 0.0
    %2234 = vmatprep.subr.mxu0 0.0
    %2235 = vmatpush2.msra.mxu0 0.0
    %2236 = vmatprep.subr.mxu0 0.0
    %2237 = vmatpush2.msra.mxu0 0.0
    %2238 = vmatprep.subr.mxu0 0.0
    %2239 = vmatpush2.msra.mxu0 0.0
    %2240 = vmatprep.subr.mxu0 0.0
    %2241 = vmatpush2.msra.mxu0 0.0
    %2242 = vmatprep.mubr.f32.mxu0 0.0
    %2243 = vmatmul.mubr.f32.gmra.mxu0 %v2155
    %v2244 = vpop.f32.mrf.mxu0
    %v2245 = vadd.f32 %v2152, %v2244
    %v2246 = vpop.f32.mrf.mxu0
    %2247 = vmatprep.mubr.f32.mxu0 0.0
    %2248 = vmatmul.mubr.f32.gmra.mxu0 %v2158
    %v2249 = vpop.f32.mrf.mxu0
    %v2250 = vadd.f32 %v2152, %v2249
    %v2251 = vpop.f32.mrf.mxu0
    %2252 = vmatprep.mubr.f32.mxu0 0.0
    %2253 = vmatmul.mubr.f32.gmra.mxu0 %v2161
    %v2254 = vpop.f32.mrf.mxu0
    %v2255 = vadd.f32 %v2152, %v2254
    %v2256 = vpop.f32.mrf.mxu0
    %2257 = vmatprep.mubr.f32.mxu0 0.0
    %2258 = vmatmul.mubr.f32.gmra.mxu0 %v2164
    %v2259 = vpop.f32.mrf.mxu0
    %v2260 = vadd.f32 %v2152, %v2259
    %v2261 = vpop.f32.mrf.mxu0
    %2262 = vmatprep.mubr.f32.mxu0 0.0
    %2263 = vmatmul.mubr.f32.gmra.mxu0 %v2167
    %v2264 = vpop.f32.mrf.mxu0
    %v2265 = vadd.f32 %v2152, %v2264
    %v2266 = vpop.f32.mrf.mxu0
    %2267 = vmatprep.mubr.f32.mxu0 0.0
    %2268 = vmatmul.mubr.f32.gmra.mxu0 %v2170
    %v2269 = vpop.f32.mrf.mxu0
    %v2270 = vadd.f32 %v2152, %v2269
    %v2271 = vpop.f32.mrf.mxu0
    %2272 = vmatprep.mubr.f32.mxu0 0.0
    %2273 = vmatmul.mubr.f32.gmra.mxu0 %v2173
    %v2274 = vpop.f32.mrf.mxu0
    %v2275 = vadd.f32 %v2152, %v2274
    %v2276 = vpop.f32.mrf.mxu0
    %2277 = vmatprep.mubr.f32.mxu0 0.0
    %2278 = vmatmul.mubr.f32.gmra.mxu0 %v2176
    %v2279 = vpop.f32.mrf.mxu0
    %v2280 = vadd.f32 %v2152, %v2279
    %v2281 = vpop.f32.mrf.mxu0
    %2282 = vdwg.mxu0
    %2283 = vst [vmem:[#allocation2] sm:$0xff] %v2245
    %2284 = vst [vmem:[#allocation2 + $0x8] sm:$0xff] %v2250
    %2285 = vst [vmem:[#allocation2 + $0x10] sm:$0xff] %v2255
    %2286 = vst [vmem:[#allocation2 + $0x18] sm:$0xff] %v2260
    %2287 = vst [vmem:[#allocation2 + $0x20] sm:$0xff] %v2265
    %2288 = vst [vmem:[#allocation2 + $0x28] sm:$0xff] %v2270
    %2289 = vst [vmem:[#allocation2 + $0x30] sm:$0xff] %v2275
    %2290 = vst [vmem:[#allocation2 + $0x38] sm:$0xff] %v2280
    %v2291 = vld [vmem:[#allocation2] sm:$0xff]
    %2292 = vmatprep.subr.mxu0 0.0
    %2293 = vmatpush1.msra.mxu0 0.0
    %2294 = vmatprep.subr.mxu0 0.0
    %2295 = vmatpush1.msra.mxu0 0.0
    %2296 = vmatprep.subr.mxu0 0.0
    %2297 = vmatpush1.msra.mxu0 0.0
    %2298 = vmatprep.subr.mxu0 0.0
    %2299 = vmatpush1.msra.mxu0 0.0
    %2300 = vmatprep.subr.mxu0 0.0
    %2301 = vmatpush1.msra.mxu0 0.0
    %2302 = vmatprep.subr.mxu0 0.0
    %2303 = vmatpush1.msra.mxu0 0.0
    %2304 = vmatprep.subr.mxu0 0.0
    %2305 = vmatpush1.msra.mxu0 0.0
    %2306 = vmatprep.subr.mxu0 0.0
    %2307 = vmatpush1.msra.mxu0 0.0
    %2308 = vmatprep.subr.mxu0 0.0
    %2309 = vmatpush1.msra.mxu0 0.0
    %2310 = vmatprep.subr.mxu0 0.0
    %2311 = vmatpush1.msra.mxu0 0.0
    %2312 = vmatprep.subr.mxu0 0.0
    %2313 = vmatpush1.msra.mxu0 0.0
    %2314 = vmatprep.subr.mxu0 0.0
    %2315 = vmatpush1.msra.mxu0 0.0
    %2316 = vmatprep.subr.mxu0 0.0
    %2317 = vmatpush1.msra.mxu0 %v2146
    %2318 = vmatprep.subr.mxu0 0.0
    %2319 = vmatpush1.msra.mxu0 %v2145
    %2320 = vmatprep.subr.mxu0 0.0
    %2321 = vmatpush1.msra.mxu0 %v2144
    %2322 = vmatprep.subr.mxu0 0.0
    %2323 = vmatpush1.msra.mxu0 %v2143
    %2324 = vmatprep.subr.mxu0 0.0
    %2325 = vmatpush2.msra.mxu0 0.0
    %2326 = vmatprep.subr.mxu0 0.0
    %2327 = vmatpush2.msra.mxu0 0.0
    %2328 = vmatprep.subr.mxu0 0.0
    %2329 = vmatpush2.msra.mxu0 0.0
    %2330 = vmatprep.subr.mxu0 0.0
    %2331 = vmatpush2.msra.mxu0 0.0
    %2332 = vmatprep.subr.mxu0 0.0
    %2333 = vmatpush2.msra.mxu0 0.0
    %2334 = vmatprep.subr.mxu0 0.0
    %2335 = vmatpush2.msra.mxu0 0.0
    %2336 = vmatprep.subr.mxu0 0.0
    %2337 = vmatpush2.msra.mxu0 0.0
    %2338 = vmatprep.subr.mxu0 0.0
    %2339 = vmatpush2.msra.mxu0 0.0
    %2340 = vmatprep.subr.mxu0 0.0
    %2341 = vmatpush2.msra.mxu0 0.0
    %2342 = vmatprep.subr.mxu0 0.0
    %2343 = vmatpush2.msra.mxu0 0.0
    %2344 = vmatprep.subr.mxu0 0.0
    %2345 = vmatpush2.msra.mxu0 0.0
    %2346 = vmatprep.subr.mxu0 0.0
    %2347 = vmatpush2.msra.mxu0 0.0
    %2348 = vmatprep.subr.mxu0 0.0
    %2349 = vmatpush2.msra.mxu0 0.0
    %2350 = vmatprep.subr.mxu0 0.0
    %2351 = vmatpush2.msra.mxu0 0.0
    %2352 = vmatprep.subr.mxu0 0.0
    %2353 = vmatpush2.msra.mxu0 0.0
    %2354 = vmatprep.subr.mxu0 0.0
    %2355 = vmatpush2.msra.mxu0 0.0
    %2356 = vmatprep.mubr.f32.mxu0 0.0
    %2357 = vmatmul.mubr.f32.gmra.mxu0 %v312
    %v2358 = vpop.f32.mrf.mxu0
    %v2359 = vadd.f32 0.0, %v2358
    %v2360 = vpop.f32.mrf.mxu0
    %2361 = vdwg.mxu0
    %v2362 = vadd.f32 %v2291, %v2359
    %v2363 = vxor.u32 %v2362, 2147483648
    %v2364 = vmul.f32 %v2363, 1.442695
    %v2365 = vpow.pop %v2364
    %v2366 = vadd.f32 %v2365, 1.0
    %v2367 = vrcp.pop %v2366
    %v2368 = vmul.f32 1.0, %v2367
    %v2369 = vtanh.pop %v2362
    %v2370 = vmul.f32 %v2368, 0.0
    %2372 = vrot.lane.b32.xlu0 %v2369, 64
    %v2373 = vpop.permute.xlu0 %2372
    %v2375 = vmul.f32 %v2368, %v2373
    %2377 = vrot.lane.b32.xlu0 %v2375, 32
    %v2378 = vpop.permute.xlu0 %2377
    %v2380 = vadd.f32 %v2370, %v2378
    %v2381 = vtanh.pop %v2380
    %2383 = vrot.lane.b32.xlu0 %v2381, 64
    %v2384 = vpop.permute.xlu0 %2383
    %v2386 = vmul.f32 %v2368, %v2384
    %2388 = vrot.lane.b32.xlu0 %v2386, 32
    %v2389 = vpop.permute.xlu0 %2388
    %2391 = vst.msk [vmem:[#allocation3] sm:$0xff] %vm310, %v2389
    %v2392 = vld [vmem:[%s414] sm:$0xff]
    %v2393 = vsel %vm310, %v2389, 0
    %2395 = vmatprep.subr.mxu0 0.0
    %2396 = vmatpush1.msra.mxu0 0.0
    %2397 = vmatprep.subr.mxu0 0.0
    %2398 = vmatpush1.msra.mxu0 0.0
    %2399 = vmatprep.subr.mxu0 0.0
    %2400 = vmatpush1.msra.mxu0 0.0
    %2401 = vmatprep.subr.mxu0 0.0
    %2402 = vmatpush1.msra.mxu0 0.0
    %2403 = vmatprep.subr.mxu0 0.0
    %2404 = vmatpush1.msra.mxu0 0.0
    %2405 = vmatprep.subr.mxu0 0.0
    %2406 = vmatpush1.msra.mxu0 0.0
    %2407 = vmatprep.subr.mxu0 0.0
    %2408 = vmatpush1.msra.mxu0 0.0
    %2409 = vmatprep.subr.mxu0 0.0
    %2410 = vmatpush1.msra.mxu0 0.0
    %2411 = vmatprep.subr.mxu0 0.0
    %2412 = vmatpush1.msra.mxu0 0.0
    %2413 = vmatprep.subr.mxu0 0.0
    %2414 = vmatpush1.msra.mxu0 0.0
    %2415 = vmatprep.subr.mxu0 0.0
    %2416 = vmatpush1.msra.mxu0 0.0
    %2417 = vmatprep.subr.mxu0 0.0
    %2418 = vmatpush1.msra.mxu0 0.0
    %2419 = vmatprep.subr.mxu0 0.0
    %2420 = vmatpush1.msra.mxu0 %v2146
    %2421 = vmatprep.subr.mxu0 0.0
    %2422 = vmatpush1.msra.mxu0 %v2145
    %2423 = vmatprep.subr.mxu0 0.0
    %2424 = vmatpush1.msra.mxu0 %v2144
    %2425 = vmatprep.subr.mxu0 0.0
    %2426 = vmatpush1.msra.mxu0 %v2143
    %2427 = vmatprep.subr.mxu0 0.0
    %2428 = vmatpush2.msra.mxu0 0.0
    %2429 = vmatprep.subr.mxu0 0.0
    %2430 = vmatpush2.msra.mxu0 0.0
    %2431 = vmatprep.subr.mxu0 0.0
    %2432 = vmatpush2.msra.mxu0 0.0
    %2433 = vmatprep.subr.mxu0 0.0
    %2434 = vmatpush2.msra.mxu0 0.0
    %2435 = vmatprep.subr.mxu0 0.0
    %2436 = vmatpush2.msra.mxu0 0.0
    %2437 = vmatprep.subr.mxu0 0.0
    %2438 = vmatpush2.msra.mxu0 0.0
    %2439 = vmatprep.subr.mxu0 0.0
    %2440 = vmatpush2.msra.mxu0 0.0
    %2441 = vmatprep.subr.mxu0 0.0
    %2442 = vmatpush2.msra.mxu0 0.0
    %2443 = vmatprep.subr.mxu0 0.0
    %2444 = vmatpush2.msra.mxu0 0.0
    %2445 = vmatprep.subr.mxu0 0.0
    %2446 = vmatpush2.msra.mxu0 0.0
    %2447 = vmatprep.subr.mxu0 0.0
    %2448 = vmatpush2.msra.mxu0 0.0
    %2449 = vmatprep.subr.mxu0 0.0
    %2450 = vmatpush2.msra.mxu0 0.0
    %2451 = vmatprep.subr.mxu0 0.0
    %2452 = vmatpush2.msra.mxu0 0.0
    %2453 = vmatprep.subr.mxu0 0.0
    %2454 = vmatpush2.msra.mxu0 0.0
    %2455 = vmatprep.subr.mxu0 0.0
    %2456 = vmatpush2.msra.mxu0 0.0
    %2457 = vmatprep.subr.mxu0 0.0
    %2458 = vmatpush2.msra.mxu0 0.0
    %2459 = vmatprep.mubr.f32.mxu0 0.0
    %2460 = vmatmul.mubr.f32.gmra.mxu0 %v2393
    %v2461 = vpop.f32.mrf.mxu0
    %v2462 = vadd.f32 0.0, %v2461
    %v2463 = vpop.f32.mrf.mxu0
    %2464 = vdwg.mxu0
    %v2465 = vadd.f32 %v2392, %v2462
    %v2466 = vxor.u32 %v2465, 2147483648
    %v2467 = vmul.f32 %v2466, 1.442695
    %v2468 = vpow.pop %v2467
    %v2469 = vadd.f32 %v2468, 1.0
    %v2470 = vrcp.pop %v2469
    %v2471 = vmul.f32 1.0, %v2470
    %v2472 = vtanh.pop %v2465
    %v2473 = vmul.f32 %v2471, %v2380
    %2475 = vrot.lane.b32.xlu0 %v2472, 64
    %v2476 = vpop.permute.xlu0 %2475
    %v2478 = vmul.f32 %v2471, %v2476
    %2480 = vrot.lane.b32.xlu0 %v2478, 32
    %v2481 = vpop.permute.xlu0 %2480
    %v2483 = vadd.f32 %v2473, %v2481
    %v2484 = vtanh.pop %v2483
    %2486 = vrot.lane.b32.xlu0 %v2484, 64
    %v2487 = vpop.permute.xlu0 %2486
    %v2489 = vmul.f32 %v2471, %v2487
    %2491 = vrot.lane.b32.xlu0 %v2489, 32
    %v2492 = vpop.permute.xlu0 %2491
    %2494 = vst.msk [vmem:[%s517] sm:$0xff] %vm310, %v2492
    %v2495 = vld [vmem:[%s519] sm:$0xff]
    %v2496 = vsel %vm310, %v2492, 0
    %2498 = vmatprep.subr.mxu0 0.0
    %2499 = vmatpush1.msra.mxu0 0.0
    %2500 = vmatprep.subr.mxu0 0.0
    %2501 = vmatpush1.msra.mxu0 0.0
    %2502 = vmatprep.subr.mxu0 0.0
    %2503 = vmatpush1.msra.mxu0 0.0
    %2504 = vmatprep.subr.mxu0 0.0
    %2505 = vmatpush1.msra.mxu0 0.0
    %2506 = vmatprep.subr.mxu0 0.0
    %2507 = vmatpush1.msra.mxu0 0.0
    %2508 = vmatprep.subr.mxu0 0.0
    %2509 = vmatpush1.msra.mxu0 0.0
    %2510 = vmatprep.subr.mxu0 0.0
    %2511 = vmatpush1.msra.mxu0 0.0
    %2512 = vmatprep.subr.mxu0 0.0
    %2513 = vmatpush1.msra.mxu0 0.0
    %2514 = vmatprep.subr.mxu0 0.0
    %2515 = vmatpush1.msra.mxu0 0.0
    %2516 = vmatprep.subr.mxu0 0.0
    %2517 = vmatpush1.msra.mxu0 0.0
    %2518 = vmatprep.subr.mxu0 0.0
    %2519 = vmatpush1.msra.mxu0 0.0
    %2520 = vmatprep.subr.mxu0 0.0
    %2521 = vmatpush1.msra.mxu0 0.0
    %2522 = vmatprep.subr.mxu0 0.0
    %2523 = vmatpush1.msra.mxu0 %v2146
    %2524 = vmatprep.subr.mxu0 0.0
    %2525 = vmatpush1.msra.mxu0 %v2145
    %2526 = vmatprep.subr.mxu0 0.0
    %2527 = vmatpush1.msra.mxu0 %v2144
    %2528 = vmatprep.subr.mxu0 0.0
    %2529 = vmatpush1.msra.mxu0 %v2143
    %2530 = vmatprep.subr.mxu0 0.0
    %2531 = vmatpush2.msra.mxu0 0.0
    %2532 = vmatprep.subr.mxu0 0.0
    %2533 = vmatpush2.msra.mxu0 0.0
    %2534 = vmatprep.subr.mxu0 0.0
    %2535 = vmatpush2.msra.mxu0 0.0
    %2536 = vmatprep.subr.mxu0 0.0
    %2537 = vmatpush2.msra.mxu0 0.0
    %2538 = vmatprep.subr.mxu0 0.0
    %2539 = vmatpush2.msra.mxu0 0.0
    %2540 = vmatprep.subr.mxu0 0.0
    %2541 = vmatpush2.msra.mxu0 0.0
    %2542 = vmatprep.subr.mxu0 0.0
    %2543 = vmatpush2.msra.mxu0 0.0
    %2544 = vmatprep.subr.mxu0 0.0
    %2545 = vmatpush2.msra.mxu0 0.0
    %2546 = vmatprep.subr.mxu0 0.0
    %2547 = vmatpush2.msra.mxu0 0.0
    %2548 = vmatprep.subr.mxu0 0.0
    %2549 = vmatpush2.msra.mxu0 0.0
    %2550 = vmatprep.subr.mxu0 0.0
    %2551 = vmatpush2.msra.mxu0 0.0
    %2552 = vmatprep.subr.mxu0 0.0
    %2553 = vmatpush2.msra.mxu0 0.0
    %2554 = vmatprep.subr.mxu0 0.0
    %2555 = vmatpush2.msra.mxu0 0.0
    %2556 = vmatprep.subr.mxu0 0.0
    %2557 = vmatpush2.msra.mxu0 0.0
    %2558 = vmatprep.subr.mxu0 0.0
    %2559 = vmatpush2.msra.mxu0 0.0
    %2560 = vmatprep.subr.mxu0 0.0
    %2561 = vmatpush2.msra.mxu0 0.0
    %2562 = vmatprep.mubr.f32.mxu0 0.0
    %2563 = vmatmul.mubr.f32.gmra.mxu0 %v2496
    %v2564 = vpop.f32.mrf.mxu0
    %v2565 = vadd.f32 0.0, %v2564
    %v2566 = vpop.f32.mrf.mxu0
    %2567 = vdwg.mxu0
    %v2568 = vadd.f32 %v2495, %v2565
    %v2569 = vxor.u32 %v2568, 2147483648
    %v2570 = vmul.f32 %v2569, 1.442695
    %v2571 = vpow.pop %v2570
    %v2572 = vadd.f32 %v2571, 1.0
    %v2573 = vrcp.pop %v2572
    %v2574 = vmul.f32 1.0, %v2573
    %v2575 = vtanh.pop %v2568
    %v2576 = vmul.f32 %v2574, %v2483
    %2578 = vrot.lane.b32.xlu0 %v2575, 64
    %v2579 = vpop.permute.xlu0 %2578
    %v2581 = vmul.f32 %v2574, %v2579
    %2583 = vrot.lane.b32.xlu0 %v2581, 32
    %v2584 = vpop.permute.xlu0 %2583
    %v2586 = vadd.f32 %v2576, %v2584
    %v2587 = vtanh.pop %v2586
    %2589 = vrot.lane.b32.xlu0 %v2587, 64
    %v2590 = vpop.permute.xlu0 %2589
    %v2592 = vmul.f32 %v2574, %v2590
    %2594 = vrot.lane.b32.xlu0 %v2592, 32
    %v2595 = vpop.permute.xlu0 %2594
    %2597 = vst.msk [vmem:[%s622] sm:$0xff] %vm310, %v2595
    %v2598 = vld [vmem:[%s624] sm:$0xff]
    %v2599 = vsel %vm310, %v2595, 0
    %2601 = vmatprep.subr.mxu0 0.0
    %2602 = vmatpush1.msra.mxu0 0.0
    %2603 = vmatprep.subr.mxu0 0.0
    %2604 = vmatpush1.msra.mxu0 0.0
    %2605 = vmatprep.subr.mxu0 0.0
    %2606 = vmatpush1.msra.mxu0 0.0
    %2607 = vmatprep.subr.mxu0 0.0
    %2608 = vmatpush1.msra.mxu0 0.0
    %2609 = vmatprep.subr.mxu0 0.0
    %2610 = vmatpush1.msra.mxu0 0.0
    %2611 = vmatprep.subr.mxu0 0.0
    %2612 = vmatpush1.msra.mxu0 0.0
    %2613 = vmatprep.subr.mxu0 0.0
    %2614 = vmatpush1.msra.mxu0 0.0
    %2615 = vmatprep.subr.mxu0 0.0
    %2616 = vmatpush1.msra.mxu0 0.0
    %2617 = vmatprep.subr.mxu0 0.0
    %2618 = vmatpush1.msra.mxu0 0.0
    %2619 = vmatprep.subr.mxu0 0.0
    %2620 = vmatpush1.msra.mxu0 0.0
    %2621 = vmatprep.subr.mxu0 0.0
    %2622 = vmatpush1.msra.mxu0 0.0
    %2623 = vmatprep.subr.mxu0 0.0
    %2624 = vmatpush1.msra.mxu0 0.0
    %2625 = vmatprep.subr.mxu0 0.0
    %2626 = vmatpush1.msra.mxu0 %v2146
    %2627 = vmatprep.subr.mxu0 0.0
    %2628 = vmatpush1.msra.mxu0 %v2145
    %2629 = vmatprep.subr.mxu0 0.0
    %2630 = vmatpush1.msra.mxu0 %v2144
    %2631 = vmatprep.subr.mxu0 0.0
    %2632 = vmatpush1.msra.mxu0 %v2143
    %2633 = vmatprep.subr.mxu0 0.0
    %2634 = vmatpush2.msra.mxu0 0.0
    %2635 = vmatprep.subr.mxu0 0.0
    %2636 = vmatpush2.msra.mxu0 0.0
    %2637 = vmatprep.subr.mxu0 0.0
    %2638 = vmatpush2.msra.mxu0 0.0
    %2639 = vmatprep.subr.mxu0 0.0
    %2640 = vmatpush2.msra.mxu0 0.0
    %2641 = vmatprep.subr.mxu0 0.0
    %2642 = vmatpush2.msra.mxu0 0.0
    %2643 = vmatprep.subr.mxu0 0.0
    %2644 = vmatpush2.msra.mxu0 0.0
    %2645 = vmatprep.subr.mxu0 0.0
    %2646 = vmatpush2.msra.mxu0 0.0
    %2647 = vmatprep.subr.mxu0 0.0
    %2648 = vmatpush2.msra.mxu0 0.0
    %2649 = vmatprep.subr.mxu0 0.0
    %2650 = vmatpush2.msra.mxu0 0.0
    %2651 = vmatprep.subr.mxu0 0.0
    %2652 = vmatpush2.msra.mxu0 0.0
    %2653 = vmatprep.subr.mxu0 0.0
    %2654 = vmatpush2.msra.mxu0 0.0
    %2655 = vmatprep.subr.mxu0 0.0
    %2656 = vmatpush2.msra.mxu0 0.0
    %2657 = vmatprep.subr.mxu0 0.0
    %2658 = vmatpush2.msra.mxu0 0.0
    %2659 = vmatprep.subr.mxu0 0.0
    %2660 = vmatpush2.msra.mxu0 0.0
    %2661 = vmatprep.subr.mxu0 0.0
    %2662 = vmatpush2.msra.mxu0 0.0
    %2663 = vmatprep.subr.mxu0 0.0
    %2664 = vmatpush2.msra.mxu0 0.0
    %2665 = vmatprep.mubr.f32.mxu0 0.0
    %2666 = vmatmul.mubr.f32.gmra.mxu0 %v2599
    %v2667 = vpop.f32.mrf.mxu0
    %v2668 = vadd.f32 0.0, %v2667
    %v2669 = vpop.f32.mrf.mxu0
    %2670 = vdwg.mxu0
    %v2671 = vadd.f32 %v2598, %v2668
    %v2672 = vxor.u32 %v2671, 2147483648
    %v2673 = vmul.f32 %v2672, 1.442695
    %v2674 = vpow.pop %v2673
    %v2675 = vadd.f32 %v2674, 1.0
    %v2676 = vrcp.pop %v2675
    %v2677 = vmul.f32 1.0, %v2676
    %v2678 = vtanh.pop %v2671
    %v2679 = vmul.f32 %v2677, %v2586
    %2681 = vrot.lane.b32.xlu0 %v2678, 64
    %v2682 = vpop.permute.xlu0 %2681
    %v2684 = vmul.f32 %v2677, %v2682
    %2686 = vrot.lane.b32.xlu0 %v2684, 32
    %v2687 = vpop.permute.xlu0 %2686
    %v2689 = vadd.f32 %v2679, %v2687
    %v2690 = vtanh.pop %v2689
    %2692 = vrot.lane.b32.xlu0 %v2690, 64
    %v2693 = vpop.permute.xlu0 %2692
    %v2695 = vmul.f32 %v2677, %v2693
    %2697 = vrot.lane.b32.xlu0 %v2695, 32
    %v2698 = vpop.permute.xlu0 %2697
    %2700 = vst.msk [vmem:[%s727] sm:$0xff] %vm310, %v2698
    %v2701 = vld [vmem:[%s729] sm:$0xff]
    %v2702 = vsel %vm310, %v2698, 0
    %2704 = vmatprep.subr.mxu0 0.0
    %2705 = vmatpush1.msra.mxu0 0.0
    %2706 = vmatprep.subr.mxu0 0.0
    %2707 = vmatpush1.msra.mxu0 0.0
    %2708 = vmatprep.subr.mxu0 0.0
    %2709 = vmatpush1.msra.mxu0 0.0
    %2710 = vmatprep.subr.mxu0 0.0
    %2711 = vmatpush1.msra.mxu0 0.0
    %2712 = vmatprep.subr.mxu0 0.0
    %2713 = vmatpush1.msra.mxu0 0.0
    %2714 = vmatprep.subr.mxu0 0.0
    %2715 = vmatpush1.msra.mxu0 0.0
    %2716 = vmatprep.subr.mxu0 0.0
    %2717 = vmatpush1.msra.mxu0 0.0
    %2718 = vmatprep.subr.mxu0 0.0
    %2719 = vmatpush1.msra.mxu0 0.0
    %2720 = vmatprep.subr.mxu0 0.0
    %2721 = vmatpush1.msra.mxu0 0.0
    %2722 = vmatprep.subr.mxu0 0.0
    %2723 = vmatpush1.msra.mxu0 0.0
    %2724 = vmatprep.subr.mxu0 0.0
    %2725 = vmatpush1.msra.mxu0 0.0
    %2726 = vmatprep.subr.mxu0 0.0
    %2727 = vmatpush1.msra.mxu0 0.0
    %2728 = vmatprep.subr.mxu0 0.0
    %2729 = vmatpush1.msra.mxu0 %v2146
    %2730 = vmatprep.subr.mxu0 0.0
    %2731 = vmatpush1.msra.mxu0 %v2145
    %2732 = vmatprep.subr.mxu0 0.0
    %2733 = vmatpush1.msra.mxu0 %v2144
    %2734 = vmatprep.subr.mxu0 0.0
    %2735 = vmatpush1.msra.mxu0 %v2143
    %2736 = vmatprep.subr.mxu0 0.0
    %2737 = vmatpush2.msra.mxu0 0.0
    %2738 = vmatprep.subr.mxu0 0.0
    %2739 = vmatpush2.msra.mxu0 0.0
    %2740 = vmatprep.subr.mxu0 0.0
    %2741 = vmatpush2.msra.mxu0 0.0
    %2742 = vmatprep.subr.mxu0 0.0
    %2743 = vmatpush2.msra.mxu0 0.0
    %2744 = vmatprep.subr.mxu0 0.0
    %2745 = vmatpush2.msra.mxu0 0.0
    %2746 = vmatprep.subr.mxu0 0.0
    %2747 = vmatpush2.msra.mxu0 0.0
    %2748 = vmatprep.subr.mxu0 0.0
    %2749 = vmatpush2.msra.mxu0 0.0
    %2750 = vmatprep.subr.mxu0 0.0
    %2751 = vmatpush2.msra.mxu0 0.0
    %2752 = vmatprep.subr.mxu0 0.0
    %2753 = vmatpush2.msra.mxu0 0.0
    %2754 = vmatprep.subr.mxu0 0.0
    %2755 = vmatpush2.msra.mxu0 0.0
    %2756 = vmatprep.subr.mxu0 0.0
    %2757 = vmatpush2.msra.mxu0 0.0
    %2758 = vmatprep.subr.mxu0 0.0
    %2759 = vmatpush2.msra.mxu0 0.0
    %2760 = vmatprep.subr.mxu0 0.0
    %2761 = vmatpush2.msra.mxu0 0.0
    %2762 = vmatprep.subr.mxu0 0.0
    %2763 = vmatpush2.msra.mxu0 0.0
    %2764 = vmatprep.subr.mxu0 0.0
    %2765 = vmatpush2.msra.mxu0 0.0
    %2766 = vmatprep.subr.mxu0 0.0
    %2767 = vmatpush2.msra.mxu0 0.0
    %2768 = vmatprep.mubr.f32.mxu0 0.0
    %2769 = vmatmul.mubr.f32.gmra.mxu0 %v2702
    %v2770 = vpop.f32.mrf.mxu0
    %v2771 = vadd.f32 0.0, %v2770
    %v2772 = vpop.f32.mrf.mxu0
    %2773 = vdwg.mxu0
    %v2774 = vadd.f32 %v2701, %v2771
    %v2775 = vxor.u32 %v2774, 2147483648
    %v2776 = vmul.f32 %v2775, 1.442695
    %v2777 = vpow.pop %v2776
    %v2778 = vadd.f32 %v2777, 1.0
    %v2779 = vrcp.pop %v2778
    %v2780 = vmul.f32 1.0, %v2779
    %v2781 = vtanh.pop %v2774
    %v2782 = vmul.f32 %v2780, %v2689
    %2784 = vrot.lane.b32.xlu0 %v2781, 64
    %v2785 = vpop.permute.xlu0 %2784
    %v2787 = vmul.f32 %v2780, %v2785
    %2789 = vrot.lane.b32.xlu0 %v2787, 32
    %v2790 = vpop.permute.xlu0 %2789
    %v2792 = vadd.f32 %v2782, %v2790
    %v2793 = vtanh.pop %v2792
    %2795 = vrot.lane.b32.xlu0 %v2793, 64
    %v2796 = vpop.permute.xlu0 %2795
    %v2798 = vmul.f32 %v2780, %v2796
    %2800 = vrot.lane.b32.xlu0 %v2798, 32
    %v2801 = vpop.permute.xlu0 %2800
    %2803 = vst.msk [vmem:[%s832] sm:$0xff] %vm310, %v2801
    %v2804 = vld [vmem:[%s834] sm:$0xff]
    %v2805 = vsel %vm310, %v2801, 0
    %2807 = vmatprep.subr.mxu0 0.0
    %2808 = vmatpush1.msra.mxu0 0.0
    %2809 = vmatprep.subr.mxu0 0.0
    %2810 = vmatpush1.msra.mxu0 0.0
    %2811 = vmatprep.subr.mxu0 0.0
    %2812 = vmatpush1.msra.mxu0 0.0
    %2813 = vmatprep.subr.mxu0 0.0
    %2814 = vmatpush1.msra.mxu0 0.0
    %2815 = vmatprep.subr.mxu0 0.0
    %2816 = vmatpush1.msra.mxu0 0.0
    %2817 = vmatprep.subr.mxu0 0.0
    %2818 = vmatpush1.msra.mxu0 0.0
    %2819 = vmatprep.subr.mxu0 0.0
    %2820 = vmatpush1.msra.mxu0 0.0
    %2821 = vmatprep.subr.mxu0 0.0
    %2822 = vmatpush1.msra.mxu0 0.0
    %2823 = vmatprep.subr.mxu0 0.0
    %2824 = vmatpush1.msra.mxu0 0.0
    %2825 = vmatprep.subr.mxu0 0.0
    %2826 = vmatpush1.msra.mxu0 0.0
    %2827 = vmatprep.subr.mxu0 0.0
    %2828 = vmatpush1.msra.mxu0 0.0
    %2829 = vmatprep.subr.mxu0 0.0
    %2830 = vmatpush1.msra.mxu0 0.0
    %2831 = vmatprep.subr.mxu0 0.0
    %2832 = vmatpush1.msra.mxu0 %v2146
    %2833 = vmatprep.subr.mxu0 0.0
    %2834 = vmatpush1.msra.mxu0 %v2145
    %2835 = vmatprep.subr.mxu0 0.0
    %2836 = vmatpush1.msra.mxu0 %v2144
    %2837 = vmatprep.subr.mxu0 0.0
    %2838 = vmatpush1.msra.mxu0 %v2143
    %2839 = vmatprep.subr.mxu0 0.0
    %2840 = vmatpush2.msra.mxu0 0.0
    %2841 = vmatprep.subr.mxu0 0.0
    %2842 = vmatpush2.msra.mxu0 0.0
    %2843 = vmatprep.subr.mxu0 0.0
    %2844 = vmatpush2.msra.mxu0 0.0
    %2845 = vmatprep.subr.mxu0 0.0
    %2846 = vmatpush2.msra.mxu0 0.0
    %2847 = vmatprep.subr.mxu0 0.0
    %2848 = vmatpush2.msra.mxu0 0.0
    %2849 = vmatprep.subr.mxu0 0.0
    %2850 = vmatpush2.msra.mxu0 0.0
    %2851 = vmatprep.subr.mxu0 0.0
    %2852 = vmatpush2.msra.mxu0 0.0
    %2853 = vmatprep.subr.mxu0 0.0
    %2854 = vmatpush2.msra.mxu0 0.0
    %2855 = vmatprep.subr.mxu0 0.0
    %2856 = vmatpush2.msra.mxu0 0.0
    %2857 = vmatprep.subr.mxu0 0.0
    %2858 = vmatpush2.msra.mxu0 0.0
    %2859 = vmatprep.subr.mxu0 0.0
    %2860 = vmatpush2.msra.mxu0 0.0
    %2861 = vmatprep.subr.mxu0 0.0
    %2862 = vmatpush2.msra.mxu0 0.0
    %2863 = vmatprep.subr.mxu0 0.0
    %2864 = vmatpush2.msra.mxu0 0.0
    %2865 = vmatprep.subr.mxu0 0.0
    %2866 = vmatpush2.msra.mxu0 0.0
    %2867 = vmatprep.subr.mxu0 0.0
    %2868 = vmatpush2.msra.mxu0 0.0
    %2869 = vmatprep.subr.mxu0 0.0
    %2870 = vmatpush2.msra.mxu0 0.0
    %2871 = vmatprep.mubr.f32.mxu0 0.0
    %2872 = vmatmul.mubr.f32.gmra.mxu0 %v2805
    %v2873 = vpop.f32.mrf.mxu0
    %v2874 = vadd.f32 0.0, %v2873
    %v2875 = vpop.f32.mrf.mxu0
    %2876 = vdwg.mxu0
    %v2877 = vadd.f32 %v2804, %v2874
    %v2878 = vxor.u32 %v2877, 2147483648
    %v2879 = vmul.f32 %v2878, 1.442695
    %v2880 = vpow.pop %v2879
    %v2881 = vadd.f32 %v2880, 1.0
    %v2882 = vrcp.pop %v2881
    %v2883 = vmul.f32 1.0, %v2882
    %v2884 = vtanh.pop %v2877
    %v2885 = vmul.f32 %v2883, %v2792
    %2887 = vrot.lane.b32.xlu0 %v2884, 64
    %v2888 = vpop.permute.xlu0 %2887
    %v2890 = vmul.f32 %v2883, %v2888
    %2892 = vrot.lane.b32.xlu0 %v2890, 32
    %v2893 = vpop.permute.xlu0 %2892
    %v2895 = vadd.f32 %v2885, %v2893
    %v2896 = vtanh.pop %v2895
    %2898 = vrot.lane.b32.xlu0 %v2896, 64
    %v2899 = vpop.permute.xlu0 %2898
    %v2901 = vmul.f32 %v2883, %v2899
    %2903 = vrot.lane.b32.xlu0 %v2901, 32
    %v2904 = vpop.permute.xlu0 %2903
    %2906 = vst.msk [vmem:[%s937] sm:$0xff] %vm310, %v2904
    %v2907 = vld [vmem:[%s939] sm:$0xff]
    %v2908 = vsel %vm310, %v2904, 0
    %2910 = vmatprep.subr.mxu0 0.0
    %2911 = vmatpush1.msra.mxu0 0.0
    %2912 = vmatprep.subr.mxu0 0.0
    %2913 = vmatpush1.msra.mxu0 0.0
    %2914 = vmatprep.subr.mxu0 0.0
    %2915 = vmatpush1.msra.mxu0 0.0
    %2916 = vmatprep.subr.mxu0 0.0
    %2917 = vmatpush1.msra.mxu0 0.0
    %2918 = vmatprep.subr.mxu0 0.0
    %2919 = vmatpush1.msra.mxu0 0.0
    %2920 = vmatprep.subr.mxu0 0.0
    %2921 = vmatpush1.msra.mxu0 0.0
    %2922 = vmatprep.subr.mxu0 0.0
    %2923 = vmatpush1.msra.mxu0 0.0
    %2924 = vmatprep.subr.mxu0 0.0
    %2925 = vmatpush1.msra.mxu0 0.0
    %2926 = vmatprep.subr.mxu0 0.0
    %2927 = vmatpush1.msra.mxu0 0.0
    %2928 = vmatprep.subr.mxu0 0.0
    %2929 = vmatpush1.msra.mxu0 0.0
    %2930 = vmatprep.subr.mxu0 0.0
    %2931 = vmatpush1.msra.mxu0 0.0
    %2932 = vmatprep.subr.mxu0 0.0
    %2933 = vmatpush1.msra.mxu0 0.0
    %2934 = vmatprep.subr.mxu0 0.0
    %2935 = vmatpush1.msra.mxu0 %v2146
    %2936 = vmatprep.subr.mxu0 0.0
    %2937 = vmatpush1.msra.mxu0 %v2145
    %2938 = vmatprep.subr.mxu0 0.0
    %2939 = vmatpush1.msra.mxu0 %v2144
    %2940 = vmatprep.subr.mxu0 0.0
    %2941 = vmatpush1.msra.mxu0 %v2143
    %2942 = vmatprep.subr.mxu0 0.0
    %2943 = vmatpush2.msra.mxu0 0.0
    %2944 = vmatprep.subr.mxu0 0.0
    %2945 = vmatpush2.msra.mxu0 0.0
    %2946 = vmatprep.subr.mxu0 0.0
    %2947 = vmatpush2.msra.mxu0 0.0
    %2948 = vmatprep.subr.mxu0 0.0
    %2949 = vmatpush2.msra.mxu0 0.0
    %2950 = vmatprep.subr.mxu0 0.0
    %2951 = vmatpush2.msra.mxu0 0.0
    %2952 = vmatprep.subr.mxu0 0.0
    %2953 = vmatpush2.msra.mxu0 0.0
    %2954 = vmatprep.subr.mxu0 0.0
    %2955 = vmatpush2.msra.mxu0 0.0
    %2956 = vmatprep.subr.mxu0 0.0
    %2957 = vmatpush2.msra.mxu0 0.0
    %2958 = vmatprep.subr.mxu0 0.0
    %2959 = vmatpush2.msra.mxu0 0.0
    %2960 = vmatprep.subr.mxu0 0.0
    %2961 = vmatpush2.msra.mxu0 0.0
    %2962 = vmatprep.subr.mxu0 0.0
    %2963 = vmatpush2.msra.mxu0 0.0
    %2964 = vmatprep.subr.mxu0 0.0
    %2965 = vmatpush2.msra.mxu0 0.0
    %2966 = vmatprep.subr.mxu0 0.0
    %2967 = vmatpush2.msra.mxu0 0.0
    %2968 = vmatprep.subr.mxu0 0.0
    %2969 = vmatpush2.msra.mxu0 0.0
    %2970 = vmatprep.subr.mxu0 0.0
    %2971 = vmatpush2.msra.mxu0 0.0
    %2972 = vmatprep.subr.mxu0 0.0
    %2973 = vmatpush2.msra.mxu0 0.0
    %2974 = vmatprep.mubr.f32.mxu0 0.0
    %2975 = vmatmul.mubr.f32.gmra.mxu0 %v2908
    %v2976 = vpop.f32.mrf.mxu0
    %v2977 = vadd.f32 0.0, %v2976
    %v2978 = vpop.f32.mrf.mxu0
    %2979 = vdwg.mxu0
    %v2980 = vadd.f32 %v2907, %v2977
    %v2981 = vxor.u32 %v2980, 2147483648
    %v2982 = vmul.f32 %v2981, 1.442695
    %v2983 = vpow.pop %v2982
    %v2984 = vadd.f32 %v2983, 1.0
    %v2985 = vrcp.pop %v2984
    %v2986 = vmul.f32 1.0, %v2985
    %v2987 = vtanh.pop %v2980
    %v2988 = vmul.f32 %v2986, %v2895
    %2990 = vrot.lane.b32.xlu0 %v2987, 64
    %v2991 = vpop.permute.xlu0 %2990
    %v2993 = vmul.f32 %v2986, %v2991
    %2995 = vrot.lane.b32.xlu0 %v2993, 32
    %v2996 = vpop.permute.xlu0 %2995
    %v2998 = vadd.f32 %v2988, %v2996
    %v2999 = vtanh.pop %v2998
    %3001 = vrot.lane.b32.xlu0 %v2999, 64
    %v3002 = vpop.permute.xlu0 %3001
    %v3004 = vmul.f32 %v2986, %v3002
    %3006 = vrot.lane.b32.xlu0 %v3004, 32
    %v3007 = vpop.permute.xlu0 %3006
    %3009 = vst.msk [vmem:[%s1042] sm:$0xff] %vm310, %v3007
    %v3010 = vld [vmem:[%s1044] sm:$0xff]
    %v3011 = vsel %vm310, %v3007, 0
    %3013 = vmatprep.subr.mxu0 0.0
    %3014 = vmatpush1.msra.mxu0 0.0
    %3015 = vmatprep.subr.mxu0 0.0
    %3016 = vmatpush1.msra.mxu0 0.0
    %3017 = vmatprep.subr.mxu0 0.0
    %3018 = vmatpush1.msra.mxu0 0.0
    %3019 = vmatprep.subr.mxu0 0.0
    %3020 = vmatpush1.msra.mxu0 0.0
    %3021 = vmatprep.subr.mxu0 0.0
    %3022 = vmatpush1.msra.mxu0 0.0
    %3023 = vmatprep.subr.mxu0 0.0
    %3024 = vmatpush1.msra.mxu0 0.0
    %3025 = vmatprep.subr.mxu0 0.0
    %3026 = vmatpush1.msra.mxu0 0.0
    %3027 = vmatprep.subr.mxu0 0.0
    %3028 = vmatpush1.msra.mxu0 0.0
    %3029 = vmatprep.subr.mxu0 0.0
    %3030 = vmatpush1.msra.mxu0 0.0
    %3031 = vmatprep.subr.mxu0 0.0
    %3032 = vmatpush1.msra.mxu0 0.0
    %3033 = vmatprep.subr.mxu0 0.0
    %3034 = vmatpush1.msra.mxu0 0.0
    %3035 = vmatprep.subr.mxu0 0.0
    %3036 = vmatpush1.msra.mxu0 0.0
    %3037 = vmatprep.subr.mxu0 0.0
    %3038 = vmatpush1.msra.mxu0 %v2146
    %3039 = vmatprep.subr.mxu0 0.0
    %3040 = vmatpush1.msra.mxu0 %v2145
    %3041 = vmatprep.subr.mxu0 0.0
    %3042 = vmatpush1.msra.mxu0 %v2144
    %3043 = vmatprep.subr.mxu0 0.0
    %3044 = vmatpush1.msra.mxu0 %v2143
    %3045 = vmatprep.subr.mxu0 0.0
    %3046 = vmatpush2.msra.mxu0 0.0
    %3047 = vmatprep.subr.mxu0 0.0
    %3048 = vmatpush2.msra.mxu0 0.0
    %3049 = vmatprep.subr.mxu0 0.0
    %3050 = vmatpush2.msra.mxu0 0.0
    %3051 = vmatprep.subr.mxu0 0.0
    %3052 = vmatpush2.msra.mxu0 0.0
    %3053 = vmatprep.subr.mxu0 0.0
    %3054 = vmatpush2.msra.mxu0 0.0
    %3055 = vmatprep.subr.mxu0 0.0
    %3056 = vmatpush2.msra.mxu0 0.0
    %3057 = vmatprep.subr.mxu0 0.0
    %3058 = vmatpush2.msra.mxu0 0.0
    %3059 = vmatprep.subr.mxu0 0.0
    %3060 = vmatpush2.msra.mxu0 0.0
    %3061 = vmatprep.subr.mxu0 0.0
    %3062 = vmatpush2.msra.mxu0 0.0
    %3063 = vmatprep.subr.mxu0 0.0
    %3064 = vmatpush2.msra.mxu0 0.0
    %3065 = vmatprep.subr.mxu0 0.0
    %3066 = vmatpush2.msra.mxu0 0.0
    %3067 = vmatprep.subr.mxu0 0.0
    %3068 = vmatpush2.msra.mxu0 0.0
    %3069 = vmatprep.subr.mxu0 0.0
    %3070 = vmatpush2.msra.mxu0 0.0
    %3071 = vmatprep.subr.mxu0 0.0
    %3072 = vmatpush2.msra.mxu0 0.0
    %3073 = vmatprep.subr.mxu0 0.0
    %3074 = vmatpush2.msra.mxu0 0.0
    %3075 = vmatprep.subr.mxu0 0.0
    %3076 = vmatpush2.msra.mxu0 0.0
    %3077 = vmatprep.mubr.f32.mxu0 0.0
    %3078 = vmatmul.mubr.f32.gmra.mxu0 %v3011
    %v3079 = vpop.f32.mrf.mxu0
    %v3080 = vadd.f32 0.0, %v3079
    %v3081 = vpop.f32.mrf.mxu0
    %3082 = vdwg.mxu0
    %v3083 = vadd.f32 %v3010, %v3080
    %v3084 = vxor.u32 %v3083, 2147483648
    %v3085 = vmul.f32 %v3084, 1.442695
    %v3086 = vpow.pop %v3085
    %v3087 = vadd.f32 %v3086, 1.0
    %v3088 = vrcp.pop %v3087
    %v3089 = vmul.f32 1.0, %v3088
    %v3090 = vtanh.pop %v3083
    %v3091 = vmul.f32 %v3089, %v2998
    %3093 = vrot.lane.b32.xlu0 %v3090, 64
    %v3094 = vpop.permute.xlu0 %3093
    %v3096 = vmul.f32 %v3089, %v3094
    %3098 = vrot.lane.b32.xlu0 %v3096, 32
    %v3099 = vpop.permute.xlu0 %3098
    %v3101 = vadd.f32 %v3091, %v3099
    %v3102 = vtanh.pop %v3101
    %3104 = vrot.lane.b32.xlu0 %v3102, 64
    %v3105 = vpop.permute.xlu0 %3104
    %v3107 = vmul.f32 %v3089, %v3105
    %3109 = vrot.lane.b32.xlu0 %v3107, 32
    %v3110 = vpop.permute.xlu0 %3109
    %3112 = vst.msk [vmem:[%s1147] sm:$0xff] %vm310, %v3110
    %v3113 = vld [vmem:[#allocation3] sm:$0xff]
    %v3114 = vld [vmem:[#allocation3 + $0x8] sm:$0xff]
    %v3115 = vld [vmem:[#allocation3 + $0x10] sm:$0xff]
    %v3116 = vld [vmem:[#allocation3 + $0x18] sm:$0xff]
    %v3117 = vld [vmem:[#allocation3 + $0x20] sm:$0xff]
    %v3118 = vld [vmem:[#allocation3 + $0x28] sm:$0xff]
    %v3119 = vld [vmem:[#allocation3 + $0x30] sm:$0xff]
    %v3120 = vld [vmem:[#allocation3 + $0x38] sm:$0xff]
    %v3121 = vld [vmem:[%s10] sm:$0xff]
    %v3122 = vld [vmem:[%s10 + $0x8] sm:$0xff]
    %v3123 = vld [vmem:[%s10 + $0x10] sm:$0xff]
    %v3124 = vld [vmem:[%s10 + $0x18] sm:$0xff]
    %v3125 = vld [vmem:[%s11] sm:$0x1]
    %v3127 = vlaneseq
    %v3128 = vshrl.u32 %v3127, 7
    %v3129 = vsub.s32 0, %v3128
    %v3130 = vrot.slane %v3125, %v3129
    %v3133 = vsel %vm310, %v3113, 0
    %v3136 = vsel %vm310, %v3114, 0
    %v3139 = vsel %vm310, %v3115, 0
    %v3142 = vsel %vm310, %v3116, 0
    %v3145 = vsel %vm310, %v3117, 0
    %v3148 = vsel %vm310, %v3118, 0
    %v3151 = vsel %vm310, %v3119, 0
    %v3154 = vsel %vm310, %v3120, 0
    %3156 = vmatprep.subr.mxu0 0.0
    %3157 = vmatpush1.msra.mxu0 0.0
    %3158 = vmatprep.subr.mxu0 0.0
    %3159 = vmatpush1.msra.mxu0 0.0
    %3160 = vmatprep.subr.mxu0 0.0
    %3161 = vmatpush1.msra.mxu0 0.0
    %3162 = vmatprep.subr.mxu0 0.0
    %3163 = vmatpush1.msra.mxu0 0.0
    %3164 = vmatprep.subr.mxu0 0.0
    %3165 = vmatpush1.msra.mxu0 0.0
    %3166 = vmatprep.subr.mxu0 0.0
    %3167 = vmatpush1.msra.mxu0 0.0
    %3168 = vmatprep.subr.mxu0 0.0
    %3169 = vmatpush1.msra.mxu0 0.0
    %3170 = vmatprep.subr.mxu0 0.0
    %3171 = vmatpush1.msra.mxu0 0.0
    %3172 = vmatprep.subr.mxu0 0.0
    %3173 = vmatpush1.msra.mxu0 0.0
    %3174 = vmatprep.subr.mxu0 0.0
    %3175 = vmatpush1.msra.mxu0 0.0
    %3176 = vmatprep.subr.mxu0 0.0
    %3177 = vmatpush1.msra.mxu0 0.0
    %3178 = vmatprep.subr.mxu0 0.0
    %3179 = vmatpush1.msra.mxu0 0.0
    %3180 = vmatprep.subr.mxu0 0.0
    %3181 = vmatpush1.msra.mxu0 %v3124
    %3182 = vmatprep.subr.mxu0 0.0
    %3183 = vmatpush1.msra.mxu0 %v3123
    %3184 = vmatprep.subr.mxu0 0.0
    %3185 = vmatpush1.msra.mxu0 %v3122
    %3186 = vmatprep.subr.mxu0 0.0
    %3187 = vmatpush1.msra.mxu0 %v3121
    %3188 = vmatprep.subr.mxu0 0.0
    %3189 = vmatpush2.msra.mxu0 0.0
    %3190 = vmatprep.subr.mxu0 0.0
    %3191 = vmatpush2.msra.mxu0 0.0
    %3192 = vmatprep.subr.mxu0 0.0
    %3193 = vmatpush2.msra.mxu0 0.0
    %3194 = vmatprep.subr.mxu0 0.0
    %3195 = vmatpush2.msra.mxu0 0.0
    %3196 = vmatprep.subr.mxu0 0.0
    %3197 = vmatpush2.msra.mxu0 0.0
    %3198 = vmatprep.subr.mxu0 0.0
    %3199 = vmatpush2.msra.mxu0 0.0
    %3200 = vmatprep.subr.mxu0 0.0
    %3201 = vmatpush2.msra.mxu0 0.0
    %3202 = vmatprep.subr.mxu0 0.0
    %3203 = vmatpush2.msra.mxu0 0.0
    %3204 = vmatprep.subr.mxu0 0.0
    %3205 = vmatpush2.msra.mxu0 0.0
    %3206 = vmatprep.subr.mxu0 0.0
    %3207 = vmatpush2.msra.mxu0 0.0
    %3208 = vmatprep.subr.mxu0 0.0
    %3209 = vmatpush2.msra.mxu0 0.0
    %3210 = vmatprep.subr.mxu0 0.0
    %3211 = vmatpush2.msra.mxu0 0.0
    %3212 = vmatprep.subr.mxu0 0.0
    %3213 = vmatpush2.msra.mxu0 0.0
    %3214 = vmatprep.subr.mxu0 0.0
    %3215 = vmatpush2.msra.mxu0 0.0
    %3216 = vmatprep.subr.mxu0 0.0
    %3217 = vmatpush2.msra.mxu0 0.0
    %3218 = vmatprep.subr.mxu0 0.0
    %3219 = vmatpush2.msra.mxu0 0.0
    %3220 = vmatprep.mubr.f32.mxu0 0.0
    %3221 = vmatmul.mubr.f32.gmra.mxu0 %v3133
    %v3222 = vpop.f32.mrf.mxu0
    %v3223 = vadd.f32 %v3130, %v3222
    %v3224 = vpop.f32.mrf.mxu0
    %3225 = vmatprep.mubr.f32.mxu0 0.0
    %3226 = vmatmul.mubr.f32.gmra.mxu0 %v3136
    %v3227 = vpop.f32.mrf.mxu0
    %v3228 = vadd.f32 %v3130, %v3227
    %v3229 = vpop.f32.mrf.mxu0
    %3230 = vmatprep.mubr.f32.mxu0 0.0
    %3231 = vmatmul.mubr.f32.gmra.mxu0 %v3139
    %v3232 = vpop.f32.mrf.mxu0
    %v3233 = vadd.f32 %v3130, %v3232
    %v3234 = vpop.f32.mrf.mxu0
    %3235 = vmatprep.mubr.f32.mxu0 0.0
    %3236 = vmatmul.mubr.f32.gmra.mxu0 %v3142
    %v3237 = vpop.f32.mrf.mxu0
    %v3238 = vadd.f32 %v3130, %v3237
    %v3239 = vpop.f32.mrf.mxu0
    %3240 = vmatprep.mubr.f32.mxu0 0.0
    %3241 = vmatmul.mubr.f32.gmra.mxu0 %v3145
    %v3242 = vpop.f32.mrf.mxu0
    %v3243 = vadd.f32 %v3130, %v3242
    %v3244 = vpop.f32.mrf.mxu0
    %3245 = vmatprep.mubr.f32.mxu0 0.0
    %3246 = vmatmul.mubr.f32.gmra.mxu0 %v3148
    %v3247 = vpop.f32.mrf.mxu0
    %v3248 = vadd.f32 %v3130, %v3247
    %v3249 = vpop.f32.mrf.mxu0
    %3250 = vmatprep.mubr.f32.mxu0 0.0
    %3251 = vmatmul.mubr.f32.gmra.mxu0 %v3151
    %v3252 = vpop.f32.mrf.mxu0
    %v3253 = vadd.f32 %v3130, %v3252
    %v3254 = vpop.f32.mrf.mxu0
    %3255 = vmatprep.mubr.f32.mxu0 0.0
    %3256 = vmatmul.mubr.f32.gmra.mxu0 %v3154
    %v3257 = vpop.f32.mrf.mxu0
    %v3258 = vadd.f32 %v3130, %v3257
    %v3259 = vpop.f32.mrf.mxu0
    %3260 = vdwg.mxu0
    %3261 = vst [vmem:[%s12] sm:$0xff] %v3223
    %3262 = vst [vmem:[%s12 + $0x8] sm:$0xff] %v3228
    %3263 = vst [vmem:[%s12 + $0x10] sm:$0xff] %v3233
    %3264 = vst [vmem:[%s12 + $0x18] sm:$0xff] %v3238
    %3265 = vst [vmem:[%s12 + $0x20] sm:$0xff] %v3243
    %3266 = vst [vmem:[%s12 + $0x28] sm:$0xff] %v3248
    %3267 = vst [vmem:[%s12 + $0x30] sm:$0xff] %v3253
    %3268 = vst [vmem:[%s12 + $0x38] sm:$0xff] %v3258
    // Predicated region
    $region82: #{layer_rnn_forward.1} parent=1 // pred_check
      _
    $region83: #{layer_rnn_forward.1} parent=1 // pred_check_branch
      %3270 = sbr.rel (0) target = $region85
    $region84: #{layer_rnn_forward.1} parent=1 // pred_region
      _
    $region85: #{layer_rnn_forward.1} parent=1 // pred_fallthru
      _
    // Predicated region
    $region86: #{layer_rnn_forward.1} parent=1 // pred_check
      _
    $region87: #{layer_rnn_forward.1} parent=1 // pred_check_branch
      %3272 = sbr.rel (0) target = $region89
    $region88: #{layer_rnn_forward.1} parent=1 // pred_region
      _
    $region89: #{layer_rnn_forward.1} parent=1 // pred_fallthru
      _
    %3273 = vsyncpa [#allocation5], 1
    %3274 = vsyncpa [#allocation7], 1
    %3275 = vsyncpa [#allocation10], 1
    %3276 = vsyncpa [#allocation13], 1
    %3277 = vsyncpa [#allocation16], 1

</llo_original>
